<compile_context>
chip_gen: v5e
topology: v5e:2x2
jax: 0.10.0
libtpu: 0.0.40
codegen_flags: <defaults>
</compile_context>

<pallas_src>
import functools

import jax
import jax.numpy as jnp
from jax.experimental import pallas as pl
from jax.experimental.pallas import tpu as pltpu

EPS = 1e-5
LANE = 128


def _round_up(x, m):
    return (x + m - 1) // m * m


def _bn_train_fused(t, gamma, beta, *, relu):
    """Training-mode batch norm on an (M, C) f32 activation.

    Per-channel sum / sum-of-squares are computed on the MXU (ones @ t and
    ones @ (t*t), f32 accumulate) so the XLU reduce slots stay free; the
    biased variance E[x^2] - mean^2 is clamped at 0 before rsqrt and folded
    into a single per-channel scale/shift FMA.
    """
    m = t.shape[0]
    inv_m = 1.0 / m
    ones = jnp.ones((1, m), jnp.float32)
    s = jnp.dot(ones, t, preferred_element_type=jnp.float32)        # (1, C)
    ss = jnp.dot(ones, t * t, preferred_element_type=jnp.float32)   # (1, C)
    mean = s * inv_m
    var = jnp.maximum(ss * inv_m - mean * mean, 0.0)
    scale = gamma * jax.lax.rsqrt(var + EPS)
    shift = beta - mean * scale
    y = t * scale + shift
    return jnp.maximum(y, 0.0) if relu else y


def bottleneck_kernel(x_ref, yr_ref, xc_ref,
                      w1_ref, g1_ref, b1_ref,
                      w2_ref, g2_ref, b2_ref,
                      w3_ref, g3_ref, b3_ref,
                      out_ref, *, H, W):
    M, _ = x_ref.shape

    x = x_ref[...]                                    # (M, Cin) f32
    yr = yr_ref[...]                                  # (M, 1) int32: pixel row
    xc = xc_ref[...]                                  # (M, 1) int32: pixel col

    # ---- conv1 (1x1) + BN1 + ReLU  (bf16 MXU operands, f32 accumulation) ----
    t1 = jnp.dot(x.astype(jnp.bfloat16), w1_ref[...],
                 preferred_element_type=jnp.float32)  # (M, Cw_p)
    t1 = _bn_train_fused(t1, g1_ref[...], b1_ref[...], relu=True)

    # ---- conv2 (3x3, pad=1, stride=1): roll-based im2col, one deep-K matmul --
    # Row m of the flat activation is pixel (n, y, x).  Tap (dy, dx) is a
    # sublane-axis rotate by dy*W + dx (XLU slot) plus a border mask; out-of-
    # image rows (including cross-batch wraps from the rotate) are zeroed.
    taps = []
    for dy in (-1, 0, 1):
        for dx in (-1, 0, 1):
            off = dy * W + dx
            shifted = t1 if off == 0 else pltpu.roll(t1, shift=(-off) % M, axis=0)
            valid = ((yr + dy >= 0) & (yr + dy < H) &
                     (xc + dx >= 0) & (xc + dx < W))
            taps.append(jnp.where(valid, shifted, 0.0).astype(jnp.bfloat16))
    patches = jnp.concatenate(taps, axis=1)           # (M, 9*Cw_p) bf16
    t2 = jnp.dot(patches, w2_ref[...],
                 preferred_element_type=jnp.float32)  # (M, Cw_p), K = 9*Cw_p
    t2 = _bn_train_fused(t2, g2_ref[...], b2_ref[...], relu=True)

    # ---- conv3 (1x1) + BN3 + identity residual + ReLU ------------------------
    t3 = jnp.dot(t2.astype(jnp.bfloat16), w3_ref[...],
                 preferred_element_type=jnp.float32)  # (M, Cout)
    t3 = _bn_train_fused(t3, g3_ref[...], b3_ref[...], relu=False)
    out_ref[...] = jnp.maximum(t3 + x, 0.0)


def bottleneck_forward_nhwc(x, params):
    """x: (N, H, W, Cin) float32 NHWC. Returns (N, H, W, Cout) float32 NHWC.

    params (math layout):
      w1: (Cin, Cw)   1x1 conv as matmul weight
      w2: (9, Cw, Cw) 3x3 conv as per-tap matmul weights (tap index = kh*3+kw)
      w3: (Cw, Cout)  1x1 conv as matmul weight
      g*/b*: (C,)     BatchNorm affine parameters
    """
    (w1, g1, b1, w2, g2, b2, w3, g3, b3) = params
    N, H, W, Cin = x.shape
    Cw = w1.shape[1]
    Cout = w3.shape[1]
    assert Cin == Cout, "identity residual (downsample=None) requires Cin == Cout"
    M = N * H * W

    # Only the bottleneck width (the MXU lane dim shared by all three convs)
    # gets lane-padded; activations and Cin/Cout stay at natural sizes.
    Cw_p = _round_up(Cw, LANE)

    w1_p = (jnp.zeros((Cin, Cw_p), jnp.float32)
            .at[:, :Cw].set(w1).astype(jnp.bfloat16))
    w2_p = jnp.zeros((9 * Cw_p, Cw_p), jnp.float32)
    for t in range(9):
        w2_p = w2_p.at[t * Cw_p:t * Cw_p + Cw, :Cw].set(w2[t])
    w2_p = w2_p.astype(jnp.bfloat16)                    # packed im2col weight
    w3_p = (jnp.zeros((Cw_p, Cout), jnp.float32)
            .at[:Cw, :].set(w3).astype(jnp.bfloat16))

    def pad_vec(v, c):
        return jnp.zeros((1, c), jnp.float32).at[0, :v.shape[0]].set(v)

    g1_p, b1_p = pad_vec(g1, Cw_p), pad_vec(b1, Cw_p)
    g2_p, b2_p = pad_vec(g2, Cw_p), pad_vec(b2, Cw_p)
    g3_p, b3_p = pad_vec(g3, Cout), pad_vec(b3, Cout)

    # Flat NHWC activations (bitcast reshapes, no data movement in HBM).
    x2d = x.reshape(M, Cin)
    # Per-row pixel coordinates for the conv2 border masks (tiny constants).
    pos = jnp.arange(M, dtype=jnp.int32)
    xc_idx = (pos % W).reshape(M, 1)
    yr_idx = ((pos // W) % H).reshape(M, 1)

    flops = 2 * M * (Cin * Cw_p + 9 * Cw_p * Cw_p + Cw_p * Cout) \
        + 4 * M * (2 * Cw_p + Cout)                       # BN stat matmuls
    bytes_accessed = (M * (Cin + Cout) * 4                # x + out (f32)
                      + (w1_p.size + w2_p.size + w3_p.size) * 2  # bf16 weights
                      + (4 * Cw_p + 2 * Cout) * 4         # BN params
                      + 2 * M * 4)                        # coord vectors
    cost = pl.CostEstimate(flops=int(flops),
                           transcendentals=int(2 * Cw_p + Cout),
                           bytes_accessed=int(bytes_accessed))

    vmem = pl.BlockSpec(memory_space=pltpu.MemorySpace.VMEM)
    kernel = functools.partial(bottleneck_kernel, H=H, W=W)
    out2d = pl.pallas_call(
        kernel,
        out_shape=jax.ShapeDtypeStruct((M, Cout), jnp.float32),
        in_specs=[vmem] * 12,
        out_specs=vmem,
        compiler_params=pltpu.CompilerParams(vmem_limit_bytes=32 * 1024 * 1024),
        cost_estimate=cost,
    )(x2d, yr_idx, xc_idx, w1_p, g1_p, b1_p, w2_p, g2_p, b2_p, w3_p, g3_p, b3_p)
    return out2d.reshape(N, H, W, Cout)


# ------------------------- pure-JAX reference (NHWC) ------------------------
def ref_forward_nhwc(x, w1_oihw, g1, b1, w2_oihw, g2, b2, w3_oihw, g3, b3):
    dn = ('NHWC', 'OIHW', 'NHWC')

    def conv(x, w, pad):
        return jax.lax.conv_general_dilated(
            x, w, (1, 1), pad, dimension_numbers=dn,
            precision=jax.lax.Precision.HIGHEST)

    def bn(t, g, b):
        mean = jnp.mean(t, axis=(0, 1, 2), keepdims=True)
        var = jnp.mean((t - mean) ** 2, axis=(0, 1, 2), keepdims=True)
        return ((t - mean) * jax.lax.rsqrt(var + EPS) * g.reshape(1, 1, 1, -1)
                + b.reshape(1, 1, 1, -1))

    out = jax.nn.relu(bn(conv(x, w1_oihw, 'VALID'), g1, b1))
    out = jax.nn.relu(bn(conv(out, w2_oihw, [(1, 1), (1, 1)]), g2, b2))
    out = bn(conv(out, w3_oihw, 'VALID'), g3, b3)
    return jax.nn.relu(out + x)


if __name__ == "__main__":
    # Bottleneck(in_planes=16, planes=4, stride=1): width = 4,
    # out_channels = planes*expansion = 16 = in_planes, so the identity
    # (downsample=None) residual add is valid.
    N, in_planes, H, W = 2, 16, 8, 8
    planes = 4
    width = planes                      # base_width=64, groups=1
    cout = planes * 4                   # expansion = 4

    keys = jax.random.split(jax.random.PRNGKey(0), 10)
    # PyTorch OIHW conv weights (bias=False), deterministic init
    w1_oihw = 0.1 * jax.random.normal(keys[0], (width, in_planes, 1, 1), jnp.float32)
    w2_oihw = 0.1 * jax.random.normal(keys[1], (width, width, 3, 3), jnp.float32)
    w3_oihw = 0.1 * jax.random.normal(keys[2], (cout, width, 1, 1), jnp.float32)
    # BatchNorm affine params (gamma/beta)
    g1 = 1.0 + 0.1 * jax.random.normal(keys[3], (width,), jnp.float32)
    b1 = 0.1 * jax.random.normal(keys[4], (width,), jnp.float32)
    g2 = 1.0 + 0.1 * jax.random.normal(keys[5], (width,), jnp.float32)
    b2 = 0.1 * jax.random.normal(keys[6], (width,), jnp.float32)
    g3 = 1.0 + 0.1 * jax.random.normal(keys[7], (cout,), jnp.float32)
    b3 = 0.1 * jax.random.normal(keys[8], (cout,), jnp.float32)

    # Activations natively in NHWC (no NCHW<->NHWC transposes on the hot path).
    x_nhwc = jax.random.normal(keys[9], (N, H, W, in_planes), jnp.float32)

    # Kernel "math" layout: 1x1 convs as (Cin, Cout) matmul weights; the 3x3
    # conv as (9, Cin, Cout) per-tap matmul weights (tap index = kh*3+kw).
    w1_k = jnp.transpose(w1_oihw[:, :, 0, 0], (1, 0))                  # (Cin, Cw)
    w2_k = jnp.transpose(w2_oihw, (2, 3, 1, 0)).reshape(9, width, width)
    w3_k = jnp.transpose(w3_oihw[:, :, 0, 0], (1, 0))                  # (Cw, Cout)
    params = (w1_k, g1, b1, w2_k, g2, b2, w3_k, g3, b3)

    out = bottleneck_forward_nhwc(x_nhwc, params)
    out = jax.block_until_ready(out)

    ref = ref_forward_nhwc(x_nhwc, w1_oihw, g1, b1, w2_oihw, g2, b2,
                           w3_oihw, g3, b3)
    ref = jax.block_until_ready(ref)

    assert out.shape == (N, H, W, cout), out.shape
    max_err = float(jnp.max(jnp.abs(out - ref)))
    # bf16 MXU operands feeding training-mode BN amplify rounding to a few
    # 1e-2 absolute vs the f32 HIGHEST-precision reference.
    assert max_err < 8e-2, f"mismatch vs reference: max_err={max_err}"
    print("KERNEL_OK")
</pallas_src>

<mosaic_0001>
module attributes {stable_mosaic.version = 11 : i64} {
  func.func @bottleneck_kernel(%arg0: memref<128x16xf32, #tpu.memory_space<vmem>>, %arg1: memref<128x1xi32, #tpu.memory_space<vmem>>, %arg2: memref<128x1xi32, #tpu.memory_space<vmem>>, %arg3: memref<16x128xbf16, #tpu.memory_space<vmem>>, %arg4: memref<1x128xf32, #tpu.memory_space<vmem>>, %arg5: memref<1x128xf32, #tpu.memory_space<vmem>>, %arg6: memref<1152x128xbf16, #tpu.memory_space<vmem>>, %arg7: memref<1x128xf32, #tpu.memory_space<vmem>>, %arg8: memref<1x128xf32, #tpu.memory_space<vmem>>, %arg9: memref<128x16xbf16, #tpu.memory_space<vmem>>, %arg10: memref<1x16xf32, #tpu.memory_space<vmem>>, %arg11: memref<1x16xf32, #tpu.memory_space<vmem>>, %arg12: memref<128x16xf32, #tpu.memory_space<vmem>>) attributes {dimension_semantics = [], scalar_prefetch = 0 : i64, scratch_operands = 0 : i64, tpu.core_type = #tpu.core_type<tc>} {
    %c0 = arith.constant 0 : index
    %c0_0 = arith.constant 0 : index
    %0 = vector.load %arg0[%c0, %c0_0] : memref<128x16xf32, #tpu.memory_space<vmem>>, vector<128x16xf32>
    %c0_1 = arith.constant 0 : index
    %c0_2 = arith.constant 0 : index
    %1 = vector.load %arg1[%c0_1, %c0_2] : memref<128x1xi32, #tpu.memory_space<vmem>>, vector<128x1xi32>
    %c0_3 = arith.constant 0 : index
    %c0_4 = arith.constant 0 : index
    %2 = vector.load %arg2[%c0_3, %c0_4] : memref<128x1xi32, #tpu.memory_space<vmem>>, vector<128x1xi32>
    %3 = arith.truncf %0 : vector<128x16xf32> to vector<128x16xbf16>
    %c0_5 = arith.constant 0 : index
    %c0_6 = arith.constant 0 : index
    %4 = vector.load %arg3[%c0_5, %c0_6] : memref<16x128xbf16, #tpu.memory_space<vmem>>, vector<16x128xbf16>
    %cst = arith.constant dense<0.000000e+00> : vector<128x128xf32>
    %5 = tpu.matmul %3, %4, %cst {dimension_numbers = #tpu.dot_dimension_numbers<[1], [0], [0], [1], [0, 0, 1, 1], [], []>} : vector<128x16xbf16>, vector<16x128xbf16>, vector<128x128xf32> -> vector<128x128xf32>
    %c0_7 = arith.constant 0 : index
    %c0_8 = arith.constant 0 : index
    %6 = vector.load %arg4[%c0_7, %c0_8] : memref<1x128xf32, #tpu.memory_space<vmem>>, vector<1x128xf32>
    %c0_9 = arith.constant 0 : index
    %c0_10 = arith.constant 0 : index
    %7 = vector.load %arg5[%c0_9, %c0_10] : memref<1x128xf32, #tpu.memory_space<vmem>>, vector<1x128xf32>
    %cst_11 = arith.constant 1.000000e+00 : f32
    %8 = vector.broadcast %cst_11 : f32 to vector<1x128xf32>
    %cst_12 = arith.constant dense<0.000000e+00> : vector<1x128xf32>
    %9 = tpu.matmul %8, %5, %cst_12 {dimension_numbers = #tpu.dot_dimension_numbers<[1], [0], [0], [1], [0, 0, 1, 1], [], []>} : vector<1x128xf32>, vector<128x128xf32>, vector<1x128xf32> -> vector<1x128xf32>
    %10 = arith.mulf %5, %5 : vector<128x128xf32>
    %cst_13 = arith.constant dense<0.000000e+00> : vector<1x128xf32>
    %11 = tpu.matmul %8, %10, %cst_13 {dimension_numbers = #tpu.dot_dimension_numbers<[1], [0], [0], [1], [0, 0, 1, 1], [], []>} : vector<1x128xf32>, vector<128x128xf32>, vector<1x128xf32> -> vector<1x128xf32>
    %cst_14 = arith.constant 7.812500e-03 : f32
    %12 = vector.broadcast %cst_14 : f32 to vector<1x128xf32>
    %13 = arith.mulf %9, %12 : vector<1x128xf32>
    %cst_15 = arith.constant 7.812500e-03 : f32
    %14 = vector.broadcast %cst_15 : f32 to vector<1x128xf32>
    %15 = arith.mulf %11, %14 : vector<1x128xf32>
    %16 = arith.mulf %13, %13 : vector<1x128xf32>
    %17 = arith.subf %15, %16 : vector<1x128xf32>
    %cst_16 = arith.constant 0.000000e+00 : f32
    %18 = vector.broadcast %cst_16 : f32 to vector<1x128xf32>
    %19 = arith.maximumf %17, %18 : vector<1x128xf32>
    %cst_17 = arith.constant 9.99999974E-6 : f32
    %20 = vector.broadcast %cst_17 : f32 to vector<1x128xf32>
    %21 = arith.addf %19, %20 : vector<1x128xf32>
    %22 = math.rsqrt %21 : vector<1x128xf32>
    %23 = arith.mulf %6, %22 : vector<1x128xf32>
    %24 = arith.mulf %13, %23 : vector<1x128xf32>
    %25 = arith.subf %7, %24 : vector<1x128xf32>
    %26 = vector.broadcast %23 : vector<1x128xf32> to vector<128x128xf32>
    %27 = arith.mulf %5, %26 : vector<128x128xf32>
    %28 = vector.broadcast %25 : vector<1x128xf32> to vector<128x128xf32>
    %29 = arith.addf %27, %28 : vector<128x128xf32>
    %cst_18 = arith.constant 0.000000e+00 : f32
    %30 = vector.broadcast %cst_18 : f32 to vector<128x128xf32>
    %31 = arith.maximumf %29, %30 : vector<128x128xf32>
    %c9_i32 = arith.constant 9 : i32
    %32 = tpu.dynamic_rotate %31 by %c9_i32 dim 0 : vector<128x128xf32>, i32 -> vector<128x128xf32>
    %c-1_i32 = arith.constant -1 : i32
    %33 = vector.broadcast %c-1_i32 : i32 to vector<128x1xi32>
    %34 = arith.addi %1, %33 : vector<128x1xi32>
    %c0_i32 = arith.constant 0 : i32
    %35 = vector.broadcast %c0_i32 : i32 to vector<128x1xi32>
    %36 = arith.cmpi sge, %34, %35 : vector<128x1xi32>
    %c-1_i32_19 = arith.constant -1 : i32
    %37 = vector.broadcast %c-1_i32_19 : i32 to vector<128x1xi32>
    %38 = arith.addi %1, %37 : vector<128x1xi32>
    %c8_i32 = arith.constant 8 : i32
    %39 = vector.broadcast %c8_i32 : i32 to vector<128x1xi32>
    %40 = arith.cmpi slt, %38, %39 : vector<128x1xi32>
    %41 = arith.andi %36, %40 : vector<128x1xi1>
    %c-1_i32_20 = arith.constant -1 : i32
    %42 = vector.broadcast %c-1_i32_20 : i32 to vector<128x1xi32>
    %43 = arith.addi %2, %42 : vector<128x1xi32>
    %c0_i32_21 = arith.constant 0 : i32
    %44 = vector.broadcast %c0_i32_21 : i32 to vector<128x1xi32>
    %45 = arith.cmpi sge, %43, %44 : vector<128x1xi32>
    %46 = arith.andi %41, %45 : vector<128x1xi1>
    %c-1_i32_22 = arith.constant -1 : i32
    %47 = vector.broadcast %c-1_i32_22 : i32 to vector<128x1xi32>
    %48 = arith.addi %2, %47 : vector<128x1xi32>
    %c8_i32_23 = arith.constant 8 : i32
    %49 = vector.broadcast %c8_i32_23 : i32 to vector<128x1xi32>
    %50 = arith.cmpi slt, %48, %49 : vector<128x1xi32>
    %51 = arith.andi %46, %50 : vector<128x1xi1>
    %cst_24 = arith.constant 0.000000e+00 : f32
    %52 = vector.shape_cast %51 : vector<128x1xi1> to vector<128x1xi1>
    %53 = vector.broadcast %52 : vector<128x1xi1> to vector<128x128xi1>
    %54 = vector.broadcast %cst_24 : f32 to vector<128x128xf32>
    %55 = arith.select %53, %32, %54 : vector<128x128xi1>, vector<128x128xf32>
    %56 = arith.truncf %55 : vector<128x128xf32> to vector<128x128xbf16>
    %c8_i32_25 = arith.constant 8 : i32
    %57 = tpu.dynamic_rotate %31 by %c8_i32_25 dim 0 : vector<128x128xf32>, i32 -> vector<128x128xf32>
    %c-1_i32_26 = arith.constant -1 : i32
    %58 = vector.broadcast %c-1_i32_26 : i32 to vector<128x1xi32>
    %59 = arith.addi %1, %58 : vector<128x1xi32>
    %c0_i32_27 = arith.constant 0 : i32
    %60 = vector.broadcast %c0_i32_27 : i32 to vector<128x1xi32>
    %61 = arith.cmpi sge, %59, %60 : vector<128x1xi32>
    %c-1_i32_28 = arith.constant -1 : i32
    %62 = vector.broadcast %c-1_i32_28 : i32 to vector<128x1xi32>
    %63 = arith.addi %1, %62 : vector<128x1xi32>
    %c8_i32_29 = arith.constant 8 : i32
    %64 = vector.broadcast %c8_i32_29 : i32 to vector<128x1xi32>
    %65 = arith.cmpi slt, %63, %64 : vector<128x1xi32>
    %66 = arith.andi %61, %65 : vector<128x1xi1>
    %c0_i32_30 = arith.constant 0 : i32
    %67 = vector.broadcast %c0_i32_30 : i32 to vector<128x1xi32>
    %68 = arith.addi %2, %67 : vector<128x1xi32>
    %c0_i32_31 = arith.constant 0 : i32
    %69 = vector.broadcast %c0_i32_31 : i32 to vector<128x1xi32>
    %70 = arith.cmpi sge, %68, %69 : vector<128x1xi32>
    %71 = arith.andi %66, %70 : vector<128x1xi1>
    %c0_i32_32 = arith.constant 0 : i32
    %72 = vector.broadcast %c0_i32_32 : i32 to vector<128x1xi32>
    %73 = arith.addi %2, %72 : vector<128x1xi32>
    %c8_i32_33 = arith.constant 8 : i32
    %74 = vector.broadcast %c8_i32_33 : i32 to vector<128x1xi32>
    %75 = arith.cmpi slt, %73, %74 : vector<128x1xi32>
    %76 = arith.andi %71, %75 : vector<128x1xi1>
    %cst_34 = arith.constant 0.000000e+00 : f32
    %77 = vector.shape_cast %76 : vector<128x1xi1> to vector<128x1xi1>
    %78 = vector.broadcast %77 : vector<128x1xi1> to vector<128x128xi1>
    %79 = vector.broadcast %cst_34 : f32 to vector<128x128xf32>
    %80 = arith.select %78, %57, %79 : vector<128x128xi1>, vector<128x128xf32>
    %81 = arith.truncf %80 : vector<128x128xf32> to vector<128x128xbf16>
    %c7_i32 = arith.constant 7 : i32
    %82 = tpu.dynamic_rotate %31 by %c7_i32 dim 0 : vector<128x128xf32>, i32 -> vector<128x128xf32>
    %c-1_i32_35 = arith.constant -1 : i32
    %83 = vector.broadcast %c-1_i32_35 : i32 to vector<128x1xi32>
    %84 = arith.addi %1, %83 : vector<128x1xi32>
    %c0_i32_36 = arith.constant 0 : i32
    %85 = vector.broadcast %c0_i32_36 : i32 to vector<128x1xi32>
    %86 = arith.cmpi sge, %84, %85 : vector<128x1xi32>
    %c-1_i32_37 = arith.constant -1 : i32
    %87 = vector.broadcast %c-1_i32_37 : i32 to vector<128x1xi32>
    %88 = arith.addi %1, %87 : vector<128x1xi32>
    %c8_i32_38 = arith.constant 8 : i32
    %89 = vector.broadcast %c8_i32_38 : i32 to vector<128x1xi32>
    %90 = arith.cmpi slt, %88, %89 : vector<128x1xi32>
    %91 = arith.andi %86, %90 : vector<128x1xi1>
    %c1_i32 = arith.constant 1 : i32
    %92 = vector.broadcast %c1_i32 : i32 to vector<128x1xi32>
    %93 = arith.addi %2, %92 : vector<128x1xi32>
    %c0_i32_39 = arith.constant 0 : i32
    %94 = vector.broadcast %c0_i32_39 : i32 to vector<128x1xi32>
    %95 = arith.cmpi sge, %93, %94 : vector<128x1xi32>
    %96 = arith.andi %91, %95 : vector<128x1xi1>
    %c1_i32_40 = arith.constant 1 : i32
    %97 = vector.broadcast %c1_i32_40 : i32 to vector<128x1xi32>
    %98 = arith.addi %2, %97 : vector<128x1xi32>
    %c8_i32_41 = arith.constant 8 : i32
    %99 = vector.broadcast %c8_i32_41 : i32 to vector<128x1xi32>
    %100 = arith.cmpi slt, %98, %99 : vector<128x1xi32>
    %101 = arith.andi %96, %100 : vector<128x1xi1>
    %cst_42 = arith.constant 0.000000e+00 : f32
    %102 = vector.shape_cast %101 : vector<128x1xi1> to vector<128x1xi1>
    %103 = vector.broadcast %102 : vector<128x1xi1> to vector<128x128xi1>
    %104 = vector.broadcast %cst_42 : f32 to vector<128x128xf32>
    %105 = arith.select %103, %82, %104 : vector<128x128xi1>, vector<128x128xf32>
    %106 = arith.truncf %105 : vector<128x128xf32> to vector<128x128xbf16>
    %c1_i32_43 = arith.constant 1 : i32
    %107 = tpu.dynamic_rotate %31 by %c1_i32_43 dim 0 : vector<128x128xf32>, i32 -> vector<128x128xf32>
    %c0_i32_44 = arith.constant 0 : i32
    %108 = vector.broadcast %c0_i32_44 : i32 to vector<128x1xi32>
    %109 = arith.addi %1, %108 : vector<128x1xi32>
    %c0_i32_45 = arith.constant 0 : i32
    %110 = vector.broadcast %c0_i32_45 : i32 to vector<128x1xi32>
    %111 = arith.cmpi sge, %109, %110 : vector<128x1xi32>
    %c0_i32_46 = arith.constant 0 : i32
    %112 = vector.broadcast %c0_i32_46 : i32 to vector<128x1xi32>
    %113 = arith.addi %1, %112 : vector<128x1xi32>
    %c8_i32_47 = arith.constant 8 : i32
    %114 = vector.broadcast %c8_i32_47 : i32 to vector<128x1xi32>
    %115 = arith.cmpi slt, %113, %114 : vector<128x1xi32>
    %116 = arith.andi %111, %115 : vector<128x1xi1>
    %c-1_i32_48 = arith.constant -1 : i32
    %117 = vector.broadcast %c-1_i32_48 : i32 to vector<128x1xi32>
    %118 = arith.addi %2, %117 : vector<128x1xi32>
    %c0_i32_49 = arith.constant 0 : i32
    %119 = vector.broadcast %c0_i32_49 : i32 to vector<128x1xi32>
    %120 = arith.cmpi sge, %118, %119 : vector<128x1xi32>
    %121 = arith.andi %116, %120 : vector<128x1xi1>
    %c-1_i32_50 = arith.constant -1 : i32
    %122 = vector.broadcast %c-1_i32_50 : i32 to vector<128x1xi32>
    %123 = arith.addi %2, %122 : vector<128x1xi32>
    %c8_i32_51 = arith.constant 8 : i32
    %124 = vector.broadcast %c8_i32_51 : i32 to vector<128x1xi32>
    %125 = arith.cmpi slt, %123, %124 : vector<128x1xi32>
    %126 = arith.andi %121, %125 : vector<128x1xi1>
    %cst_52 = arith.constant 0.000000e+00 : f32
    %127 = vector.shape_cast %126 : vector<128x1xi1> to vector<128x1xi1>
    %128 = vector.broadcast %127 : vector<128x1xi1> to vector<128x128xi1>
    %129 = vector.broadcast %cst_52 : f32 to vector<128x128xf32>
    %130 = arith.select %128, %107, %129 : vector<128x128xi1>, vector<128x128xf32>
    %131 = arith.truncf %130 : vector<128x128xf32> to vector<128x128xbf16>
    %c0_i32_53 = arith.constant 0 : i32
    %132 = vector.broadcast %c0_i32_53 : i32 to vector<128x1xi32>
    %133 = arith.addi %1, %132 : vector<128x1xi32>
    %c0_i32_54 = arith.constant 0 : i32
    %134 = vector.broadcast %c0_i32_54 : i32 to vector<128x1xi32>
    %135 = arith.cmpi sge, %133, %134 : vector<128x1xi32>
    %c0_i32_55 = arith.constant 0 : i32
    %136 = vector.broadcast %c0_i32_55 : i32 to vector<128x1xi32>
    %137 = arith.addi %1, %136 : vector<128x1xi32>
    %c8_i32_56 = arith.constant 8 : i32
    %138 = vector.broadcast %c8_i32_56 : i32 to vector<128x1xi32>
    %139 = arith.cmpi slt, %137, %138 : vector<128x1xi32>
    %140 = arith.andi %135, %139 : vector<128x1xi1>
    %c0_i32_57 = arith.constant 0 : i32
    %141 = vector.broadcast %c0_i32_57 : i32 to vector<128x1xi32>
    %142 = arith.addi %2, %141 : vector<128x1xi32>
    %c0_i32_58 = arith.constant 0 : i32
    %143 = vector.broadcast %c0_i32_58 : i32 to vector<128x1xi32>
    %144 = arith.cmpi sge, %142, %143 : vector<128x1xi32>
    %145 = arith.andi %140, %144 : vector<128x1xi1>
    %c0_i32_59 = arith.constant 0 : i32
    %146 = vector.broadcast %c0_i32_59 : i32 to vector<128x1xi32>
    %147 = arith.addi %2, %146 : vector<128x1xi32>
    %c8_i32_60 = arith.constant 8 : i32
    %148 = vector.broadcast %c8_i32_60 : i32 to vector<128x1xi32>
    %149 = arith.cmpi slt, %147, %148 : vector<128x1xi32>
    %150 = arith.andi %145, %149 : vector<128x1xi1>
    %cst_61 = arith.constant 0.000000e+00 : f32
    %151 = vector.shape_cast %150 : vector<128x1xi1> to vector<128x1xi1>
    %152 = vector.broadcast %151 : vector<128x1xi1> to vector<128x128xi1>
    %153 = vector.broadcast %cst_61 : f32 to vector<128x128xf32>
    %154 = arith.select %152, %31, %153 : vector<128x128xi1>, vector<128x128xf32>
    %155 = arith.truncf %154 : vector<128x128xf32> to vector<128x128xbf16>
    %c127_i32 = arith.constant 127 : i32
    %156 = tpu.dynamic_rotate %31 by %c127_i32 dim 0 : vector<128x128xf32>, i32 -> vector<128x128xf32>
    %c0_i32_62 = arith.constant 0 : i32
    %157 = vector.broadcast %c0_i32_62 : i32 to vector<128x1xi32>
    %158 = arith.addi %1, %157 : vector<128x1xi32>
    %c0_i32_63 = arith.constant 0 : i32
    %159 = vector.broadcast %c0_i32_63 : i32 to vector<128x1xi32>
    %160 = arith.cmpi sge, %158, %159 : vector<128x1xi32>
    %c0_i32_64 = arith.constant 0 : i32
    %161 = vector.broadcast %c0_i32_64 : i32 to vector<128x1xi32>
    %162 = arith.addi %1, %161 : vector<128x1xi32>
    %c8_i32_65 = arith.constant 8 : i32
    %163 = vector.broadcast %c8_i32_65 : i32 to vector<128x1xi32>
    %164 = arith.cmpi slt, %162, %163 : vector<128x1xi32>
    %165 = arith.andi %160, %164 : vector<128x1xi1>
    %c1_i32_66 = arith.constant 1 : i32
    %166 = vector.broadcast %c1_i32_66 : i32 to vector<128x1xi32>
    %167 = arith.addi %2, %166 : vector<128x1xi32>
    %c0_i32_67 = arith.constant 0 : i32
    %168 = vector.broadcast %c0_i32_67 : i32 to vector<128x1xi32>
    %169 = arith.cmpi sge, %167, %168 : vector<128x1xi32>
    %170 = arith.andi %165, %169 : vector<128x1xi1>
    %c1_i32_68 = arith.constant 1 : i32
    %171 = vector.broadcast %c1_i32_68 : i32 to vector<128x1xi32>
    %172 = arith.addi %2, %171 : vector<128x1xi32>
    %c8_i32_69 = arith.constant 8 : i32
    %173 = vector.broadcast %c8_i32_69 : i32 to vector<128x1xi32>
    %174 = arith.cmpi slt, %172, %173 : vector<128x1xi32>
    %175 = arith.andi %170, %174 : vector<128x1xi1>
    %cst_70 = arith.constant 0.000000e+00 : f32
    %176 = vector.shape_cast %175 : vector<128x1xi1> to vector<128x1xi1>
    %177 = vector.broadcast %176 : vector<128x1xi1> to vector<128x128xi1>
    %178 = vector.broadcast %cst_70 : f32 to vector<128x128xf32>
    %179 = arith.select %177, %156, %178 : vector<128x128xi1>, vector<128x128xf32>
    %180 = arith.truncf %179 : vector<128x128xf32> to vector<128x128xbf16>
    %c121_i32 = arith.constant 121 : i32
    %181 = tpu.dynamic_rotate %31 by %c121_i32 dim 0 : vector<128x128xf32>, i32 -> vector<128x128xf32>
    %c1_i32_71 = arith.constant 1 : i32
    %182 = vector.broadcast %c1_i32_71 : i32 to vector<128x1xi32>
    %183 = arith.addi %1, %182 : vector<128x1xi32>
    %c0_i32_72 = arith.constant 0 : i32
    %184 = vector.broadcast %c0_i32_72 : i32 to vector<128x1xi32>
    %185 = arith.cmpi sge, %183, %184 : vector<128x1xi32>
    %c1_i32_73 = arith.constant 1 : i32
    %186 = vector.broadcast %c1_i32_73 : i32 to vector<128x1xi32>
    %187 = arith.addi %1, %186 : vector<128x1xi32>
    %c8_i32_74 = arith.constant 8 : i32
    %188 = vector.broadcast %c8_i32_74 : i32 to vector<128x1xi32>
    %189 = arith.cmpi slt, %187, %188 : vector<128x1xi32>
    %190 = arith.andi %185, %189 : vector<128x1xi1>
    %c-1_i32_75 = arith.constant -1 : i32
    %191 = vector.broadcast %c-1_i32_75 : i32 to vector<128x1xi32>
    %192 = arith.addi %2, %191 : vector<128x1xi32>
    %c0_i32_76 = arith.constant 0 : i32
    %193 = vector.broadcast %c0_i32_76 : i32 to vector<128x1xi32>
    %194 = arith.cmpi sge, %192, %193 : vector<128x1xi32>
    %195 = arith.andi %190, %194 : vector<128x1xi1>
    %c-1_i32_77 = arith.constant -1 : i32
    %196 = vector.broadcast %c-1_i32_77 : i32 to vector<128x1xi32>
    %197 = arith.addi %2, %196 : vector<128x1xi32>
    %c8_i32_78 = arith.constant 8 : i32
    %198 = vector.broadcast %c8_i32_78 : i32 to vector<128x1xi32>
    %199 = arith.cmpi slt, %197, %198 : vector<128x1xi32>
    %200 = arith.andi %195, %199 : vector<128x1xi1>
    %cst_79 = arith.constant 0.000000e+00 : f32
    %201 = vector.shape_cast %200 : vector<128x1xi1> to vector<128x1xi1>
    %202 = vector.broadcast %201 : vector<128x1xi1> to vector<128x128xi1>
    %203 = vector.broadcast %cst_79 : f32 to vector<128x128xf32>
    %204 = arith.select %202, %181, %203 : vector<128x128xi1>, vector<128x128xf32>
    %205 = arith.truncf %204 : vector<128x128xf32> to vector<128x128xbf16>
    %c120_i32 = arith.constant 120 : i32
    %206 = tpu.dynamic_rotate %31 by %c120_i32 dim 0 : vector<128x128xf32>, i32 -> vector<128x128xf32>
    %c1_i32_80 = arith.constant 1 : i32
    %207 = vector.broadcast %c1_i32_80 : i32 to vector<128x1xi32>
    %208 = arith.addi %1, %207 : vector<128x1xi32>
    %c0_i32_81 = arith.constant 0 : i32
    %209 = vector.broadcast %c0_i32_81 : i32 to vector<128x1xi32>
    %210 = arith.cmpi sge, %208, %209 : vector<128x1xi32>
    %c1_i32_82 = arith.constant 1 : i32
    %211 = vector.broadcast %c1_i32_82 : i32 to vector<128x1xi32>
    %212 = arith.addi %1, %211 : vector<128x1xi32>
    %c8_i32_83 = arith.constant 8 : i32
    %213 = vector.broadcast %c8_i32_83 : i32 to vector<128x1xi32>
    %214 = arith.cmpi slt, %212, %213 : vector<128x1xi32>
    %215 = arith.andi %210, %214 : vector<128x1xi1>
    %c0_i32_84 = arith.constant 0 : i32
    %216 = vector.broadcast %c0_i32_84 : i32 to vector<128x1xi32>
    %217 = arith.addi %2, %216 : vector<128x1xi32>
    %c0_i32_85 = arith.constant 0 : i32
    %218 = vector.broadcast %c0_i32_85 : i32 to vector<128x1xi32>
    %219 = arith.cmpi sge, %217, %218 : vector<128x1xi32>
    %220 = arith.andi %215, %219 : vector<128x1xi1>
    %c0_i32_86 = arith.constant 0 : i32
    %221 = vector.broadcast %c0_i32_86 : i32 to vector<128x1xi32>
    %222 = arith.addi %2, %221 : vector<128x1xi32>
    %c8_i32_87 = arith.constant 8 : i32
    %223 = vector.broadcast %c8_i32_87 : i32 to vector<128x1xi32>
    %224 = arith.cmpi slt, %222, %223 : vector<128x1xi32>
    %225 = arith.andi %220, %224 : vector<128x1xi1>
    %cst_88 = arith.constant 0.000000e+00 : f32
    %226 = vector.shape_cast %225 : vector<128x1xi1> to vector<128x1xi1>
    %227 = vector.broadcast %226 : vector<128x1xi1> to vector<128x128xi1>
    %228 = vector.broadcast %cst_88 : f32 to vector<128x128xf32>
    %229 = arith.select %227, %206, %228 : vector<128x128xi1>, vector<128x128xf32>
    %230 = arith.truncf %229 : vector<128x128xf32> to vector<128x128xbf16>
    %c119_i32 = arith.constant 119 : i32
    %231 = tpu.dynamic_rotate %31 by %c119_i32 dim 0 : vector<128x128xf32>, i32 -> vector<128x128xf32>
    %c1_i32_89 = arith.constant 1 : i32
    %232 = vector.broadcast %c1_i32_89 : i32 to vector<128x1xi32>
    %233 = arith.addi %1, %232 : vector<128x1xi32>
    %c0_i32_90 = arith.constant 0 : i32
    %234 = vector.broadcast %c0_i32_90 : i32 to vector<128x1xi32>
    %235 = arith.cmpi sge, %233, %234 : vector<128x1xi32>
    %c1_i32_91 = arith.constant 1 : i32
    %236 = vector.broadcast %c1_i32_91 : i32 to vector<128x1xi32>
    %237 = arith.addi %1, %236 : vector<128x1xi32>
    %c8_i32_92 = arith.constant 8 : i32
    %238 = vector.broadcast %c8_i32_92 : i32 to vector<128x1xi32>
    %239 = arith.cmpi slt, %237, %238 : vector<128x1xi32>
    %240 = arith.andi %235, %239 : vector<128x1xi1>
    %c1_i32_93 = arith.constant 1 : i32
    %241 = vector.broadcast %c1_i32_93 : i32 to vector<128x1xi32>
    %242 = arith.addi %2, %241 : vector<128x1xi32>
    %c0_i32_94 = arith.constant 0 : i32
    %243 = vector.broadcast %c0_i32_94 : i32 to vector<128x1xi32>
    %244 = arith.cmpi sge, %242, %243 : vector<128x1xi32>
    %245 = arith.andi %240, %244 : vector<128x1xi1>
    %c1_i32_95 = arith.constant 1 : i32
    %246 = vector.broadcast %c1_i32_95 : i32 to vector<128x1xi32>
    %247 = arith.addi %2, %246 : vector<128x1xi32>
    %c8_i32_96 = arith.constant 8 : i32
    %248 = vector.broadcast %c8_i32_96 : i32 to vector<128x1xi32>
    %249 = arith.cmpi slt, %247, %248 : vector<128x1xi32>
    %250 = arith.andi %245, %249 : vector<128x1xi1>
    %cst_97 = arith.constant 0.000000e+00 : f32
    %251 = vector.shape_cast %250 : vector<128x1xi1> to vector<128x1xi1>
    %252 = vector.broadcast %251 : vector<128x1xi1> to vector<128x128xi1>
    %253 = vector.broadcast %cst_97 : f32 to vector<128x128xf32>
    %254 = arith.select %252, %231, %253 : vector<128x128xi1>, vector<128x128xf32>
    %255 = arith.truncf %254 : vector<128x128xf32> to vector<128x128xbf16>
    %256 = tpu.concatenate %56, %81, %106, %131, %155, %180, %205, %230, %255 in 1 : vector<128x128xbf16>, vector<128x128xbf16>, vector<128x128xbf16>, vector<128x128xbf16>, vector<128x128xbf16>, vector<128x128xbf16>, vector<128x128xbf16>, vector<128x128xbf16>, vector<128x128xbf16> -> vector<128x1152xbf16>
    %c0_98 = arith.constant 0 : index
    %c0_99 = arith.constant 0 : index
    %257 = vector.load %arg6[%c0_98, %c0_99] : memref<1152x128xbf16, #tpu.memory_space<vmem>>, vector<1152x128xbf16>
    %cst_100 = arith.constant dense<0.000000e+00> : vector<128x128xf32>
    %258 = tpu.matmul %256, %257, %cst_100 {dimension_numbers = #tpu.dot_dimension_numbers<[1], [0], [0], [1], [0, 0, 1, 1], [], []>} : vector<128x1152xbf16>, vector<1152x128xbf16>, vector<128x128xf32> -> vector<128x128xf32>
    %c0_101 = arith.constant 0 : index
    %c0_102 = arith.constant 0 : index
    %259 = vector.load %arg7[%c0_101, %c0_102] : memref<1x128xf32, #tpu.memory_space<vmem>>, vector<1x128xf32>
    %c0_103 = arith.constant 0 : index
    %c0_104 = arith.constant 0 : index
    %260 = vector.load %arg8[%c0_103, %c0_104] : memref<1x128xf32, #tpu.memory_space<vmem>>, vector<1x128xf32>
    %cst_105 = arith.constant 1.000000e+00 : f32
    %261 = vector.broadcast %cst_105 : f32 to vector<1x128xf32>
    %cst_106 = arith.constant dense<0.000000e+00> : vector<1x128xf32>
    %262 = tpu.matmul %261, %258, %cst_106 {dimension_numbers = #tpu.dot_dimension_numbers<[1], [0], [0], [1], [0, 0, 1, 1], [], []>} : vector<1x128xf32>, vector<128x128xf32>, vector<1x128xf32> -> vector<1x128xf32>
    %263 = arith.mulf %258, %258 : vector<128x128xf32>
    %cst_107 = arith.constant dense<0.000000e+00> : vector<1x128xf32>
    %264 = tpu.matmul %261, %263, %cst_107 {dimension_numbers = #tpu.dot_dimension_numbers<[1], [0], [0], [1], [0, 0, 1, 1], [], []>} : vector<1x128xf32>, vector<128x128xf32>, vector<1x128xf32> -> vector<1x128xf32>
    %cst_108 = arith.constant 7.812500e-03 : f32
    %265 = vector.broadcast %cst_108 : f32 to vector<1x128xf32>
    %266 = arith.mulf %262, %265 : vector<1x128xf32>
    %cst_109 = arith.constant 7.812500e-03 : f32
    %267 = vector.broadcast %cst_109 : f32 to vector<1x128xf32>
    %268 = arith.mulf %264, %267 : vector<1x128xf32>
    %269 = arith.mulf %266, %266 : vector<1x128xf32>
    %270 = arith.subf %268, %269 : vector<1x128xf32>
    %cst_110 = arith.constant 0.000000e+00 : f32
    %271 = vector.broadcast %cst_110 : f32 to vector<1x128xf32>
    %272 = arith.maximumf %270, %271 : vector<1x128xf32>
    %cst_111 = arith.constant 9.99999974E-6 : f32
    %273 = vector.broadcast %cst_111 : f32 to vector<1x128xf32>
    %274 = arith.addf %272, %273 : vector<1x128xf32>
    %275 = math.rsqrt %274 : vector<1x128xf32>
    %276 = arith.mulf %259, %275 : vector<1x128xf32>
    %277 = arith.mulf %266, %276 : vector<1x128xf32>
    %278 = arith.subf %260, %277 : vector<1x128xf32>
    %279 = vector.broadcast %276 : vector<1x128xf32> to vector<128x128xf32>
    %280 = arith.mulf %258, %279 : vector<128x128xf32>
    %281 = vector.broadcast %278 : vector<1x128xf32> to vector<128x128xf32>
    %282 = arith.addf %280, %281 : vector<128x128xf32>
    %cst_112 = arith.constant 0.000000e+00 : f32
    %283 = vector.broadcast %cst_112 : f32 to vector<128x128xf32>
    %284 = arith.maximumf %282, %283 : vector<128x128xf32>
    %285 = arith.truncf %284 : vector<128x128xf32> to vector<128x128xbf16>
    %c0_113 = arith.constant 0 : index
    %c0_114 = arith.constant 0 : index
    %286 = vector.load %arg9[%c0_113, %c0_114] : memref<128x16xbf16, #tpu.memory_space<vmem>>, vector<128x16xbf16>
    %cst_115 = arith.constant dense<0.000000e+00> : vector<128x16xf32>
    %287 = tpu.matmul %285, %286, %cst_115 {dimension_numbers = #tpu.dot_dimension_numbers<[1], [0], [0], [1], [0, 0, 1, 1], [], []>} : vector<128x128xbf16>, vector<128x16xbf16>, vector<128x16xf32> -> vector<128x16xf32>
    %c0_116 = arith.constant 0 : index
    %c0_117 = arith.constant 0 : index
    %288 = vector.load %arg10[%c0_116, %c0_117] : memref<1x16xf32, #tpu.memory_space<vmem>>, vector<1x16xf32>
    %c0_118 = arith.constant 0 : index
    %c0_119 = arith.constant 0 : index
    %289 = vector.load %arg11[%c0_118, %c0_119] : memref<1x16xf32, #tpu.memory_space<vmem>>, vector<1x16xf32>
    %cst_120 = arith.constant 1.000000e+00 : f32
    %290 = vector.broadcast %cst_120 : f32 to vector<1x128xf32>
    %cst_121 = arith.constant dense<0.000000e+00> : vector<1x16xf32>
    %291 = tpu.matmul %290, %287, %cst_121 {dimension_numbers = #tpu.dot_dimension_numbers<[1], [0], [0], [1], [0, 0, 1, 1], [], []>} : vector<1x128xf32>, vector<128x16xf32>, vector<1x16xf32> -> vector<1x16xf32>
    %292 = arith.mulf %287, %287 : vector<128x16xf32>
    %cst_122 = arith.constant dense<0.000000e+00> : vector<1x16xf32>
    %293 = tpu.matmul %290, %292, %cst_122 {dimension_numbers = #tpu.dot_dimension_numbers<[1], [0], [0], [1], [0, 0, 1, 1], [], []>} : vector<1x128xf32>, vector<128x16xf32>, vector<1x16xf32> -> vector<1x16xf32>
    %cst_123 = arith.constant 7.812500e-03 : f32
    %294 = vector.broadcast %cst_123 : f32 to vector<1x16xf32>
    %295 = arith.mulf %291, %294 : vector<1x16xf32>
    %cst_124 = arith.constant 7.812500e-03 : f32
    %296 = vector.broadcast %cst_124 : f32 to vector<1x16xf32>
    %297 = arith.mulf %293, %296 : vector<1x16xf32>
    %298 = arith.mulf %295, %295 : vector<1x16xf32>
    %299 = arith.subf %297, %298 : vector<1x16xf32>
    %cst_125 = arith.constant 0.000000e+00 : f32
    %300 = vector.broadcast %cst_125 : f32 to vector<1x16xf32>
    %301 = arith.maximumf %299, %300 : vector<1x16xf32>
    %cst_126 = arith.constant 9.99999974E-6 : f32
    %302 = vector.broadcast %cst_126 : f32 to vector<1x16xf32>
    %303 = arith.addf %301, %302 : vector<1x16xf32>
    %304 = math.rsqrt %303 : vector<1x16xf32>
    %305 = arith.mulf %288, %304 : vector<1x16xf32>
    %306 = arith.mulf %295, %305 : vector<1x16xf32>
    %307 = arith.subf %289, %306 : vector<1x16xf32>
    %308 = vector.broadcast %305 : vector<1x16xf32> to vector<128x16xf32>
    %309 = arith.mulf %287, %308 : vector<128x16xf32>
    %310 = vector.broadcast %307 : vector<1x16xf32> to vector<128x16xf32>
    %311 = arith.addf %309, %310 : vector<128x16xf32>
    %312 = arith.addf %311, %0 : vector<128x16xf32>
    %cst_127 = arith.constant 0.000000e+00 : f32
    %313 = vector.broadcast %cst_127 : f32 to vector<128x16xf32>
    %314 = arith.maximumf %312, %313 : vector<128x16xf32>
    %c0_128 = arith.constant 0 : index
    %c0_129 = arith.constant 0 : index
    %315 = vector.load %arg12[%c0_128, %c0_129] : memref<128x16xf32, #tpu.memory_space<vmem>>, vector<128x16xf32>
    tpu.vector_store %arg12[%c0_128, %c0_129], %314 {strides = array<i32>} : memref<128x16xf32, #tpu.memory_space<vmem>>, vector<128x16xf32>,
    return
  }
}

</mosaic_0001>

<llo_original>
// kernel: tpu_custom_call.1
$region0: #{tpu_custom_call.1}
  #allocation0 [shape = 'u32[]', space=smem, size = 0x4, offset = 0x4, fixed_abs, tag = 'smem constant byte address 0x4 - core index']
  #allocation1 [shape = 'u32[72,128]{1,0:T(1,128)}', space=vmem, size = 0x9000, scoped, tag = 'internal scratch']
  %s0 = inlined_call_operand.vmem [shape: f32[128,16], index: 0, kind: input, shape index: {}]
  %s1 = inlined_call_operand.vmem [shape: s32[128,1], index: 1, kind: input, shape index: {}]
  %s2 = inlined_call_operand.vmem [shape: s32[128,1], index: 2, kind: input, shape index: {}]
  %s3 = inlined_call_operand.vmem [shape: bf16[16,128], index: 3, kind: input, shape index: {}]
  %s4 = inlined_call_operand.vmem [shape: f32[1,128], index: 4, kind: input, shape index: {}]
  %s5 = inlined_call_operand.vmem [shape: f32[1,128], index: 5, kind: input, shape index: {}]
  %s6 = inlined_call_operand.hbm [shape: bf16[1152,128], index: 6, kind: input, shape index: {}]
  %s7 = inlined_call_operand.vmem [shape: f32[1,128], index: 7, kind: input, shape index: {}]
  %s8 = inlined_call_operand.vmem [shape: f32[1,128], index: 8, kind: input, shape index: {}]
  %s9 = inlined_call_operand.vmem [shape: bf16[128,16], index: 9, kind: input, shape index: {}]
  %s10 = inlined_call_operand.vmem [shape: f32[1,16], index: 10, kind: input, shape index: {}]
  %s11 = inlined_call_operand.vmem [shape: f32[1,16], index: 11, kind: input, shape index: {}]
  %s12 = inlined_call_operand.vmem [shape: f32[128,16], index: 12, kind: output, shape index: {}]
  %s13 = sld [smem:[#allocation0]]
  $region62: #{tpu_custom_call.1} parent=0
    _
  %s15 = ssub.s32 1, %s13
  %s16 = scalar_select 0, %s15, %s13
  $region1: #{tpu_custom_call.1} parent=0
    #allocation2 [shape = 'u8[294912]{0}', space=vmem, size = 0x48000, scoped, tag = 'input window, operand 6, single buffered']
    #allocation3 [shape = 's32[1]{0}', space=sflag, size = 0x4, scoped, tag = 'scoped memory for tpu_custom_call.1']
    %17 = vsyncpa [#allocation3], 0
    // Predicated region
    $region2: #{tpu_custom_call.1} parent=1 // pred_check
      _
    $region3: #{tpu_custom_call.1} parent=1 // pred_check_branch
      %19 = sbr.rel (0) target = $region5
    $region4: #{tpu_custom_call.1} parent=1 // pred_region
      _
    $region5: #{tpu_custom_call.1} parent=1 // pred_fallthru
      _
    // Predicated region
    $region6: #{tpu_custom_call.1} parent=1 // pred_check
      _
    $region7: #{tpu_custom_call.1} parent=1 // pred_check_branch
      %21 = sbr.rel (0) target = $region9
    $region8: #{tpu_custom_call.1} parent=1 // pred_region
      _
    $region9: #{tpu_custom_call.1} parent=1 // pred_fallthru
      _
    // Predicated region
    $region10: #{tpu_custom_call.1} parent=1 // pred_check
      _
    $region11: #{tpu_custom_call.1} parent=1 // pred_check_branch
      %23 = sbr.rel (0) target = $region13
    $region12: #{tpu_custom_call.1} parent=1 // pred_region
      _
    $region13: #{tpu_custom_call.1} parent=1 // pred_fallthru
      _
    // Predicated region
    $region14: #{tpu_custom_call.1} parent=1 // pred_check
      _
    $region15: #{tpu_custom_call.1} parent=1 // pred_check_branch
      %25 = sbr.rel (0) target = $region17
    $region16: #{tpu_custom_call.1} parent=1 // pred_region
      _
    $region17: #{tpu_custom_call.1} parent=1 // pred_fallthru
      _
    // Predicated region
    $region18: #{tpu_custom_call.1} parent=1 // pred_check
      _
    $region19: #{tpu_custom_call.1} parent=1 // pred_check_branch
      %27 = sbr.rel (0) target = $region21
    $region20: #{tpu_custom_call.1} parent=1 // pred_region
      _
    $region21: #{tpu_custom_call.1} parent=1 // pred_fallthru
      _
    // Predicated region
    $region22: #{tpu_custom_call.1} parent=1 // pred_check
      _
    $region23: #{tpu_custom_call.1} parent=1 // pred_check_branch
      %29 = sbr.rel (0) target = $region25
    $region24: #{tpu_custom_call.1} parent=1 // pred_region
      _
    $region25: #{tpu_custom_call.1} parent=1 // pred_fallthru
      _
    // Predicated region
    $region26: #{tpu_custom_call.1} parent=1 // pred_check
      _
    $region27: #{tpu_custom_call.1} parent=1 // pred_check_branch
      %31 = sbr.rel (0) target = $region29
    $region28: #{tpu_custom_call.1} parent=1 // pred_region
      %33 = vsyncadd [#allocation3], 0
      %s34 = sshll.u32 %s6, 4
      %s35 = int_to_ptr.hbm [resolvable:$true] %s34
      %s36 = sshll.u32 [#allocation2], 4
      %s37 = int_to_ptr.vmem [resolvable:$true] %s36
      %42 = dma.hbm_to_vmem [thread:$0]  %s35, 9216, %s37, [#allocation3], 64, 64, 4
    $region29: #{tpu_custom_call.1} parent=1 // pred_fallthru
      _
    // Predicated region
    $region30: #{tpu_custom_call.1} parent=1 // pred_check
      _
    $region31: #{tpu_custom_call.1} parent=1 // pred_check_branch
      %44 = sbr.rel (0) target = $region33
    $region32: #{tpu_custom_call.1} parent=1 // pred_region
      _
    $region33: #{tpu_custom_call.1} parent=1 // pred_fallthru
      _
    // Predicated region
    $region34: #{tpu_custom_call.1} parent=1 // pred_check
      _
    $region35: #{tpu_custom_call.1} parent=1 // pred_check_branch
      %46 = sbr.rel (0) target = $region37
    $region36: #{tpu_custom_call.1} parent=1 // pred_region
      _
    $region37: #{tpu_custom_call.1} parent=1 // pred_fallthru
      _
    // Predicated region
    $region38: #{tpu_custom_call.1} parent=1 // pred_check
      _
    $region39: #{tpu_custom_call.1} parent=1 // pred_check_branch
      %48 = sbr.rel (0) target = $region41
    $region40: #{tpu_custom_call.1} parent=1 // pred_region
      _
    $region41: #{tpu_custom_call.1} parent=1 // pred_fallthru
      _
    // Predicated region
    $region42: #{tpu_custom_call.1} parent=1 // pred_check
      _
    $region43: #{tpu_custom_call.1} parent=1 // pred_check_branch
      %50 = sbr.rel (0) target = $region45
    $region44: #{tpu_custom_call.1} parent=1 // pred_region
      _
    $region45: #{tpu_custom_call.1} parent=1 // pred_fallthru
      _
    // Predicated region
    $region46: #{tpu_custom_call.1} parent=1 // pred_check
      _
    $region47: #{tpu_custom_call.1} parent=1 // pred_check_branch
      %52 = sbr.rel (0) target = $region49
    $region48: #{tpu_custom_call.1} parent=1 // pred_region
      _
    $region49: #{tpu_custom_call.1} parent=1 // pred_fallthru
      _
    // Predicated region
    $region50: #{tpu_custom_call.1} parent=1 // pred_check
      _
    $region51: #{tpu_custom_call.1} parent=1 // pred_check_branch
      %54 = sbr.rel (0) target = $region53
    $region52: #{tpu_custom_call.1} parent=1 // pred_region
      %56 = dma.done [#allocation3], 9216
    $region53: #{tpu_custom_call.1} parent=1 // pred_fallthru
      _
    %v58 = vld [vmem:[%s0] sm:$0xff]
    %v59 = vld [vmem:[%s0 + $0x8] sm:$0xff]
    %v60 = vld [vmem:[%s0 + $0x10] sm:$0xff]
    %v61 = vld [vmem:[%s0 + $0x18] sm:$0xff]
    %v62 = vld [vmem:[%s0 + $0x20] sm:$0xff]
    %v63 = vld [vmem:[%s0 + $0x28] sm:$0xff]
    %v64 = vld [vmem:[%s0 + $0x30] sm:$0xff]
    %v65 = vld [vmem:[%s0 + $0x38] sm:$0xff]
    %v66 = vld [vmem:[%s0 + $0x40] sm:$0xff]
    %v67 = vld [vmem:[%s0 + $0x48] sm:$0xff]
    %v68 = vld [vmem:[%s0 + $0x50] sm:$0xff]
    %v69 = vld [vmem:[%s0 + $0x58] sm:$0xff]
    %v70 = vld [vmem:[%s0 + $0x60] sm:$0xff]
    %v71 = vld [vmem:[%s0 + $0x68] sm:$0xff]
    %v72 = vld [vmem:[%s0 + $0x70] sm:$0xff]
    %v73 = vld [vmem:[%s0 + $0x78] sm:$0xff]
    %v74 = vld [vmem:[%s1] sm:$0xff]
    %v75 = vld [vmem:[%s1 + $0x8] sm:$0xff]
    %v76 = vld [vmem:[%s1 + $0x10] sm:$0xff]
    %v77 = vld [vmem:[%s1 + $0x18] sm:$0xff]
    %v78 = vld [vmem:[%s1 + $0x20] sm:$0xff]
    %v79 = vld [vmem:[%s1 + $0x28] sm:$0xff]
    %v80 = vld [vmem:[%s1 + $0x30] sm:$0xff]
    %v81 = vld [vmem:[%s1 + $0x38] sm:$0xff]
    %v82 = vld [vmem:[%s1 + $0x40] sm:$0xff]
    %v83 = vld [vmem:[%s1 + $0x48] sm:$0xff]
    %v84 = vld [vmem:[%s1 + $0x50] sm:$0xff]
    %v85 = vld [vmem:[%s1 + $0x58] sm:$0xff]
    %v86 = vld [vmem:[%s1 + $0x60] sm:$0xff]
    %v87 = vld [vmem:[%s1 + $0x68] sm:$0xff]
    %v88 = vld [vmem:[%s1 + $0x70] sm:$0xff]
    %v89 = vld [vmem:[%s1 + $0x78] sm:$0xff]
    %v90 = vld [vmem:[%s2] sm:$0xff]
    %v91 = vld [vmem:[%s2 + $0x8] sm:$0xff]
    %v92 = vld [vmem:[%s2 + $0x10] sm:$0xff]
    %v93 = vld [vmem:[%s2 + $0x18] sm:$0xff]
    %v94 = vld [vmem:[%s2 + $0x20] sm:$0xff]
    %v95 = vld [vmem:[%s2 + $0x28] sm:$0xff]
    %v96 = vld [vmem:[%s2 + $0x30] sm:$0xff]
    %v97 = vld [vmem:[%s2 + $0x38] sm:$0xff]
    %v98 = vld [vmem:[%s2 + $0x40] sm:$0xff]
    %v99 = vld [vmem:[%s2 + $0x48] sm:$0xff]
    %v100 = vld [vmem:[%s2 + $0x50] sm:$0xff]
    %v101 = vld [vmem:[%s2 + $0x58] sm:$0xff]
    %v102 = vld [vmem:[%s2 + $0x60] sm:$0xff]
    %v103 = vld [vmem:[%s2 + $0x68] sm:$0xff]
    %v104 = vld [vmem:[%s2 + $0x70] sm:$0xff]
    %v105 = vld [vmem:[%s2 + $0x78] sm:$0xff]
    %v106 = vpack.c.bf16 %v59, %v58
    %v107 = vpack.c.bf16 %v61, %v60
    %v108 = vpack.c.bf16 %v63, %v62
    %v109 = vpack.c.bf16 %v65, %v64
    %v110 = vpack.c.bf16 %v67, %v66
    %v111 = vpack.c.bf16 %v69, %v68
    %v112 = vpack.c.bf16 %v71, %v70
    %v113 = vpack.c.bf16 %v73, %v72
    %v114 = vld [vmem:[%s3] sm:$0xf]
    %v115 = vld [vmem:[%s3 + $0x4] sm:$0xf]
    %v118 = vunpack.c.l.b16 %v114
    %v119 = vunpack.c.l.b16 %v115
    %v120 = vpack.c.b16 %v119, %v118
    %vm122 = vcmask 130048
    %v124 = vsel %vm122, %v106, 0
    %v127 = vsel %vm122, %v107, 0
    %v130 = vsel %vm122, %v108, 0
    %v133 = vsel %vm122, %v109, 0
    %v136 = vsel %vm122, %v110, 0
    %v139 = vsel %vm122, %v111, 0
    %v142 = vsel %vm122, %v112, 0
    %v145 = vsel %vm122, %v113, 0
    %147 = vmatpush.bf16.msra.mxu0 0
    %148 = vmatpush.bf16.msra.mxu0 0
    %149 = vmatpush.bf16.msra.mxu0 0
    %150 = vmatpush.bf16.msra.mxu0 0
    %151 = vmatpush.bf16.msra.mxu0 0
    %152 = vmatpush.bf16.msra.mxu0 0
    %153 = vmatpush.bf16.msra.mxu0 0
    %154 = vmatpush.bf16.msra.mxu0 %v120
    %155 = vmatmul.bf16.gmra.mxu0 %v124
    %v156 = vpop.f32.mrf.mxu0
    %v157 = vadd.f32 0.0, %v156
    %v158 = vpop.f32.mrf.mxu0
    %v159 = vadd.f32 0.0, %v158
    %160 = vmatmul.bf16.gmra.mxu0 %v127
    %v161 = vpop.f32.mrf.mxu0
    %v162 = vadd.f32 0.0, %v161
    %v163 = vpop.f32.mrf.mxu0
    %v164 = vadd.f32 0.0, %v163
    %165 = vmatmul.bf16.gmra.mxu0 %v130
    %v166 = vpop.f32.mrf.mxu0
    %v167 = vadd.f32 0.0, %v166
    %v168 = vpop.f32.mrf.mxu0
    %v169 = vadd.f32 0.0, %v168
    %170 = vmatmul.bf16.gmra.mxu0 %v133
    %v171 = vpop.f32.mrf.mxu0
    %v172 = vadd.f32 0.0, %v171
    %v173 = vpop.f32.mrf.mxu0
    %v174 = vadd.f32 0.0, %v173
    %175 = vmatmul.bf16.gmra.mxu0 %v136
    %v176 = vpop.f32.mrf.mxu0
    %v177 = vadd.f32 0.0, %v176
    %v178 = vpop.f32.mrf.mxu0
    %v179 = vadd.f32 0.0, %v178
    %180 = vmatmul.bf16.gmra.mxu0 %v139
    %v181 = vpop.f32.mrf.mxu0
    %v182 = vadd.f32 0.0, %v181
    %v183 = vpop.f32.mrf.mxu0
    %v184 = vadd.f32 0.0, %v183
    %185 = vmatmul.bf16.gmra.mxu0 %v142
    %v186 = vpop.f32.mrf.mxu0
    %v187 = vadd.f32 0.0, %v186
    %v188 = vpop.f32.mrf.mxu0
    %v189 = vadd.f32 0.0, %v188
    %190 = vmatmul.bf16.gmra.mxu0 %v145
    %v191 = vpop.f32.mrf.mxu0
    %v192 = vadd.f32 0.0, %v191
    %v193 = vpop.f32.mrf.mxu0
    %v194 = vadd.f32 0.0, %v193
    %195 = vdwg.mxu0
    %v196 = vld [vmem:[%s4] sm:$0x1]
    %v197 = vld [vmem:[%s5] sm:$0x1]
    %198 = vmatpush.msra.mxu0 %v194
    %199 = vmatpush.msra.mxu0 %v192
    %200 = vmatpush.msra.mxu0 %v189
    %201 = vmatpush.msra.mxu0 %v187
    %202 = vmatpush.msra.mxu0 %v184
    %203 = vmatpush.msra.mxu0 %v182
    %204 = vmatpush.msra.mxu0 %v179
    %205 = vmatpush.msra.mxu0 %v177
    %206 = vmatpush.msra.mxu0 %v174
    %207 = vmatpush.msra.mxu0 %v172
    %208 = vmatpush.msra.mxu0 %v169
    %209 = vmatpush.msra.mxu0 %v167
    %210 = vmatpush.msra.mxu0 %v164
    %211 = vmatpush.msra.mxu0 %v162
    %212 = vmatpush.msra.mxu0 %v159
    %213 = vmatpush.msra.mxu0 %v157
    %214 = vmatmul.f32.gmra.mxu0 1.0
    %v215 = vpop.f32.mrf.mxu0
    %v216 = vadd.f32 0.0, %v215
    %217 = vdwg.mxu0
    %v218 = vmul.f32 %v157, %v157
    %v219 = vmul.f32 %v159, %v159
    %v220 = vmul.f32 %v162, %v162
    %v221 = vmul.f32 %v164, %v164
    %v222 = vmul.f32 %v167, %v167
    %v223 = vmul.f32 %v169, %v169
    %v224 = vmul.f32 %v172, %v172
    %v225 = vmul.f32 %v174, %v174
    %v226 = vmul.f32 %v177, %v177
    %v227 = vmul.f32 %v179, %v179
    %v228 = vmul.f32 %v182, %v182
    %v229 = vmul.f32 %v184, %v184
    %v230 = vmul.f32 %v187, %v187
    %v231 = vmul.f32 %v189, %v189
    %v232 = vmul.f32 %v192, %v192
    %v233 = vmul.f32 %v194, %v194
    %234 = vmatpush.msra.mxu0 %v233
    %235 = vmatpush.msra.mxu0 %v232
    %236 = vmatpush.msra.mxu0 %v231
    %237 = vmatpush.msra.mxu0 %v230
    %238 = vmatpush.msra.mxu0 %v229
    %239 = vmatpush.msra.mxu0 %v228
    %240 = vmatpush.msra.mxu0 %v227
    %241 = vmatpush.msra.mxu0 %v226
    %242 = vmatpush.msra.mxu0 %v225
    %243 = vmatpush.msra.mxu0 %v224
    %244 = vmatpush.msra.mxu0 %v223
    %245 = vmatpush.msra.mxu0 %v222
    %246 = vmatpush.msra.mxu0 %v221
    %247 = vmatpush.msra.mxu0 %v220
    %248 = vmatpush.msra.mxu0 %v219
    %249 = vmatpush.msra.mxu0 %v218
    %250 = vmatmul.f32.gmra.mxu0 1.0
    %v251 = vpop.f32.mrf.mxu0
    %v252 = vadd.f32 0.0, %v251
    %253 = vdwg.mxu0
    %v254 = vmul.f32 %v216, 0.0078125
    %v255 = vmul.f32 %v252, 0.0078125
    %v256 = vmul.f32 %v254, %v254
    %v257 = vsub.f32 %v255, %v256
    %v258 = vmax.f32 %v257, 0.0
    %v259 = vadd.f32 %v258, 1e-05
    %v260 = vrsqrt.pop %v259
    %v261 = vmul.f32 %v260, %v259
    %v262 = vmul.f32 %v261, %v260
    %v263 = vmul.f32 0.5, %v262
    %v264 = vsub.f32 1.5, %v263
    %v265 = vmul.f32 %v260, %v264
    %vm266 = vweird.f32 %v259
    %vm267 = vweird.f32 %v260
    %vm268 = vmor %vm266, %vm267
    %v269 = vsel %vm268, %v260, %v265
    %v270 = vmul.f32 %v196, %v269
    %v271 = vmul.f32 %v254, %v270
    %v272 = vsub.f32 %v197, %v271
    %v274 = vperm.slane %v270, 0
    %v276 = vmul.f32 %v157, %v274
    %v277 = vmul.f32 %v159, %v274
    %v278 = vmul.f32 %v162, %v274
    %v279 = vmul.f32 %v164, %v274
    %v280 = vmul.f32 %v167, %v274
    %v281 = vmul.f32 %v169, %v274
    %v282 = vmul.f32 %v172, %v274
    %v283 = vmul.f32 %v174, %v274
    %v284 = vmul.f32 %v177, %v274
    %v285 = vmul.f32 %v179, %v274
    %v286 = vmul.f32 %v182, %v274
    %v287 = vmul.f32 %v184, %v274
    %v288 = vmul.f32 %v187, %v274
    %v289 = vmul.f32 %v189, %v274
    %v290 = vmul.f32 %v192, %v274
    %v291 = vmul.f32 %v194, %v274
    %v293 = vperm.slane %v272, 0
    %v295 = vadd.f32 %v276, %v293
    %v296 = vadd.f32 %v277, %v293
    %v297 = vadd.f32 %v278, %v293
    %v298 = vadd.f32 %v279, %v293
    %v299 = vadd.f32 %v280, %v293
    %v300 = vadd.f32 %v281, %v293
    %v301 = vadd.f32 %v282, %v293
    %v302 = vadd.f32 %v283, %v293
    %v303 = vadd.f32 %v284, %v293
    %v304 = vadd.f32 %v285, %v293
    %v305 = vadd.f32 %v286, %v293
    %v306 = vadd.f32 %v287, %v293
    %v307 = vadd.f32 %v288, %v293
    %v308 = vadd.f32 %v289, %v293
    %v309 = vadd.f32 %v290, %v293
    %v310 = vadd.f32 %v291, %v293
    %v311 = vmax.f32 %v295, 0.0
    %v312 = vmax.f32 %v296, 0.0
    %v313 = vmax.f32 %v297, 0.0
    %v314 = vmax.f32 %v298, 0.0
    %v315 = vmax.f32 %v299, 0.0
    %v316 = vmax.f32 %v300, 0.0
    %v317 = vmax.f32 %v301, 0.0
    %v318 = vmax.f32 %v302, 0.0
    %v319 = vmax.f32 %v303, 0.0
    %v320 = vmax.f32 %v304, 0.0
    %v321 = vmax.f32 %v305, 0.0
    %v322 = vmax.f32 %v306, 0.0
    %v323 = vmax.f32 %v307, 0.0
    %v324 = vmax.f32 %v308, 0.0
    %v325 = vmax.f32 %v309, 0.0
    %v326 = vmax.f32 %v310, 0.0
    %v327 = vrot.slane %v311, 7
    %v328 = vrot.slane %v312, 7
    %v329 = vrot.slane %v313, 7
    %v330 = vrot.slane %v314, 7
    %v331 = vrot.slane %v315, 7
    %v332 = vrot.slane %v316, 7
    %v333 = vrot.slane %v317, 7
    %v334 = vrot.slane %v318, 7
    %v335 = vrot.slane %v319, 7
    %v336 = vrot.slane %v320, 7
    %v337 = vrot.slane %v321, 7
    %v338 = vrot.slane %v322, 7
    %v339 = vrot.slane %v323, 7
    %v340 = vrot.slane %v324, 7
    %v341 = vrot.slane %v325, 7
    %v342 = vrot.slane %v326, 7
    %v343 = vlaneseq
    %v344 = vshrl.u32 %v343, 7
    %vm345 = vcmp.lt.s32.totalorder %v344, 1
    %v346 = vsel %vm345, %v341, %v342
    %v347 = vsel %vm345, %v340, %v341
    %v348 = vsel %vm345, %v339, %v340
    %v349 = vsel %vm345, %v338, %v339
    %v350 = vsel %vm345, %v337, %v338
    %v351 = vsel %vm345, %v336, %v337
    %v352 = vsel %vm345, %v335, %v336
    %v353 = vsel %vm345, %v334, %v335
    %v354 = vsel %vm345, %v333, %v334
    %v355 = vsel %vm345, %v332, %v333
    %v356 = vsel %vm345, %v331, %v332
    %v357 = vsel %vm345, %v330, %v331
    %v358 = vsel %vm345, %v329, %v330
    %v359 = vsel %vm345, %v328, %v329
    %v360 = vsel %vm345, %v327, %v328
    %v361 = vsel %vm345, %v342, %v327
    %v362 = vadd.s32 %v74, 4294967295
    %v363 = vadd.s32 %v75, 4294967295
    %v364 = vadd.s32 %v76, 4294967295
    %v365 = vadd.s32 %v77, 4294967295
    %v366 = vadd.s32 %v78, 4294967295
    %v367 = vadd.s32 %v79, 4294967295
    %v368 = vadd.s32 %v80, 4294967295
    %v369 = vadd.s32 %v81, 4294967295
    %v370 = vadd.s32 %v82, 4294967295
    %v371 = vadd.s32 %v83, 4294967295
    %v372 = vadd.s32 %v84, 4294967295
    %v373 = vadd.s32 %v85, 4294967295
    %v374 = vadd.s32 %v86, 4294967295
    %v375 = vadd.s32 %v87, 4294967295
    %v376 = vadd.s32 %v88, 4294967295
    %v377 = vadd.s32 %v89, 4294967295
    %vm378 = vcmp.ge.s32.totalorder %v362, 0
    %vm379 = vcmp.ge.s32.totalorder %v363, 0
    %vm380 = vcmp.ge.s32.totalorder %v364, 0
    %vm381 = vcmp.ge.s32.totalorder %v365, 0
    %vm382 = vcmp.ge.s32.totalorder %v366, 0
    %vm383 = vcmp.ge.s32.totalorder %v367, 0
    %vm384 = vcmp.ge.s32.totalorder %v368, 0
    %vm385 = vcmp.ge.s32.totalorder %v369, 0
    %vm386 = vcmp.ge.s32.totalorder %v370, 0
    %vm387 = vcmp.ge.s32.totalorder %v371, 0
    %vm388 = vcmp.ge.s32.totalorder %v372, 0
    %vm389 = vcmp.ge.s32.totalorder %v373, 0
    %vm390 = vcmp.ge.s32.totalorder %v374, 0
    %vm391 = vcmp.ge.s32.totalorder %v375, 0
    %vm392 = vcmp.ge.s32.totalorder %v376, 0
    %vm393 = vcmp.ge.s32.totalorder %v377, 0
    %vm394 = vcmp.lt.s32.totalorder %v362, 8
    %vm395 = vcmp.lt.s32.totalorder %v363, 8
    %vm396 = vcmp.lt.s32.totalorder %v364, 8
    %vm397 = vcmp.lt.s32.totalorder %v365, 8
    %vm398 = vcmp.lt.s32.totalorder %v366, 8
    %vm399 = vcmp.lt.s32.totalorder %v367, 8
    %vm400 = vcmp.lt.s32.totalorder %v368, 8
    %vm401 = vcmp.lt.s32.totalorder %v369, 8
    %vm402 = vcmp.lt.s32.totalorder %v370, 8
    %vm403 = vcmp.lt.s32.totalorder %v371, 8
    %vm404 = vcmp.lt.s32.totalorder %v372, 8
    %vm405 = vcmp.lt.s32.totalorder %v373, 8
    %vm406 = vcmp.lt.s32.totalorder %v374, 8
    %vm407 = vcmp.lt.s32.totalorder %v375, 8
    %vm408 = vcmp.lt.s32.totalorder %v376, 8
    %vm409 = vcmp.lt.s32.totalorder %v377, 8
    %vm410 = vmand %vm378, %vm394
    %vm411 = vmand %vm379, %vm395
    %vm412 = vmand %vm380, %vm396
    %vm413 = vmand %vm381, %vm397
    %vm414 = vmand %vm382, %vm398
    %vm415 = vmand %vm383, %vm399
    %vm416 = vmand %vm384, %vm400
    %vm417 = vmand %vm385, %vm401
    %vm418 = vmand %vm386, %vm402
    %vm419 = vmand %vm387, %vm403
    %vm420 = vmand %vm388, %vm404
    %vm421 = vmand %vm389, %vm405
    %vm422 = vmand %vm390, %vm406
    %vm423 = vmand %vm391, %vm407
    %vm424 = vmand %vm392, %vm408
    %vm425 = vmand %vm393, %vm409
    %v426 = vadd.s32 %v90, 4294967295
    %v427 = vadd.s32 %v91, 4294967295
    %v428 = vadd.s32 %v92, 4294967295
    %v429 = vadd.s32 %v93, 4294967295
    %v430 = vadd.s32 %v94, 4294967295
    %v431 = vadd.s32 %v95, 4294967295
    %v432 = vadd.s32 %v96, 4294967295
    %v433 = vadd.s32 %v97, 4294967295
    %v434 = vadd.s32 %v98, 4294967295
    %v435 = vadd.s32 %v99, 4294967295
    %v436 = vadd.s32 %v100, 4294967295
    %v437 = vadd.s32 %v101, 4294967295
    %v438 = vadd.s32 %v102, 4294967295
    %v439 = vadd.s32 %v103, 4294967295
    %v440 = vadd.s32 %v104, 4294967295
    %v441 = vadd.s32 %v105, 4294967295
    %vm442 = vcmp.ge.s32.totalorder %v426, 0
    %vm443 = vcmp.ge.s32.totalorder %v427, 0
    %vm444 = vcmp.ge.s32.totalorder %v428, 0
    %vm445 = vcmp.ge.s32.totalorder %v429, 0
    %vm446 = vcmp.ge.s32.totalorder %v430, 0
    %vm447 = vcmp.ge.s32.totalorder %v431, 0
    %vm448 = vcmp.ge.s32.totalorder %v432, 0
    %vm449 = vcmp.ge.s32.totalorder %v433, 0
    %vm450 = vcmp.ge.s32.totalorder %v434, 0
    %vm451 = vcmp.ge.s32.totalorder %v435, 0
    %vm452 = vcmp.ge.s32.totalorder %v436, 0
    %vm453 = vcmp.ge.s32.totalorder %v437, 0
    %vm454 = vcmp.ge.s32.totalorder %v438, 0
    %vm455 = vcmp.ge.s32.totalorder %v439, 0
    %vm456 = vcmp.ge.s32.totalorder %v440, 0
    %vm457 = vcmp.ge.s32.totalorder %v441, 0
    %vm458 = vmand %vm410, %vm442
    %vm459 = vmand %vm411, %vm443
    %vm460 = vmand %vm412, %vm444
    %vm461 = vmand %vm413, %vm445
    %vm462 = vmand %vm414, %vm446
    %vm463 = vmand %vm415, %vm447
    %vm464 = vmand %vm416, %vm448
    %vm465 = vmand %vm417, %vm449
    %vm466 = vmand %vm418, %vm450
    %vm467 = vmand %vm419, %vm451
    %vm468 = vmand %vm420, %vm452
    %vm469 = vmand %vm421, %vm453
    %vm470 = vmand %vm422, %vm454
    %vm471 = vmand %vm423, %vm455
    %vm472 = vmand %vm424, %vm456
    %vm473 = vmand %vm425, %vm457
    %vm474 = vcmp.lt.s32.totalorder %v426, 8
    %vm475 = vcmp.lt.s32.totalorder %v427, 8
    %vm476 = vcmp.lt.s32.totalorder %v428, 8
    %vm477 = vcmp.lt.s32.totalorder %v429, 8
    %vm478 = vcmp.lt.s32.totalorder %v430, 8
    %vm479 = vcmp.lt.s32.totalorder %v431, 8
    %vm480 = vcmp.lt.s32.totalorder %v432, 8
    %vm481 = vcmp.lt.s32.totalorder %v433, 8
    %vm482 = vcmp.lt.s32.totalorder %v434, 8
    %vm483 = vcmp.lt.s32.totalorder %v435, 8
    %vm484 = vcmp.lt.s32.totalorder %v436, 8
    %vm485 = vcmp.lt.s32.totalorder %v437, 8
    %vm486 = vcmp.lt.s32.totalorder %v438, 8
    %vm487 = vcmp.lt.s32.totalorder %v439, 8
    %vm488 = vcmp.lt.s32.totalorder %v440, 8
    %vm489 = vcmp.lt.s32.totalorder %v441, 8
    %vm490 = vmand %vm458, %vm474
    %vm491 = vmand %vm459, %vm475
    %vm492 = vmand %vm460, %vm476
    %vm493 = vmand %vm461, %vm477
    %vm494 = vmand %vm462, %vm478
    %vm495 = vmand %vm463, %vm479
    %vm496 = vmand %vm464, %vm480
    %vm497 = vmand %vm465, %vm481
    %vm498 = vmand %vm466, %vm482
    %vm499 = vmand %vm467, %vm483
    %vm500 = vmand %vm468, %vm484
    %vm501 = vmand %vm469, %vm485
    %vm502 = vmand %vm470, %vm486
    %vm503 = vmand %vm471, %vm487
    %vm504 = vmand %vm472, %vm488
    %vm505 = vmand %vm473, %vm489
    %v506 = vsel %vm490, 1, 0
    %v507 = vsel %vm491, 1, 0
    %v508 = vsel %vm492, 1, 0
    %v509 = vsel %vm493, 1, 0
    %v510 = vsel %vm494, 1, 0
    %v511 = vsel %vm495, 1, 0
    %v512 = vsel %vm496, 1, 0
    %v513 = vsel %vm497, 1, 0
    %v514 = vsel %vm498, 1, 0
    %v515 = vsel %vm499, 1, 0
    %v516 = vsel %vm500, 1, 0
    %v517 = vsel %vm501, 1, 0
    %v518 = vsel %vm502, 1, 0
    %v519 = vsel %vm503, 1, 0
    %v520 = vsel %vm504, 1, 0
    %v521 = vsel %vm505, 1, 0
    %522 = vset.pattern.permute.xlu0 0
    %523 = vperm.xlu0 %522, %v506
    %v524 = vpop.permute.xlu0 %523
    %525 = vset.pattern.permute.xlu0 0
    %526 = vperm.xlu0 %525, %v507
    %v527 = vpop.permute.xlu0 %526
    %528 = vset.pattern.permute.xlu0 0
    %529 = vperm.xlu0 %528, %v508
    %v530 = vpop.permute.xlu0 %529
    %531 = vset.pattern.permute.xlu0 0
    %532 = vperm.xlu0 %531, %v509
    %v533 = vpop.permute.xlu0 %532
    %534 = vset.pattern.permute.xlu0 0
    %535 = vperm.xlu0 %534, %v510
    %v536 = vpop.permute.xlu0 %535
    %537 = vset.pattern.permute.xlu0 0
    %538 = vperm.xlu0 %537, %v511
    %v539 = vpop.permute.xlu0 %538
    %540 = vset.pattern.permute.xlu0 0
    %541 = vperm.xlu0 %540, %v512
    %v542 = vpop.permute.xlu0 %541
    %543 = vset.pattern.permute.xlu0 0
    %544 = vperm.xlu0 %543, %v513
    %v545 = vpop.permute.xlu0 %544
    %546 = vset.pattern.permute.xlu0 0
    %547 = vperm.xlu0 %546, %v514
    %v548 = vpop.permute.xlu0 %547
    %549 = vset.pattern.permute.xlu0 0
    %550 = vperm.xlu0 %549, %v515
    %v551 = vpop.permute.xlu0 %550
    %552 = vset.pattern.permute.xlu0 0
    %553 = vperm.xlu0 %552, %v516
    %v554 = vpop.permute.xlu0 %553
    %555 = vset.pattern.permute.xlu0 0
    %556 = vperm.xlu0 %555, %v517
    %v557 = vpop.permute.xlu0 %556
    %558 = vset.pattern.permute.xlu0 0
    %559 = vperm.xlu0 %558, %v518
    %v560 = vpop.permute.xlu0 %559
    %561 = vset.pattern.permute.xlu0 0
    %562 = vperm.xlu0 %561, %v519
    %v563 = vpop.permute.xlu0 %562
    %564 = vset.pattern.permute.xlu0 0
    %565 = vperm.xlu0 %564, %v520
    %v566 = vpop.permute.xlu0 %565
    %567 = vset.pattern.permute.xlu0 0
    %568 = vperm.xlu0 %567, %v521
    %v569 = vpop.permute.xlu0 %568
    %vm570 = vcmp.eq.s32.totalorder %v524, 1
    %vm571 = vcmp.eq.s32.totalorder %v527, 1
    %vm572 = vcmp.eq.s32.totalorder %v530, 1
    %vm573 = vcmp.eq.s32.totalorder %v533, 1
    %vm574 = vcmp.eq.s32.totalorder %v536, 1
    %vm575 = vcmp.eq.s32.totalorder %v539, 1
    %vm576 = vcmp.eq.s32.totalorder %v542, 1
    %vm577 = vcmp.eq.s32.totalorder %v545, 1
    %vm578 = vcmp.eq.s32.totalorder %v548, 1
    %vm579 = vcmp.eq.s32.totalorder %v551, 1
    %vm580 = vcmp.eq.s32.totalorder %v554, 1
    %vm581 = vcmp.eq.s32.totalorder %v557, 1
    %vm582 = vcmp.eq.s32.totalorder %v560, 1
    %vm583 = vcmp.eq.s32.totalorder %v563, 1
    %vm584 = vcmp.eq.s32.totalorder %v566, 1
    %vm585 = vcmp.eq.s32.totalorder %v569, 1
    %v586 = vsel %vm570, %v346, 0.0
    %v587 = vsel %vm571, %v361, 0.0
    %v588 = vsel %vm572, %v360, 0.0
    %v589 = vsel %vm573, %v359, 0.0
    %v590 = vsel %vm574, %v358, 0.0
    %v591 = vsel %vm575, %v357, 0.0
    %v592 = vsel %vm576, %v356, 0.0
    %v593 = vsel %vm577, %v355, 0.0
    %v594 = vsel %vm578, %v354, 0.0
    %v595 = vsel %vm579, %v353, 0.0
    %v596 = vsel %vm580, %v352, 0.0
    %v597 = vsel %vm581, %v351, 0.0
    %v598 = vsel %vm582, %v350, 0.0
    %v599 = vsel %vm583, %v349, 0.0
    %v600 = vsel %vm584, %v348, 0.0
    %v601 = vsel %vm585, %v347, 0.0
    %v602 = vpack.c.bf16 %v586, %v586
    %v603 = vpack.c.bf16 %v587, %v587
    %v604 = vpack.c.bf16 %v588, %v588
    %v605 = vpack.c.bf16 %v589, %v589
    %v606 = vpack.c.bf16 %v590, %v590
    %v607 = vpack.c.bf16 %v591, %v591
    %v608 = vpack.c.bf16 %v592, %v592
    %v609 = vpack.c.bf16 %v593, %v593
    %v610 = vpack.c.bf16 %v594, %v594
    %v611 = vpack.c.bf16 %v595, %v595
    %v612 = vpack.c.bf16 %v596, %v596
    %v613 = vpack.c.bf16 %v597, %v597
    %v614 = vpack.c.bf16 %v598, %v598
    %v615 = vpack.c.bf16 %v599, %v599
    %v616 = vpack.c.bf16 %v600, %v600
    %v617 = vpack.c.bf16 %v601, %v601
    %vm618 = vcmp.ge.s32.totalorder %v90, 0
    %vm619 = vcmp.ge.s32.totalorder %v91, 0
    %vm620 = vcmp.ge.s32.totalorder %v92, 0
    %vm621 = vcmp.ge.s32.totalorder %v93, 0
    %vm622 = vcmp.ge.s32.totalorder %v94, 0
    %vm623 = vcmp.ge.s32.totalorder %v95, 0
    %vm624 = vcmp.ge.s32.totalorder %v96, 0
    %vm625 = vcmp.ge.s32.totalorder %v97, 0
    %vm626 = vcmp.ge.s32.totalorder %v98, 0
    %vm627 = vcmp.ge.s32.totalorder %v99, 0
    %vm628 = vcmp.ge.s32.totalorder %v100, 0
    %vm629 = vcmp.ge.s32.totalorder %v101, 0
    %vm630 = vcmp.ge.s32.totalorder %v102, 0
    %vm631 = vcmp.ge.s32.totalorder %v103, 0
    %vm632 = vcmp.ge.s32.totalorder %v104, 0
    %vm633 = vcmp.ge.s32.totalorder %v105, 0
    %vm634 = vmand %vm410, %vm618
    %vm635 = vmand %vm411, %vm619
    %vm636 = vmand %vm412, %vm620
    %vm637 = vmand %vm413, %vm621
    %vm638 = vmand %vm414, %vm622
    %vm639 = vmand %vm415, %vm623
    %vm640 = vmand %vm416, %vm624
    %vm641 = vmand %vm417, %vm625
    %vm642 = vmand %vm418, %vm626
    %vm643 = vmand %vm419, %vm627
    %vm644 = vmand %vm420, %vm628
    %vm645 = vmand %vm421, %vm629
    %vm646 = vmand %vm422, %vm630
    %vm647 = vmand %vm423, %vm631
    %vm648 = vmand %vm424, %vm632
    %vm649 = vmand %vm425, %vm633
    %vm650 = vcmp.lt.s32.totalorder %v90, 8
    %vm651 = vcmp.lt.s32.totalorder %v91, 8
    %vm652 = vcmp.lt.s32.totalorder %v92, 8
    %vm653 = vcmp.lt.s32.totalorder %v93, 8
    %vm654 = vcmp.lt.s32.totalorder %v94, 8
    %vm655 = vcmp.lt.s32.totalorder %v95, 8
    %vm656 = vcmp.lt.s32.totalorder %v96, 8
    %vm657 = vcmp.lt.s32.totalorder %v97, 8
    %vm658 = vcmp.lt.s32.totalorder %v98, 8
    %vm659 = vcmp.lt.s32.totalorder %v99, 8
    %vm660 = vcmp.lt.s32.totalorder %v100, 8
    %vm661 = vcmp.lt.s32.totalorder %v101, 8
    %vm662 = vcmp.lt.s32.totalorder %v102, 8
    %vm663 = vcmp.lt.s32.totalorder %v103, 8
    %vm664 = vcmp.lt.s32.totalorder %v104, 8
    %vm665 = vcmp.lt.s32.totalorder %v105, 8
    %vm666 = vmand %vm634, %vm650
    %vm667 = vmand %vm635, %vm651
    %vm668 = vmand %vm636, %vm652
    %vm669 = vmand %vm637, %vm653
    %vm670 = vmand %vm638, %vm654
    %vm671 = vmand %vm639, %vm655
    %vm672 = vmand %vm640, %vm656
    %vm673 = vmand %vm641, %vm657
    %vm674 = vmand %vm642, %vm658
    %vm675 = vmand %vm643, %vm659
    %vm676 = vmand %vm644, %vm660
    %vm677 = vmand %vm645, %vm661
    %vm678 = vmand %vm646, %vm662
    %vm679 = vmand %vm647, %vm663
    %vm680 = vmand %vm648, %vm664
    %vm681 = vmand %vm649, %vm665
    %v682 = vsel %vm666, 1, 0
    %v683 = vsel %vm667, 1, 0
    %v684 = vsel %vm668, 1, 0
    %v685 = vsel %vm669, 1, 0
    %v686 = vsel %vm670, 1, 0
    %v687 = vsel %vm671, 1, 0
    %v688 = vsel %vm672, 1, 0
    %v689 = vsel %vm673, 1, 0
    %v690 = vsel %vm674, 1, 0
    %v691 = vsel %vm675, 1, 0
    %v692 = vsel %vm676, 1, 0
    %v693 = vsel %vm677, 1, 0
    %v694 = vsel %vm678, 1, 0
    %v695 = vsel %vm679, 1, 0
    %v696 = vsel %vm680, 1, 0
    %v697 = vsel %vm681, 1, 0
    %698 = vset.pattern.permute.xlu0 0
    %699 = vperm.xlu0 %698, %v682
    %v700 = vpop.permute.xlu0 %699
    %701 = vset.pattern.permute.xlu0 0
    %702 = vperm.xlu0 %701, %v683
    %v703 = vpop.permute.xlu0 %702
    %704 = vset.pattern.permute.xlu0 0
    %705 = vperm.xlu0 %704, %v684
    %v706 = vpop.permute.xlu0 %705
    %707 = vset.pattern.permute.xlu0 0
    %708 = vperm.xlu0 %707, %v685
    %v709 = vpop.permute.xlu0 %708
    %710 = vset.pattern.permute.xlu0 0
    %711 = vperm.xlu0 %710, %v686
    %v712 = vpop.permute.xlu0 %711
    %713 = vset.pattern.permute.xlu0 0
    %714 = vperm.xlu0 %713, %v687
    %v715 = vpop.permute.xlu0 %714
    %716 = vset.pattern.permute.xlu0 0
    %717 = vperm.xlu0 %716, %v688
    %v718 = vpop.permute.xlu0 %717
    %719 = vset.pattern.permute.xlu0 0
    %720 = vperm.xlu0 %719, %v689
    %v721 = vpop.permute.xlu0 %720
    %722 = vset.pattern.permute.xlu0 0
    %723 = vperm.xlu0 %722, %v690
    %v724 = vpop.permute.xlu0 %723
    %725 = vset.pattern.permute.xlu0 0
    %726 = vperm.xlu0 %725, %v691
    %v727 = vpop.permute.xlu0 %726
    %728 = vset.pattern.permute.xlu0 0
    %729 = vperm.xlu0 %728, %v692
    %v730 = vpop.permute.xlu0 %729
    %731 = vset.pattern.permute.xlu0 0
    %732 = vperm.xlu0 %731, %v693
    %v733 = vpop.permute.xlu0 %732
    %734 = vset.pattern.permute.xlu0 0
    %735 = vperm.xlu0 %734, %v694
    %v736 = vpop.permute.xlu0 %735
    %737 = vset.pattern.permute.xlu0 0
    %738 = vperm.xlu0 %737, %v695
    %v739 = vpop.permute.xlu0 %738
    %740 = vset.pattern.permute.xlu0 0
    %741 = vperm.xlu0 %740, %v696
    %v742 = vpop.permute.xlu0 %741
    %743 = vset.pattern.permute.xlu0 0
    %744 = vperm.xlu0 %743, %v697
    %v745 = vpop.permute.xlu0 %744
    %vm746 = vcmp.eq.s32.totalorder %v700, 1
    %vm747 = vcmp.eq.s32.totalorder %v703, 1
    %vm748 = vcmp.eq.s32.totalorder %v706, 1
    %vm749 = vcmp.eq.s32.totalorder %v709, 1
    %vm750 = vcmp.eq.s32.totalorder %v712, 1
    %vm751 = vcmp.eq.s32.totalorder %v715, 1
    %vm752 = vcmp.eq.s32.totalorder %v718, 1
    %vm753 = vcmp.eq.s32.totalorder %v721, 1
    %vm754 = vcmp.eq.s32.totalorder %v724, 1
    %vm755 = vcmp.eq.s32.totalorder %v727, 1
    %vm756 = vcmp.eq.s32.totalorder %v730, 1
    %vm757 = vcmp.eq.s32.totalorder %v733, 1
    %vm758 = vcmp.eq.s32.totalorder %v736, 1
    %vm759 = vcmp.eq.s32.totalorder %v739, 1
    %vm760 = vcmp.eq.s32.totalorder %v742, 1
    %vm761 = vcmp.eq.s32.totalorder %v745, 1
    %v762 = vsel %vm746, %v326, 0.0
    %v763 = vsel %vm747, %v311, 0.0
    %v764 = vsel %vm748, %v312, 0.0
    %v765 = vsel %vm749, %v313, 0.0
    %v766 = vsel %vm750, %v314, 0.0
    %v767 = vsel %vm751, %v315, 0.0
    %v768 = vsel %vm752, %v316, 0.0
    %v769 = vsel %vm753, %v317, 0.0
    %v770 = vsel %vm754, %v318, 0.0
    %v771 = vsel %vm755, %v319, 0.0
    %v772 = vsel %vm756, %v320, 0.0
    %v773 = vsel %vm757, %v321, 0.0
    %v774 = vsel %vm758, %v322, 0.0
    %v775 = vsel %vm759, %v323, 0.0
    %v776 = vsel %vm760, %v324, 0.0
    %v777 = vsel %vm761, %v325, 0.0
    %v778 = vpack.c.bf16 %v762, %v762
    %v779 = vpack.c.bf16 %v763, %v763
    %v780 = vpack.c.bf16 %v764, %v764
    %v781 = vpack.c.bf16 %v765, %v765
    %v782 = vpack.c.bf16 %v766, %v766
    %v783 = vpack.c.bf16 %v767, %v767
    %v784 = vpack.c.bf16 %v768, %v768
    %v785 = vpack.c.bf16 %v769, %v769
    %v786 = vpack.c.bf16 %v770, %v770
    %v787 = vpack.c.bf16 %v771, %v771
    %v788 = vpack.c.bf16 %v772, %v772
    %v789 = vpack.c.bf16 %v773, %v773
    %v790 = vpack.c.bf16 %v774, %v774
    %v791 = vpack.c.bf16 %v775, %v775
    %v792 = vpack.c.bf16 %v776, %v776
    %v793 = vpack.c.bf16 %v777, %v777
    %v794 = vrot.slane %v311, 1
    %v795 = vrot.slane %v312, 1
    %v796 = vrot.slane %v313, 1
    %v797 = vrot.slane %v314, 1
    %v798 = vrot.slane %v315, 1
    %v799 = vrot.slane %v316, 1
    %v800 = vrot.slane %v317, 1
    %v801 = vrot.slane %v318, 1
    %v802 = vrot.slane %v319, 1
    %v803 = vrot.slane %v320, 1
    %v804 = vrot.slane %v321, 1
    %v805 = vrot.slane %v322, 1
    %v806 = vrot.slane %v323, 1
    %v807 = vrot.slane %v324, 1
    %v808 = vrot.slane %v325, 1
    %v809 = vrot.slane %v326, 1
    %vm810 = vcmp.lt.s32.totalorder %v344, 7
    %v811 = vsel %vm810, %v808, %v809
    %v812 = vsel %vm810, %v807, %v808
    %v813 = vsel %vm810, %v806, %v807
    %v814 = vsel %vm810, %v805, %v806
    %v815 = vsel %vm810, %v804, %v805
    %v816 = vsel %vm810, %v803, %v804
    %v817 = vsel %vm810, %v802, %v803
    %v818 = vsel %vm810, %v801, %v802
    %v819 = vsel %vm810, %v800, %v801
    %v820 = vsel %vm810, %v799, %v800
    %v821 = vsel %vm810, %v798, %v799
    %v822 = vsel %vm810, %v797, %v798
    %v823 = vsel %vm810, %v796, %v797
    %v824 = vsel %vm810, %v795, %v796
    %v825 = vsel %vm810, %v794, %v795
    %v826 = vsel %vm810, %v809, %v794
    %v827 = vadd.s32 %v90, 1
    %v828 = vadd.s32 %v91, 1
    %v829 = vadd.s32 %v92, 1
    %v830 = vadd.s32 %v93, 1
    %v831 = vadd.s32 %v94, 1
    %v832 = vadd.s32 %v95, 1
    %v833 = vadd.s32 %v96, 1
    %v834 = vadd.s32 %v97, 1
    %v835 = vadd.s32 %v98, 1
    %v836 = vadd.s32 %v99, 1
    %v837 = vadd.s32 %v100, 1
    %v838 = vadd.s32 %v101, 1
    %v839 = vadd.s32 %v102, 1
    %v840 = vadd.s32 %v103, 1
    %v841 = vadd.s32 %v104, 1
    %v842 = vadd.s32 %v105, 1
    %vm843 = vcmp.ge.s32.totalorder %v827, 0
    %vm844 = vcmp.ge.s32.totalorder %v828, 0
    %vm845 = vcmp.ge.s32.totalorder %v829, 0
    %vm846 = vcmp.ge.s32.totalorder %v830, 0
    %vm847 = vcmp.ge.s32.totalorder %v831, 0
    %vm848 = vcmp.ge.s32.totalorder %v832, 0
    %vm849 = vcmp.ge.s32.totalorder %v833, 0
    %vm850 = vcmp.ge.s32.totalorder %v834, 0
    %vm851 = vcmp.ge.s32.totalorder %v835, 0
    %vm852 = vcmp.ge.s32.totalorder %v836, 0
    %vm853 = vcmp.ge.s32.totalorder %v837, 0
    %vm854 = vcmp.ge.s32.totalorder %v838, 0
    %vm855 = vcmp.ge.s32.totalorder %v839, 0
    %vm856 = vcmp.ge.s32.totalorder %v840, 0
    %vm857 = vcmp.ge.s32.totalorder %v841, 0
    %vm858 = vcmp.ge.s32.totalorder %v842, 0
    %vm859 = vmand %vm410, %vm843
    %vm860 = vmand %vm411, %vm844
    %vm861 = vmand %vm412, %vm845
    %vm862 = vmand %vm413, %vm846
    %vm863 = vmand %vm414, %vm847
    %vm864 = vmand %vm415, %vm848
    %vm865 = vmand %vm416, %vm849
    %vm866 = vmand %vm417, %vm850
    %vm867 = vmand %vm418, %vm851
    %vm868 = vmand %vm419, %vm852
    %vm869 = vmand %vm420, %vm853
    %vm870 = vmand %vm421, %vm854
    %vm871 = vmand %vm422, %vm855
    %vm872 = vmand %vm423, %vm856
    %vm873 = vmand %vm424, %vm857
    %vm874 = vmand %vm425, %vm858
    %vm875 = vcmp.lt.s32.totalorder %v827, 8
    %vm876 = vcmp.lt.s32.totalorder %v828, 8
    %vm877 = vcmp.lt.s32.totalorder %v829, 8
    %vm878 = vcmp.lt.s32.totalorder %v830, 8
    %vm879 = vcmp.lt.s32.totalorder %v831, 8
    %vm880 = vcmp.lt.s32.totalorder %v832, 8
    %vm881 = vcmp.lt.s32.totalorder %v833, 8
    %vm882 = vcmp.lt.s32.totalorder %v834, 8
    %vm883 = vcmp.lt.s32.totalorder %v835, 8
    %vm884 = vcmp.lt.s32.totalorder %v836, 8
    %vm885 = vcmp.lt.s32.totalorder %v837, 8
    %vm886 = vcmp.lt.s32.totalorder %v838, 8
    %vm887 = vcmp.lt.s32.totalorder %v839, 8
    %vm888 = vcmp.lt.s32.totalorder %v840, 8
    %vm889 = vcmp.lt.s32.totalorder %v841, 8
    %vm890 = vcmp.lt.s32.totalorder %v842, 8
    %vm891 = vmand %vm859, %vm875
    %vm892 = vmand %vm860, %vm876
    %vm893 = vmand %vm861, %vm877
    %vm894 = vmand %vm862, %vm878
    %vm895 = vmand %vm863, %vm879
    %vm896 = vmand %vm864, %vm880
    %vm897 = vmand %vm865, %vm881
    %vm898 = vmand %vm866, %vm882
    %vm899 = vmand %vm867, %vm883
    %vm900 = vmand %vm868, %vm884
    %vm901 = vmand %vm869, %vm885
    %vm902 = vmand %vm870, %vm886
    %vm903 = vmand %vm871, %vm887
    %vm904 = vmand %vm872, %vm888
    %vm905 = vmand %vm873, %vm889
    %vm906 = vmand %vm874, %vm890
    %v907 = vsel %vm891, 1, 0
    %v908 = vsel %vm892, 1, 0
    %v909 = vsel %vm893, 1, 0
    %v910 = vsel %vm894, 1, 0
    %v911 = vsel %vm895, 1, 0
    %v912 = vsel %vm896, 1, 0
    %v913 = vsel %vm897, 1, 0
    %v914 = vsel %vm898, 1, 0
    %v915 = vsel %vm899, 1, 0
    %v916 = vsel %vm900, 1, 0
    %v917 = vsel %vm901, 1, 0
    %v918 = vsel %vm902, 1, 0
    %v919 = vsel %vm903, 1, 0
    %v920 = vsel %vm904, 1, 0
    %v921 = vsel %vm905, 1, 0
    %v922 = vsel %vm906, 1, 0
    %923 = vset.pattern.permute.xlu0 0
    %924 = vperm.xlu0 %923, %v907
    %v925 = vpop.permute.xlu0 %924
    %926 = vset.pattern.permute.xlu0 0
    %927 = vperm.xlu0 %926, %v908
    %v928 = vpop.permute.xlu0 %927
    %929 = vset.pattern.permute.xlu0 0
    %930 = vperm.xlu0 %929, %v909
    %v931 = vpop.permute.xlu0 %930
    %932 = vset.pattern.permute.xlu0 0
    %933 = vperm.xlu0 %932, %v910
    %v934 = vpop.permute.xlu0 %933
    %935 = vset.pattern.permute.xlu0 0
    %936 = vperm.xlu0 %935, %v911
    %v937 = vpop.permute.xlu0 %936
    %938 = vset.pattern.permute.xlu0 0
    %939 = vperm.xlu0 %938, %v912
    %v940 = vpop.permute.xlu0 %939
    %941 = vset.pattern.permute.xlu0 0
    %942 = vperm.xlu0 %941, %v913
    %v943 = vpop.permute.xlu0 %942
    %944 = vset.pattern.permute.xlu0 0
    %945 = vperm.xlu0 %944, %v914
    %v946 = vpop.permute.xlu0 %945
    %947 = vset.pattern.permute.xlu0 0
    %948 = vperm.xlu0 %947, %v915
    %v949 = vpop.permute.xlu0 %948
    %950 = vset.pattern.permute.xlu0 0
    %951 = vperm.xlu0 %950, %v916
    %v952 = vpop.permute.xlu0 %951
    %953 = vset.pattern.permute.xlu0 0
    %954 = vperm.xlu0 %953, %v917
    %v955 = vpop.permute.xlu0 %954
    %956 = vset.pattern.permute.xlu0 0
    %957 = vperm.xlu0 %956, %v918
    %v958 = vpop.permute.xlu0 %957
    %959 = vset.pattern.permute.xlu0 0
    %960 = vperm.xlu0 %959, %v919
    %v961 = vpop.permute.xlu0 %960
    %962 = vset.pattern.permute.xlu0 0
    %963 = vperm.xlu0 %962, %v920
    %v964 = vpop.permute.xlu0 %963
    %965 = vset.pattern.permute.xlu0 0
    %966 = vperm.xlu0 %965, %v921
    %v967 = vpop.permute.xlu0 %966
    %968 = vset.pattern.permute.xlu0 0
    %969 = vperm.xlu0 %968, %v922
    %v970 = vpop.permute.xlu0 %969
    %vm971 = vcmp.eq.s32.totalorder %v925, 1
    %vm972 = vcmp.eq.s32.totalorder %v928, 1
    %vm973 = vcmp.eq.s32.totalorder %v931, 1
    %vm974 = vcmp.eq.s32.totalorder %v934, 1
    %vm975 = vcmp.eq.s32.totalorder %v937, 1
    %vm976 = vcmp.eq.s32.totalorder %v940, 1
    %vm977 = vcmp.eq.s32.totalorder %v943, 1
    %vm978 = vcmp.eq.s32.totalorder %v946, 1
    %vm979 = vcmp.eq.s32.totalorder %v949, 1
    %vm980 = vcmp.eq.s32.totalorder %v952, 1
    %vm981 = vcmp.eq.s32.totalorder %v955, 1
    %vm982 = vcmp.eq.s32.totalorder %v958, 1
    %vm983 = vcmp.eq.s32.totalorder %v961, 1
    %vm984 = vcmp.eq.s32.totalorder %v964, 1
    %vm985 = vcmp.eq.s32.totalorder %v967, 1
    %vm986 = vcmp.eq.s32.totalorder %v970, 1
    %v987 = vsel %vm971, %v826, 0.0
    %v988 = vsel %vm972, %v825, 0.0
    %v989 = vsel %vm973, %v824, 0.0
    %v990 = vsel %vm974, %v823, 0.0
    %v991 = vsel %vm975, %v822, 0.0
    %v992 = vsel %vm976, %v821, 0.0
    %v993 = vsel %vm977, %v820, 0.0
    %v994 = vsel %vm978, %v819, 0.0
    %v995 = vsel %vm979, %v818, 0.0
    %v996 = vsel %vm980, %v817, 0.0
    %v997 = vsel %vm981, %v816, 0.0
    %v998 = vsel %vm982, %v815, 0.0
    %v999 = vsel %vm983, %v814, 0.0
    %v1000 = vsel %vm984, %v813, 0.0
    %v1001 = vsel %vm985, %v812, 0.0
    %v1002 = vsel %vm986, %v811, 0.0
    %v1003 = vpack.c.bf16 %v987, %v987
    %v1004 = vpack.c.bf16 %v988, %v988
    %v1005 = vpack.c.bf16 %v989, %v989
    %v1006 = vpack.c.bf16 %v990, %v990
    %v1007 = vpack.c.bf16 %v991, %v991
    %v1008 = vpack.c.bf16 %v992, %v992
    %v1009 = vpack.c.bf16 %v993, %v993
    %v1010 = vpack.c.bf16 %v994, %v994
    %v1011 = vpack.c.bf16 %v995, %v995
    %v1012 = vpack.c.bf16 %v996, %v996
    %v1013 = vpack.c.bf16 %v997, %v997
    %v1014 = vpack.c.bf16 %v998, %v998
    %v1015 = vpack.c.bf16 %v999, %v999
    %v1016 = vpack.c.bf16 %v1000, %v1000
    %v1017 = vpack.c.bf16 %v1001, %v1001
    %v1018 = vpack.c.bf16 %v1002, %v1002
    %vm1019 = vcmp.ge.s32.totalorder %v74, 0
    %vm1020 = vcmp.ge.s32.totalorder %v75, 0
    %vm1021 = vcmp.ge.s32.totalorder %v76, 0
    %vm1022 = vcmp.ge.s32.totalorder %v77, 0
    %vm1023 = vcmp.ge.s32.totalorder %v78, 0
    %vm1024 = vcmp.ge.s32.totalorder %v79, 0
    %vm1025 = vcmp.ge.s32.totalorder %v80, 0
    %vm1026 = vcmp.ge.s32.totalorder %v81, 0
    %vm1027 = vcmp.ge.s32.totalorder %v82, 0
    %vm1028 = vcmp.ge.s32.totalorder %v83, 0
    %vm1029 = vcmp.ge.s32.totalorder %v84, 0
    %vm1030 = vcmp.ge.s32.totalorder %v85, 0
    %vm1031 = vcmp.ge.s32.totalorder %v86, 0
    %vm1032 = vcmp.ge.s32.totalorder %v87, 0
    %vm1033 = vcmp.ge.s32.totalorder %v88, 0
    %vm1034 = vcmp.ge.s32.totalorder %v89, 0
    %vm1035 = vcmp.lt.s32.totalorder %v74, 8
    %vm1036 = vcmp.lt.s32.totalorder %v75, 8
    %vm1037 = vcmp.lt.s32.totalorder %v76, 8
    %vm1038 = vcmp.lt.s32.totalorder %v77, 8
    %vm1039 = vcmp.lt.s32.totalorder %v78, 8
    %vm1040 = vcmp.lt.s32.totalorder %v79, 8
    %vm1041 = vcmp.lt.s32.totalorder %v80, 8
    %vm1042 = vcmp.lt.s32.totalorder %v81, 8
    %vm1043 = vcmp.lt.s32.totalorder %v82, 8
    %vm1044 = vcmp.lt.s32.totalorder %v83, 8
    %vm1045 = vcmp.lt.s32.totalorder %v84, 8
    %vm1046 = vcmp.lt.s32.totalorder %v85, 8
    %vm1047 = vcmp.lt.s32.totalorder %v86, 8
    %vm1048 = vcmp.lt.s32.totalorder %v87, 8
    %vm1049 = vcmp.lt.s32.totalorder %v88, 8
    %vm1050 = vcmp.lt.s32.totalorder %v89, 8
    %vm1051 = vmand %vm1019, %vm1035
    %vm1052 = vmand %vm1020, %vm1036
    %vm1053 = vmand %vm1021, %vm1037
    %vm1054 = vmand %vm1022, %vm1038
    %vm1055 = vmand %vm1023, %vm1039
    %vm1056 = vmand %vm1024, %vm1040
    %vm1057 = vmand %vm1025, %vm1041
    %vm1058 = vmand %vm1026, %vm1042
    %vm1059 = vmand %vm1027, %vm1043
    %vm1060 = vmand %vm1028, %vm1044
    %vm1061 = vmand %vm1029, %vm1045
    %vm1062 = vmand %vm1030, %vm1046
    %vm1063 = vmand %vm1031, %vm1047
    %vm1064 = vmand %vm1032, %vm1048
    %vm1065 = vmand %vm1033, %vm1049
    %vm1066 = vmand %vm1034, %vm1050
    %vm1067 = vmand %vm1051, %vm442
    %vm1068 = vmand %vm1052, %vm443
    %vm1069 = vmand %vm1053, %vm444
    %vm1070 = vmand %vm1054, %vm445
    %vm1071 = vmand %vm1055, %vm446
    %vm1072 = vmand %vm1056, %vm447
    %vm1073 = vmand %vm1057, %vm448
    %vm1074 = vmand %vm1058, %vm449
    %vm1075 = vmand %vm1059, %vm450
    %vm1076 = vmand %vm1060, %vm451
    %vm1077 = vmand %vm1061, %vm452
    %vm1078 = vmand %vm1062, %vm453
    %vm1079 = vmand %vm1063, %vm454
    %vm1080 = vmand %vm1064, %vm455
    %vm1081 = vmand %vm1065, %vm456
    %vm1082 = vmand %vm1066, %vm457
    %vm1083 = vmand %vm1067, %vm474
    %vm1084 = vmand %vm1068, %vm475
    %vm1085 = vmand %vm1069, %vm476
    %vm1086 = vmand %vm1070, %vm477
    %vm1087 = vmand %vm1071, %vm478
    %vm1088 = vmand %vm1072, %vm479
    %vm1089 = vmand %vm1073, %vm480
    %vm1090 = vmand %vm1074, %vm481
    %vm1091 = vmand %vm1075, %vm482
    %vm1092 = vmand %vm1076, %vm483
    %vm1093 = vmand %vm1077, %vm484
    %vm1094 = vmand %vm1078, %vm485
    %vm1095 = vmand %vm1079, %vm486
    %vm1096 = vmand %vm1080, %vm487
    %vm1097 = vmand %vm1081, %vm488
    %vm1098 = vmand %vm1082, %vm489
    %v1099 = vsel %vm1083, 1, 0
    %v1100 = vsel %vm1084, 1, 0
    %v1101 = vsel %vm1085, 1, 0
    %v1102 = vsel %vm1086, 1, 0
    %v1103 = vsel %vm1087, 1, 0
    %v1104 = vsel %vm1088, 1, 0
    %v1105 = vsel %vm1089, 1, 0
    %v1106 = vsel %vm1090, 1, 0
    %v1107 = vsel %vm1091, 1, 0
    %v1108 = vsel %vm1092, 1, 0
    %v1109 = vsel %vm1093, 1, 0
    %v1110 = vsel %vm1094, 1, 0
    %v1111 = vsel %vm1095, 1, 0
    %v1112 = vsel %vm1096, 1, 0
    %v1113 = vsel %vm1097, 1, 0
    %v1114 = vsel %vm1098, 1, 0
    %1115 = vset.pattern.permute.xlu0 0
    %1116 = vperm.xlu0 %1115, %v1099
    %v1117 = vpop.permute.xlu0 %1116
    %1118 = vset.pattern.permute.xlu0 0
    %1119 = vperm.xlu0 %1118, %v1100
    %v1120 = vpop.permute.xlu0 %1119
    %1121 = vset.pattern.permute.xlu0 0
    %1122 = vperm.xlu0 %1121, %v1101
    %v1123 = vpop.permute.xlu0 %1122
    %1124 = vset.pattern.permute.xlu0 0
    %1125 = vperm.xlu0 %1124, %v1102
    %v1126 = vpop.permute.xlu0 %1125
    %1127 = vset.pattern.permute.xlu0 0
    %1128 = vperm.xlu0 %1127, %v1103
    %v1129 = vpop.permute.xlu0 %1128
    %1130 = vset.pattern.permute.xlu0 0
    %1131 = vperm.xlu0 %1130, %v1104
    %v1132 = vpop.permute.xlu0 %1131
    %1133 = vset.pattern.permute.xlu0 0
    %1134 = vperm.xlu0 %1133, %v1105
    %v1135 = vpop.permute.xlu0 %1134
    %1136 = vset.pattern.permute.xlu0 0
    %1137 = vperm.xlu0 %1136, %v1106
    %v1138 = vpop.permute.xlu0 %1137
    %1139 = vset.pattern.permute.xlu0 0
    %1140 = vperm.xlu0 %1139, %v1107
    %v1141 = vpop.permute.xlu0 %1140
    %1142 = vset.pattern.permute.xlu0 0
    %1143 = vperm.xlu0 %1142, %v1108
    %v1144 = vpop.permute.xlu0 %1143
    %1145 = vset.pattern.permute.xlu0 0
    %1146 = vperm.xlu0 %1145, %v1109
    %v1147 = vpop.permute.xlu0 %1146
    %1148 = vset.pattern.permute.xlu0 0
    %1149 = vperm.xlu0 %1148, %v1110
    %v1150 = vpop.permute.xlu0 %1149
    %1151 = vset.pattern.permute.xlu0 0
    %1152 = vperm.xlu0 %1151, %v1111
    %v1153 = vpop.permute.xlu0 %1152
    %1154 = vset.pattern.permute.xlu0 0
    %1155 = vperm.xlu0 %1154, %v1112
    %v1156 = vpop.permute.xlu0 %1155
    %1157 = vset.pattern.permute.xlu0 0
    %1158 = vperm.xlu0 %1157, %v1113
    %v1159 = vpop.permute.xlu0 %1158
    %1160 = vset.pattern.permute.xlu0 0
    %1161 = vperm.xlu0 %1160, %v1114
    %v1162 = vpop.permute.xlu0 %1161
    %vm1163 = vcmp.eq.s32.totalorder %v1117, 1
    %vm1164 = vcmp.eq.s32.totalorder %v1120, 1
    %vm1165 = vcmp.eq.s32.totalorder %v1123, 1
    %vm1166 = vcmp.eq.s32.totalorder %v1126, 1
    %vm1167 = vcmp.eq.s32.totalorder %v1129, 1
    %vm1168 = vcmp.eq.s32.totalorder %v1132, 1
    %vm1169 = vcmp.eq.s32.totalorder %v1135, 1
    %vm1170 = vcmp.eq.s32.totalorder %v1138, 1
    %vm1171 = vcmp.eq.s32.totalorder %v1141, 1
    %vm1172 = vcmp.eq.s32.totalorder %v1144, 1
    %vm1173 = vcmp.eq.s32.totalorder %v1147, 1
    %vm1174 = vcmp.eq.s32.totalorder %v1150, 1
    %vm1175 = vcmp.eq.s32.totalorder %v1153, 1
    %vm1176 = vcmp.eq.s32.totalorder %v1156, 1
    %vm1177 = vcmp.eq.s32.totalorder %v1159, 1
    %vm1178 = vcmp.eq.s32.totalorder %v1162, 1
    %v1179 = vsel %vm1163, %v361, 0.0
    %v1180 = vsel %vm1164, %v360, 0.0
    %v1181 = vsel %vm1165, %v359, 0.0
    %v1182 = vsel %vm1166, %v358, 0.0
    %v1183 = vsel %vm1167, %v357, 0.0
    %v1184 = vsel %vm1168, %v356, 0.0
    %v1185 = vsel %vm1169, %v355, 0.0
    %v1186 = vsel %vm1170, %v354, 0.0
    %v1187 = vsel %vm1171, %v353, 0.0
    %v1188 = vsel %vm1172, %v352, 0.0
    %v1189 = vsel %vm1173, %v351, 0.0
    %v1190 = vsel %vm1174, %v350, 0.0
    %v1191 = vsel %vm1175, %v349, 0.0
    %v1192 = vsel %vm1176, %v348, 0.0
    %v1193 = vsel %vm1177, %v347, 0.0
    %v1194 = vsel %vm1178, %v346, 0.0
    %v1195 = vpack.c.bf16 %v1179, %v1179
    %v1196 = vpack.c.bf16 %v1180, %v1180
    %v1197 = vpack.c.bf16 %v1181, %v1181
    %v1198 = vpack.c.bf16 %v1182, %v1182
    %v1199 = vpack.c.bf16 %v1183, %v1183
    %v1200 = vpack.c.bf16 %v1184, %v1184
    %v1201 = vpack.c.bf16 %v1185, %v1185
    %v1202 = vpack.c.bf16 %v1186, %v1186
    %v1203 = vpack.c.bf16 %v1187, %v1187
    %v1204 = vpack.c.bf16 %v1188, %v1188
    %v1205 = vpack.c.bf16 %v1189, %v1189
    %v1206 = vpack.c.bf16 %v1190, %v1190
    %v1207 = vpack.c.bf16 %v1191, %v1191
    %v1208 = vpack.c.bf16 %v1192, %v1192
    %v1209 = vpack.c.bf16 %v1193, %v1193
    %v1210 = vpack.c.bf16 %v1194, %v1194
    %vm1211 = vmand %vm1051, %vm618
    %vm1212 = vmand %vm1052, %vm619
    %vm1213 = vmand %vm1053, %vm620
    %vm1214 = vmand %vm1054, %vm621
    %vm1215 = vmand %vm1055, %vm622
    %vm1216 = vmand %vm1056, %vm623
    %vm1217 = vmand %vm1057, %vm624
    %vm1218 = vmand %vm1058, %vm625
    %vm1219 = vmand %vm1059, %vm626
    %vm1220 = vmand %vm1060, %vm627
    %vm1221 = vmand %vm1061, %vm628
    %vm1222 = vmand %vm1062, %vm629
    %vm1223 = vmand %vm1063, %vm630
    %vm1224 = vmand %vm1064, %vm631
    %vm1225 = vmand %vm1065, %vm632
    %vm1226 = vmand %vm1066, %vm633
    %vm1227 = vmand %vm1211, %vm650
    %vm1228 = vmand %vm1212, %vm651
    %vm1229 = vmand %vm1213, %vm652
    %vm1230 = vmand %vm1214, %vm653
    %vm1231 = vmand %vm1215, %vm654
    %vm1232 = vmand %vm1216, %vm655
    %vm1233 = vmand %vm1217, %vm656
    %vm1234 = vmand %vm1218, %vm657
    %vm1235 = vmand %vm1219, %vm658
    %vm1236 = vmand %vm1220, %vm659
    %vm1237 = vmand %vm1221, %vm660
    %vm1238 = vmand %vm1222, %vm661
    %vm1239 = vmand %vm1223, %vm662
    %vm1240 = vmand %vm1224, %vm663
    %vm1241 = vmand %vm1225, %vm664
    %vm1242 = vmand %vm1226, %vm665
    %v1243 = vsel %vm1227, 1, 0
    %v1244 = vsel %vm1228, 1, 0
    %v1245 = vsel %vm1229, 1, 0
    %v1246 = vsel %vm1230, 1, 0
    %v1247 = vsel %vm1231, 1, 0
    %v1248 = vsel %vm1232, 1, 0
    %v1249 = vsel %vm1233, 1, 0
    %v1250 = vsel %vm1234, 1, 0
    %v1251 = vsel %vm1235, 1, 0
    %v1252 = vsel %vm1236, 1, 0
    %v1253 = vsel %vm1237, 1, 0
    %v1254 = vsel %vm1238, 1, 0
    %v1255 = vsel %vm1239, 1, 0
    %v1256 = vsel %vm1240, 1, 0
    %v1257 = vsel %vm1241, 1, 0
    %v1258 = vsel %vm1242, 1, 0
    %1259 = vset.pattern.permute.xlu0 0
    %1260 = vperm.xlu0 %1259, %v1243
    %v1261 = vpop.permute.xlu0 %1260
    %1262 = vset.pattern.permute.xlu0 0
    %1263 = vperm.xlu0 %1262, %v1244
    %v1264 = vpop.permute.xlu0 %1263
    %1265 = vset.pattern.permute.xlu0 0
    %1266 = vperm.xlu0 %1265, %v1245
    %v1267 = vpop.permute.xlu0 %1266
    %1268 = vset.pattern.permute.xlu0 0
    %1269 = vperm.xlu0 %1268, %v1246
    %v1270 = vpop.permute.xlu0 %1269
    %1271 = vset.pattern.permute.xlu0 0
    %1272 = vperm.xlu0 %1271, %v1247
    %v1273 = vpop.permute.xlu0 %1272
    %1274 = vset.pattern.permute.xlu0 0
    %1275 = vperm.xlu0 %1274, %v1248
    %v1276 = vpop.permute.xlu0 %1275
    %1277 = vset.pattern.permute.xlu0 0
    %1278 = vperm.xlu0 %1277, %v1249
    %v1279 = vpop.permute.xlu0 %1278
    %1280 = vset.pattern.permute.xlu0 0
    %1281 = vperm.xlu0 %1280, %v1250
    %v1282 = vpop.permute.xlu0 %1281
    %1283 = vset.pattern.permute.xlu0 0
    %1284 = vperm.xlu0 %1283, %v1251
    %v1285 = vpop.permute.xlu0 %1284
    %1286 = vset.pattern.permute.xlu0 0
    %1287 = vperm.xlu0 %1286, %v1252
    %v1288 = vpop.permute.xlu0 %1287
    %1289 = vset.pattern.permute.xlu0 0
    %1290 = vperm.xlu0 %1289, %v1253
    %v1291 = vpop.permute.xlu0 %1290
    %1292 = vset.pattern.permute.xlu0 0
    %1293 = vperm.xlu0 %1292, %v1254
    %v1294 = vpop.permute.xlu0 %1293
    %1295 = vset.pattern.permute.xlu0 0
    %1296 = vperm.xlu0 %1295, %v1255
    %v1297 = vpop.permute.xlu0 %1296
    %1298 = vset.pattern.permute.xlu0 0
    %1299 = vperm.xlu0 %1298, %v1256
    %v1300 = vpop.permute.xlu0 %1299
    %1301 = vset.pattern.permute.xlu0 0
    %1302 = vperm.xlu0 %1301, %v1257
    %v1303 = vpop.permute.xlu0 %1302
    %1304 = vset.pattern.permute.xlu0 0
    %1305 = vperm.xlu0 %1304, %v1258
    %v1306 = vpop.permute.xlu0 %1305
    %vm1307 = vcmp.eq.s32.totalorder %v1261, 1
    %vm1308 = vcmp.eq.s32.totalorder %v1264, 1
    %vm1309 = vcmp.eq.s32.totalorder %v1267, 1
    %vm1310 = vcmp.eq.s32.totalorder %v1270, 1
    %vm1311 = vcmp.eq.s32.totalorder %v1273, 1
    %vm1312 = vcmp.eq.s32.totalorder %v1276, 1
    %vm1313 = vcmp.eq.s32.totalorder %v1279, 1
    %vm1314 = vcmp.eq.s32.totalorder %v1282, 1
    %vm1315 = vcmp.eq.s32.totalorder %v1285, 1
    %vm1316 = vcmp.eq.s32.totalorder %v1288, 1
    %vm1317 = vcmp.eq.s32.totalorder %v1291, 1
    %vm1318 = vcmp.eq.s32.totalorder %v1294, 1
    %vm1319 = vcmp.eq.s32.totalorder %v1297, 1
    %vm1320 = vcmp.eq.s32.totalorder %v1300, 1
    %vm1321 = vcmp.eq.s32.totalorder %v1303, 1
    %vm1322 = vcmp.eq.s32.totalorder %v1306, 1
    %v1323 = vsel %vm1307, %v311, 0.0
    %v1324 = vsel %vm1308, %v312, 0.0
    %v1325 = vsel %vm1309, %v313, 0.0
    %v1326 = vsel %vm1310, %v314, 0.0
    %v1327 = vsel %vm1311, %v315, 0.0
    %v1328 = vsel %vm1312, %v316, 0.0
    %v1329 = vsel %vm1313, %v317, 0.0
    %v1330 = vsel %vm1314, %v318, 0.0
    %v1331 = vsel %vm1315, %v319, 0.0
    %v1332 = vsel %vm1316, %v320, 0.0
    %v1333 = vsel %vm1317, %v321, 0.0
    %v1334 = vsel %vm1318, %v322, 0.0
    %v1335 = vsel %vm1319, %v323, 0.0
    %v1336 = vsel %vm1320, %v324, 0.0
    %v1337 = vsel %vm1321, %v325, 0.0
    %v1338 = vsel %vm1322, %v326, 0.0
    %v1339 = vpack.c.bf16 %v1323, %v1323
    %v1340 = vpack.c.bf16 %v1324, %v1324
    %v1341 = vpack.c.bf16 %v1325, %v1325
    %v1342 = vpack.c.bf16 %v1326, %v1326
    %v1343 = vpack.c.bf16 %v1327, %v1327
    %v1344 = vpack.c.bf16 %v1328, %v1328
    %v1345 = vpack.c.bf16 %v1329, %v1329
    %v1346 = vpack.c.bf16 %v1330, %v1330
    %v1347 = vpack.c.bf16 %v1331, %v1331
    %v1348 = vpack.c.bf16 %v1332, %v1332
    %v1349 = vpack.c.bf16 %v1333, %v1333
    %v1350 = vpack.c.bf16 %v1334, %v1334
    %v1351 = vpack.c.bf16 %v1335, %v1335
    %v1352 = vpack.c.bf16 %v1336, %v1336
    %v1353 = vpack.c.bf16 %v1337, %v1337
    %v1354 = vpack.c.bf16 %v1338, %v1338
    %vm1355 = vmand %vm1051, %vm843
    %vm1356 = vmand %vm1052, %vm844
    %vm1357 = vmand %vm1053, %vm845
    %vm1358 = vmand %vm1054, %vm846
    %vm1359 = vmand %vm1055, %vm847
    %vm1360 = vmand %vm1056, %vm848
    %vm1361 = vmand %vm1057, %vm849
    %vm1362 = vmand %vm1058, %vm850
    %vm1363 = vmand %vm1059, %vm851
    %vm1364 = vmand %vm1060, %vm852
    %vm1365 = vmand %vm1061, %vm853
    %vm1366 = vmand %vm1062, %vm854
    %vm1367 = vmand %vm1063, %vm855
    %vm1368 = vmand %vm1064, %vm856
    %vm1369 = vmand %vm1065, %vm857
    %vm1370 = vmand %vm1066, %vm858
    %vm1371 = vmand %vm1355, %vm875
    %vm1372 = vmand %vm1356, %vm876
    %vm1373 = vmand %vm1357, %vm877
    %vm1374 = vmand %vm1358, %vm878
    %vm1375 = vmand %vm1359, %vm879
    %vm1376 = vmand %vm1360, %vm880
    %vm1377 = vmand %vm1361, %vm881
    %vm1378 = vmand %vm1362, %vm882
    %vm1379 = vmand %vm1363, %vm883
    %vm1380 = vmand %vm1364, %vm884
    %vm1381 = vmand %vm1365, %vm885
    %vm1382 = vmand %vm1366, %vm886
    %vm1383 = vmand %vm1367, %vm887
    %vm1384 = vmand %vm1368, %vm888
    %vm1385 = vmand %vm1369, %vm889
    %vm1386 = vmand %vm1370, %vm890
    %v1387 = vsel %vm1371, 1, 0
    %v1388 = vsel %vm1372, 1, 0
    %v1389 = vsel %vm1373, 1, 0
    %v1390 = vsel %vm1374, 1, 0
    %v1391 = vsel %vm1375, 1, 0
    %v1392 = vsel %vm1376, 1, 0
    %v1393 = vsel %vm1377, 1, 0
    %v1394 = vsel %vm1378, 1, 0
    %v1395 = vsel %vm1379, 1, 0
    %v1396 = vsel %vm1380, 1, 0
    %v1397 = vsel %vm1381, 1, 0
    %v1398 = vsel %vm1382, 1, 0
    %v1399 = vsel %vm1383, 1, 0
    %v1400 = vsel %vm1384, 1, 0
    %v1401 = vsel %vm1385, 1, 0
    %v1402 = vsel %vm1386, 1, 0
    %1403 = vset.pattern.permute.xlu0 0
    %1404 = vperm.xlu0 %1403, %v1387
    %v1405 = vpop.permute.xlu0 %1404
    %1406 = vset.pattern.permute.xlu0 0
    %1407 = vperm.xlu0 %1406, %v1388
    %v1408 = vpop.permute.xlu0 %1407
    %1409 = vset.pattern.permute.xlu0 0
    %1410 = vperm.xlu0 %1409, %v1389
    %v1411 = vpop.permute.xlu0 %1410
    %1412 = vset.pattern.permute.xlu0 0
    %1413 = vperm.xlu0 %1412, %v1390
    %v1414 = vpop.permute.xlu0 %1413
    %1415 = vset.pattern.permute.xlu0 0
    %1416 = vperm.xlu0 %1415, %v1391
    %v1417 = vpop.permute.xlu0 %1416
    %1418 = vset.pattern.permute.xlu0 0
    %1419 = vperm.xlu0 %1418, %v1392
    %v1420 = vpop.permute.xlu0 %1419
    %1421 = vset.pattern.permute.xlu0 0
    %1422 = vperm.xlu0 %1421, %v1393
    %v1423 = vpop.permute.xlu0 %1422
    %1424 = vset.pattern.permute.xlu0 0
    %1425 = vperm.xlu0 %1424, %v1394
    %v1426 = vpop.permute.xlu0 %1425
    %1427 = vset.pattern.permute.xlu0 0
    %1428 = vperm.xlu0 %1427, %v1395
    %v1429 = vpop.permute.xlu0 %1428
    %1430 = vset.pattern.permute.xlu0 0
    %1431 = vperm.xlu0 %1430, %v1396
    %v1432 = vpop.permute.xlu0 %1431
    %1433 = vset.pattern.permute.xlu0 0
    %1434 = vperm.xlu0 %1433, %v1397
    %v1435 = vpop.permute.xlu0 %1434
    %1436 = vset.pattern.permute.xlu0 0
    %1437 = vperm.xlu0 %1436, %v1398
    %v1438 = vpop.permute.xlu0 %1437
    %1439 = vset.pattern.permute.xlu0 0
    %1440 = vperm.xlu0 %1439, %v1399
    %v1441 = vpop.permute.xlu0 %1440
    %1442 = vset.pattern.permute.xlu0 0
    %1443 = vperm.xlu0 %1442, %v1400
    %v1444 = vpop.permute.xlu0 %1443
    %1445 = vset.pattern.permute.xlu0 0
    %1446 = vperm.xlu0 %1445, %v1401
    %v1447 = vpop.permute.xlu0 %1446
    %1448 = vset.pattern.permute.xlu0 0
    %1449 = vperm.xlu0 %1448, %v1402
    %v1450 = vpop.permute.xlu0 %1449
    %vm1451 = vcmp.eq.s32.totalorder %v1405, 1
    %vm1452 = vcmp.eq.s32.totalorder %v1408, 1
    %vm1453 = vcmp.eq.s32.totalorder %v1411, 1
    %vm1454 = vcmp.eq.s32.totalorder %v1414, 1
    %vm1455 = vcmp.eq.s32.totalorder %v1417, 1
    %vm1456 = vcmp.eq.s32.totalorder %v1420, 1
    %vm1457 = vcmp.eq.s32.totalorder %v1423, 1
    %vm1458 = vcmp.eq.s32.totalorder %v1426, 1
    %vm1459 = vcmp.eq.s32.totalorder %v1429, 1
    %vm1460 = vcmp.eq.s32.totalorder %v1432, 1
    %vm1461 = vcmp.eq.s32.totalorder %v1435, 1
    %vm1462 = vcmp.eq.s32.totalorder %v1438, 1
    %vm1463 = vcmp.eq.s32.totalorder %v1441, 1
    %vm1464 = vcmp.eq.s32.totalorder %v1444, 1
    %vm1465 = vcmp.eq.s32.totalorder %v1447, 1
    %vm1466 = vcmp.eq.s32.totalorder %v1450, 1
    %v1467 = vsel %vm1451, %v825, 0.0
    %v1468 = vsel %vm1452, %v824, 0.0
    %v1469 = vsel %vm1453, %v823, 0.0
    %v1470 = vsel %vm1454, %v822, 0.0
    %v1471 = vsel %vm1455, %v821, 0.0
    %v1472 = vsel %vm1456, %v820, 0.0
    %v1473 = vsel %vm1457, %v819, 0.0
    %v1474 = vsel %vm1458, %v818, 0.0
    %v1475 = vsel %vm1459, %v817, 0.0
    %v1476 = vsel %vm1460, %v816, 0.0
    %v1477 = vsel %vm1461, %v815, 0.0
    %v1478 = vsel %vm1462, %v814, 0.0
    %v1479 = vsel %vm1463, %v813, 0.0
    %v1480 = vsel %vm1464, %v812, 0.0
    %v1481 = vsel %vm1465, %v811, 0.0
    %v1482 = vsel %vm1466, %v826, 0.0
    %v1483 = vpack.c.bf16 %v1467, %v1467
    %v1484 = vpack.c.bf16 %v1468, %v1468
    %v1485 = vpack.c.bf16 %v1469, %v1469
    %v1486 = vpack.c.bf16 %v1470, %v1470
    %v1487 = vpack.c.bf16 %v1471, %v1471
    %v1488 = vpack.c.bf16 %v1472, %v1472
    %v1489 = vpack.c.bf16 %v1473, %v1473
    %v1490 = vpack.c.bf16 %v1474, %v1474
    %v1491 = vpack.c.bf16 %v1475, %v1475
    %v1492 = vpack.c.bf16 %v1476, %v1476
    %v1493 = vpack.c.bf16 %v1477, %v1477
    %v1494 = vpack.c.bf16 %v1478, %v1478
    %v1495 = vpack.c.bf16 %v1479, %v1479
    %v1496 = vpack.c.bf16 %v1480, %v1480
    %v1497 = vpack.c.bf16 %v1481, %v1481
    %v1498 = vpack.c.bf16 %v1482, %v1482
    %v1499 = vadd.s32 %v74, 1
    %v1500 = vadd.s32 %v75, 1
    %v1501 = vadd.s32 %v76, 1
    %v1502 = vadd.s32 %v77, 1
    %v1503 = vadd.s32 %v78, 1
    %v1504 = vadd.s32 %v79, 1
    %v1505 = vadd.s32 %v80, 1
    %v1506 = vadd.s32 %v81, 1
    %v1507 = vadd.s32 %v82, 1
    %v1508 = vadd.s32 %v83, 1
    %v1509 = vadd.s32 %v84, 1
    %v1510 = vadd.s32 %v85, 1
    %v1511 = vadd.s32 %v86, 1
    %v1512 = vadd.s32 %v87, 1
    %v1513 = vadd.s32 %v88, 1
    %v1514 = vadd.s32 %v89, 1
    %vm1515 = vcmp.ge.s32.totalorder %v1499, 0
    %vm1516 = vcmp.ge.s32.totalorder %v1500, 0
    %vm1517 = vcmp.ge.s32.totalorder %v1501, 0
    %vm1518 = vcmp.ge.s32.totalorder %v1502, 0
    %vm1519 = vcmp.ge.s32.totalorder %v1503, 0
    %vm1520 = vcmp.ge.s32.totalorder %v1504, 0
    %vm1521 = vcmp.ge.s32.totalorder %v1505, 0
    %vm1522 = vcmp.ge.s32.totalorder %v1506, 0
    %vm1523 = vcmp.ge.s32.totalorder %v1507, 0
    %vm1524 = vcmp.ge.s32.totalorder %v1508, 0
    %vm1525 = vcmp.ge.s32.totalorder %v1509, 0
    %vm1526 = vcmp.ge.s32.totalorder %v1510, 0
    %vm1527 = vcmp.ge.s32.totalorder %v1511, 0
    %vm1528 = vcmp.ge.s32.totalorder %v1512, 0
    %vm1529 = vcmp.ge.s32.totalorder %v1513, 0
    %vm1530 = vcmp.ge.s32.totalorder %v1514, 0
    %vm1531 = vcmp.lt.s32.totalorder %v1499, 8
    %vm1532 = vcmp.lt.s32.totalorder %v1500, 8
    %vm1533 = vcmp.lt.s32.totalorder %v1501, 8
    %vm1534 = vcmp.lt.s32.totalorder %v1502, 8
    %vm1535 = vcmp.lt.s32.totalorder %v1503, 8
    %vm1536 = vcmp.lt.s32.totalorder %v1504, 8
    %vm1537 = vcmp.lt.s32.totalorder %v1505, 8
    %vm1538 = vcmp.lt.s32.totalorder %v1506, 8
    %vm1539 = vcmp.lt.s32.totalorder %v1507, 8
    %vm1540 = vcmp.lt.s32.totalorder %v1508, 8
    %vm1541 = vcmp.lt.s32.totalorder %v1509, 8
    %vm1542 = vcmp.lt.s32.totalorder %v1510, 8
    %vm1543 = vcmp.lt.s32.totalorder %v1511, 8
    %vm1544 = vcmp.lt.s32.totalorder %v1512, 8
    %vm1545 = vcmp.lt.s32.totalorder %v1513, 8
    %vm1546 = vcmp.lt.s32.totalorder %v1514, 8
    %vm1547 = vmand %vm1515, %vm1531
    %vm1548 = vmand %vm1516, %vm1532
    %vm1549 = vmand %vm1517, %vm1533
    %vm1550 = vmand %vm1518, %vm1534
    %vm1551 = vmand %vm1519, %vm1535
    %vm1552 = vmand %vm1520, %vm1536
    %vm1553 = vmand %vm1521, %vm1537
    %vm1554 = vmand %vm1522, %vm1538
    %vm1555 = vmand %vm1523, %vm1539
    %vm1556 = vmand %vm1524, %vm1540
    %vm1557 = vmand %vm1525, %vm1541
    %vm1558 = vmand %vm1526, %vm1542
    %vm1559 = vmand %vm1527, %vm1543
    %vm1560 = vmand %vm1528, %vm1544
    %vm1561 = vmand %vm1529, %vm1545
    %vm1562 = vmand %vm1530, %vm1546
    %vm1563 = vmand %vm1547, %vm442
    %vm1564 = vmand %vm1548, %vm443
    %vm1565 = vmand %vm1549, %vm444
    %vm1566 = vmand %vm1550, %vm445
    %vm1567 = vmand %vm1551, %vm446
    %vm1568 = vmand %vm1552, %vm447
    %vm1569 = vmand %vm1553, %vm448
    %vm1570 = vmand %vm1554, %vm449
    %vm1571 = vmand %vm1555, %vm450
    %vm1572 = vmand %vm1556, %vm451
    %vm1573 = vmand %vm1557, %vm452
    %vm1574 = vmand %vm1558, %vm453
    %vm1575 = vmand %vm1559, %vm454
    %vm1576 = vmand %vm1560, %vm455
    %vm1577 = vmand %vm1561, %vm456
    %vm1578 = vmand %vm1562, %vm457
    %vm1579 = vmand %vm1563, %vm474
    %vm1580 = vmand %vm1564, %vm475
    %vm1581 = vmand %vm1565, %vm476
    %vm1582 = vmand %vm1566, %vm477
    %vm1583 = vmand %vm1567, %vm478
    %vm1584 = vmand %vm1568, %vm479
    %vm1585 = vmand %vm1569, %vm480
    %vm1586 = vmand %vm1570, %vm481
    %vm1587 = vmand %vm1571, %vm482
    %vm1588 = vmand %vm1572, %vm483
    %vm1589 = vmand %vm1573, %vm484
    %vm1590 = vmand %vm1574, %vm485
    %vm1591 = vmand %vm1575, %vm486
    %vm1592 = vmand %vm1576, %vm487
    %vm1593 = vmand %vm1577, %vm488
    %vm1594 = vmand %vm1578, %vm489
    %v1595 = vsel %vm1579, 1, 0
    %v1596 = vsel %vm1580, 1, 0
    %v1597 = vsel %vm1581, 1, 0
    %v1598 = vsel %vm1582, 1, 0
    %v1599 = vsel %vm1583, 1, 0
    %v1600 = vsel %vm1584, 1, 0
    %v1601 = vsel %vm1585, 1, 0
    %v1602 = vsel %vm1586, 1, 0
    %v1603 = vsel %vm1587, 1, 0
    %v1604 = vsel %vm1588, 1, 0
    %v1605 = vsel %vm1589, 1, 0
    %v1606 = vsel %vm1590, 1, 0
    %v1607 = vsel %vm1591, 1, 0
    %v1608 = vsel %vm1592, 1, 0
    %v1609 = vsel %vm1593, 1, 0
    %v1610 = vsel %vm1594, 1, 0
    %1611 = vset.pattern.permute.xlu0 0
    %1612 = vperm.xlu0 %1611, %v1595
    %v1613 = vpop.permute.xlu0 %1612
    %1614 = vset.pattern.permute.xlu0 0
    %1615 = vperm.xlu0 %1614, %v1596
    %v1616 = vpop.permute.xlu0 %1615
    %1617 = vset.pattern.permute.xlu0 0
    %1618 = vperm.xlu0 %1617, %v1597
    %v1619 = vpop.permute.xlu0 %1618
    %1620 = vset.pattern.permute.xlu0 0
    %1621 = vperm.xlu0 %1620, %v1598
    %v1622 = vpop.permute.xlu0 %1621
    %1623 = vset.pattern.permute.xlu0 0
    %1624 = vperm.xlu0 %1623, %v1599
    %v1625 = vpop.permute.xlu0 %1624
    %1626 = vset.pattern.permute.xlu0 0
    %1627 = vperm.xlu0 %1626, %v1600
    %v1628 = vpop.permute.xlu0 %1627
    %1629 = vset.pattern.permute.xlu0 0
    %1630 = vperm.xlu0 %1629, %v1601
    %v1631 = vpop.permute.xlu0 %1630
    %1632 = vset.pattern.permute.xlu0 0
    %1633 = vperm.xlu0 %1632, %v1602
    %v1634 = vpop.permute.xlu0 %1633
    %1635 = vset.pattern.permute.xlu0 0
    %1636 = vperm.xlu0 %1635, %v1603
    %v1637 = vpop.permute.xlu0 %1636
    %1638 = vset.pattern.permute.xlu0 0
    %1639 = vperm.xlu0 %1638, %v1604
    %v1640 = vpop.permute.xlu0 %1639
    %1641 = vset.pattern.permute.xlu0 0
    %1642 = vperm.xlu0 %1641, %v1605
    %v1643 = vpop.permute.xlu0 %1642
    %1644 = vset.pattern.permute.xlu0 0
    %1645 = vperm.xlu0 %1644, %v1606
    %v1646 = vpop.permute.xlu0 %1645
    %1647 = vset.pattern.permute.xlu0 0
    %1648 = vperm.xlu0 %1647, %v1607
    %v1649 = vpop.permute.xlu0 %1648
    %1650 = vset.pattern.permute.xlu0 0
    %1651 = vperm.xlu0 %1650, %v1608
    %v1652 = vpop.permute.xlu0 %1651
    %1653 = vset.pattern.permute.xlu0 0
    %1654 = vperm.xlu0 %1653, %v1609
    %v1655 = vpop.permute.xlu0 %1654
    %1656 = vset.pattern.permute.xlu0 0
    %1657 = vperm.xlu0 %1656, %v1610
    %v1658 = vpop.permute.xlu0 %1657
    %vm1659 = vcmp.eq.s32.totalorder %v1613, 1
    %vm1660 = vcmp.eq.s32.totalorder %v1616, 1
    %vm1661 = vcmp.eq.s32.totalorder %v1619, 1
    %vm1662 = vcmp.eq.s32.totalorder %v1622, 1
    %vm1663 = vcmp.eq.s32.totalorder %v1625, 1
    %vm1664 = vcmp.eq.s32.totalorder %v1628, 1
    %vm1665 = vcmp.eq.s32.totalorder %v1631, 1
    %vm1666 = vcmp.eq.s32.totalorder %v1634, 1
    %vm1667 = vcmp.eq.s32.totalorder %v1637, 1
    %vm1668 = vcmp.eq.s32.totalorder %v1640, 1
    %vm1669 = vcmp.eq.s32.totalorder %v1643, 1
    %vm1670 = vcmp.eq.s32.totalorder %v1646, 1
    %vm1671 = vcmp.eq.s32.totalorder %v1649, 1
    %vm1672 = vcmp.eq.s32.totalorder %v1652, 1
    %vm1673 = vcmp.eq.s32.totalorder %v1655, 1
    %vm1674 = vcmp.eq.s32.totalorder %v1658, 1
    %v1675 = vsel %vm1659, %v360, 0.0
    %v1676 = vsel %vm1660, %v359, 0.0
    %v1677 = vsel %vm1661, %v358, 0.0
    %v1678 = vsel %vm1662, %v357, 0.0
    %v1679 = vsel %vm1663, %v356, 0.0
    %v1680 = vsel %vm1664, %v355, 0.0
    %v1681 = vsel %vm1665, %v354, 0.0
    %v1682 = vsel %vm1666, %v353, 0.0
    %v1683 = vsel %vm1667, %v352, 0.0
    %v1684 = vsel %vm1668, %v351, 0.0
    %v1685 = vsel %vm1669, %v350, 0.0
    %v1686 = vsel %vm1670, %v349, 0.0
    %v1687 = vsel %vm1671, %v348, 0.0
    %v1688 = vsel %vm1672, %v347, 0.0
    %v1689 = vsel %vm1673, %v346, 0.0
    %v1690 = vsel %vm1674, %v361, 0.0
    %v1691 = vpack.c.bf16 %v1675, %v1675
    %v1692 = vpack.c.bf16 %v1676, %v1676
    %v1693 = vpack.c.bf16 %v1677, %v1677
    %v1694 = vpack.c.bf16 %v1678, %v1678
    %v1695 = vpack.c.bf16 %v1679, %v1679
    %v1696 = vpack.c.bf16 %v1680, %v1680
    %v1697 = vpack.c.bf16 %v1681, %v1681
    %v1698 = vpack.c.bf16 %v1682, %v1682
    %v1699 = vpack.c.bf16 %v1683, %v1683
    %v1700 = vpack.c.bf16 %v1684, %v1684
    %v1701 = vpack.c.bf16 %v1685, %v1685
    %v1702 = vpack.c.bf16 %v1686, %v1686
    %v1703 = vpack.c.bf16 %v1687, %v1687
    %v1704 = vpack.c.bf16 %v1688, %v1688
    %v1705 = vpack.c.bf16 %v1689, %v1689
    %v1706 = vpack.c.bf16 %v1690, %v1690
    %vm1707 = vmand %vm1547, %vm618
    %vm1708 = vmand %vm1548, %vm619
    %vm1709 = vmand %vm1549, %vm620
    %vm1710 = vmand %vm1550, %vm621
    %vm1711 = vmand %vm1551, %vm622
    %vm1712 = vmand %vm1552, %vm623
    %vm1713 = vmand %vm1553, %vm624
    %vm1714 = vmand %vm1554, %vm625
    %vm1715 = vmand %vm1555, %vm626
    %vm1716 = vmand %vm1556, %vm627
    %vm1717 = vmand %vm1557, %vm628
    %vm1718 = vmand %vm1558, %vm629
    %vm1719 = vmand %vm1559, %vm630
    %vm1720 = vmand %vm1560, %vm631
    %vm1721 = vmand %vm1561, %vm632
    %vm1722 = vmand %vm1562, %vm633
    %vm1723 = vmand %vm1707, %vm650
    %vm1724 = vmand %vm1708, %vm651
    %vm1725 = vmand %vm1709, %vm652
    %vm1726 = vmand %vm1710, %vm653
    %vm1727 = vmand %vm1711, %vm654
    %vm1728 = vmand %vm1712, %vm655
    %vm1729 = vmand %vm1713, %vm656
    %vm1730 = vmand %vm1714, %vm657
    %vm1731 = vmand %vm1715, %vm658
    %vm1732 = vmand %vm1716, %vm659
    %vm1733 = vmand %vm1717, %vm660
    %vm1734 = vmand %vm1718, %vm661
    %vm1735 = vmand %vm1719, %vm662
    %vm1736 = vmand %vm1720, %vm663
    %vm1737 = vmand %vm1721, %vm664
    %vm1738 = vmand %vm1722, %vm665
    %v1739 = vsel %vm1723, 1, 0
    %v1740 = vsel %vm1724, 1, 0
    %v1741 = vsel %vm1725, 1, 0
    %v1742 = vsel %vm1726, 1, 0
    %v1743 = vsel %vm1727, 1, 0
    %v1744 = vsel %vm1728, 1, 0
    %v1745 = vsel %vm1729, 1, 0
    %v1746 = vsel %vm1730, 1, 0
    %v1747 = vsel %vm1731, 1, 0
    %v1748 = vsel %vm1732, 1, 0
    %v1749 = vsel %vm1733, 1, 0
    %v1750 = vsel %vm1734, 1, 0
    %v1751 = vsel %vm1735, 1, 0
    %v1752 = vsel %vm1736, 1, 0
    %v1753 = vsel %vm1737, 1, 0
    %v1754 = vsel %vm1738, 1, 0
    %1755 = vset.pattern.permute.xlu0 0
    %1756 = vperm.xlu0 %1755, %v1739
    %v1757 = vpop.permute.xlu0 %1756
    %1758 = vset.pattern.permute.xlu0 0
    %1759 = vperm.xlu0 %1758, %v1740
    %v1760 = vpop.permute.xlu0 %1759
    %1761 = vset.pattern.permute.xlu0 0
    %1762 = vperm.xlu0 %1761, %v1741
    %v1763 = vpop.permute.xlu0 %1762
    %1764 = vset.pattern.permute.xlu0 0
    %1765 = vperm.xlu0 %1764, %v1742
    %v1766 = vpop.permute.xlu0 %1765
    %1767 = vset.pattern.permute.xlu0 0
    %1768 = vperm.xlu0 %1767, %v1743
    %v1769 = vpop.permute.xlu0 %1768
    %1770 = vset.pattern.permute.xlu0 0
    %1771 = vperm.xlu0 %1770, %v1744
    %v1772 = vpop.permute.xlu0 %1771
    %1773 = vset.pattern.permute.xlu0 0
    %1774 = vperm.xlu0 %1773, %v1745
    %v1775 = vpop.permute.xlu0 %1774
    %1776 = vset.pattern.permute.xlu0 0
    %1777 = vperm.xlu0 %1776, %v1746
    %v1778 = vpop.permute.xlu0 %1777
    %1779 = vset.pattern.permute.xlu0 0
    %1780 = vperm.xlu0 %1779, %v1747
    %v1781 = vpop.permute.xlu0 %1780
    %1782 = vset.pattern.permute.xlu0 0
    %1783 = vperm.xlu0 %1782, %v1748
    %v1784 = vpop.permute.xlu0 %1783
    %1785 = vset.pattern.permute.xlu0 0
    %1786 = vperm.xlu0 %1785, %v1749
    %v1787 = vpop.permute.xlu0 %1786
    %1788 = vset.pattern.permute.xlu0 0
    %1789 = vperm.xlu0 %1788, %v1750
    %v1790 = vpop.permute.xlu0 %1789
    %1791 = vset.pattern.permute.xlu0 0
    %1792 = vperm.xlu0 %1791, %v1751
    %v1793 = vpop.permute.xlu0 %1792
    %1794 = vset.pattern.permute.xlu0 0
    %1795 = vperm.xlu0 %1794, %v1752
    %v1796 = vpop.permute.xlu0 %1795
    %1797 = vset.pattern.permute.xlu0 0
    %1798 = vperm.xlu0 %1797, %v1753
    %v1799 = vpop.permute.xlu0 %1798
    %1800 = vset.pattern.permute.xlu0 0
    %1801 = vperm.xlu0 %1800, %v1754
    %v1802 = vpop.permute.xlu0 %1801
    %vm1803 = vcmp.eq.s32.totalorder %v1757, 1
    %vm1804 = vcmp.eq.s32.totalorder %v1760, 1
    %vm1805 = vcmp.eq.s32.totalorder %v1763, 1
    %vm1806 = vcmp.eq.s32.totalorder %v1766, 1
    %vm1807 = vcmp.eq.s32.totalorder %v1769, 1
    %vm1808 = vcmp.eq.s32.totalorder %v1772, 1
    %vm1809 = vcmp.eq.s32.totalorder %v1775, 1
    %vm1810 = vcmp.eq.s32.totalorder %v1778, 1
    %vm1811 = vcmp.eq.s32.totalorder %v1781, 1
    %vm1812 = vcmp.eq.s32.totalorder %v1784, 1
    %vm1813 = vcmp.eq.s32.totalorder %v1787, 1
    %vm1814 = vcmp.eq.s32.totalorder %v1790, 1
    %vm1815 = vcmp.eq.s32.totalorder %v1793, 1
    %vm1816 = vcmp.eq.s32.totalorder %v1796, 1
    %vm1817 = vcmp.eq.s32.totalorder %v1799, 1
    %vm1818 = vcmp.eq.s32.totalorder %v1802, 1
    %v1819 = vsel %vm1803, %v312, 0.0
    %v1820 = vsel %vm1804, %v313, 0.0
    %v1821 = vsel %vm1805, %v314, 0.0
    %v1822 = vsel %vm1806, %v315, 0.0
    %v1823 = vsel %vm1807, %v316, 0.0
    %v1824 = vsel %vm1808, %v317, 0.0
    %v1825 = vsel %vm1809, %v318, 0.0
    %v1826 = vsel %vm1810, %v319, 0.0
    %v1827 = vsel %vm1811, %v320, 0.0
    %v1828 = vsel %vm1812, %v321, 0.0
    %v1829 = vsel %vm1813, %v322, 0.0
    %v1830 = vsel %vm1814, %v323, 0.0
    %v1831 = vsel %vm1815, %v324, 0.0
    %v1832 = vsel %vm1816, %v325, 0.0
    %v1833 = vsel %vm1817, %v326, 0.0
    %v1834 = vsel %vm1818, %v311, 0.0
    %v1835 = vpack.c.bf16 %v1819, %v1819
    %v1836 = vpack.c.bf16 %v1820, %v1820
    %v1837 = vpack.c.bf16 %v1821, %v1821
    %v1838 = vpack.c.bf16 %v1822, %v1822
    %v1839 = vpack.c.bf16 %v1823, %v1823
    %v1840 = vpack.c.bf16 %v1824, %v1824
    %v1841 = vpack.c.bf16 %v1825, %v1825
    %v1842 = vpack.c.bf16 %v1826, %v1826
    %v1843 = vpack.c.bf16 %v1827, %v1827
    %v1844 = vpack.c.bf16 %v1828, %v1828
    %v1845 = vpack.c.bf16 %v1829, %v1829
    %v1846 = vpack.c.bf16 %v1830, %v1830
    %v1847 = vpack.c.bf16 %v1831, %v1831
    %v1848 = vpack.c.bf16 %v1832, %v1832
    %v1849 = vpack.c.bf16 %v1833, %v1833
    %v1850 = vpack.c.bf16 %v1834, %v1834
    %vm1851 = vmand %vm1547, %vm843
    %vm1852 = vmand %vm1548, %vm844
    %vm1853 = vmand %vm1549, %vm845
    %vm1854 = vmand %vm1550, %vm846
    %vm1855 = vmand %vm1551, %vm847
    %vm1856 = vmand %vm1552, %vm848
    %vm1857 = vmand %vm1553, %vm849
    %vm1858 = vmand %vm1554, %vm850
    %vm1859 = vmand %vm1555, %vm851
    %vm1860 = vmand %vm1556, %vm852
    %vm1861 = vmand %vm1557, %vm853
    %vm1862 = vmand %vm1558, %vm854
    %vm1863 = vmand %vm1559, %vm855
    %vm1864 = vmand %vm1560, %vm856
    %vm1865 = vmand %vm1561, %vm857
    %vm1866 = vmand %vm1562, %vm858
    %vm1867 = vmand %vm1851, %vm875
    %vm1868 = vmand %vm1852, %vm876
    %vm1869 = vmand %vm1853, %vm877
    %vm1870 = vmand %vm1854, %vm878
    %vm1871 = vmand %vm1855, %vm879
    %vm1872 = vmand %vm1856, %vm880
    %vm1873 = vmand %vm1857, %vm881
    %vm1874 = vmand %vm1858, %vm882
    %vm1875 = vmand %vm1859, %vm883
    %vm1876 = vmand %vm1860, %vm884
    %vm1877 = vmand %vm1861, %vm885
    %vm1878 = vmand %vm1862, %vm886
    %vm1879 = vmand %vm1863, %vm887
    %vm1880 = vmand %vm1864, %vm888
    %vm1881 = vmand %vm1865, %vm889
    %vm1882 = vmand %vm1866, %vm890
    %v1883 = vsel %vm1867, 1, 0
    %v1884 = vsel %vm1868, 1, 0
    %v1885 = vsel %vm1869, 1, 0
    %v1886 = vsel %vm1870, 1, 0
    %v1887 = vsel %vm1871, 1, 0
    %v1888 = vsel %vm1872, 1, 0
    %v1889 = vsel %vm1873, 1, 0
    %v1890 = vsel %vm1874, 1, 0
    %v1891 = vsel %vm1875, 1, 0
    %v1892 = vsel %vm1876, 1, 0
    %v1893 = vsel %vm1877, 1, 0
    %v1894 = vsel %vm1878, 1, 0
    %v1895 = vsel %vm1879, 1, 0
    %v1896 = vsel %vm1880, 1, 0
    %v1897 = vsel %vm1881, 1, 0
    %v1898 = vsel %vm1882, 1, 0
    %1899 = vset.pattern.permute.xlu0 0
    %1900 = vperm.xlu0 %1899, %v1883
    %v1901 = vpop.permute.xlu0 %1900
    %1902 = vset.pattern.permute.xlu0 0
    %1903 = vperm.xlu0 %1902, %v1884
    %v1904 = vpop.permute.xlu0 %1903
    %1905 = vset.pattern.permute.xlu0 0
    %1906 = vperm.xlu0 %1905, %v1885
    %v1907 = vpop.permute.xlu0 %1906
    %1908 = vset.pattern.permute.xlu0 0
    %1909 = vperm.xlu0 %1908, %v1886
    %v1910 = vpop.permute.xlu0 %1909
    %1911 = vset.pattern.permute.xlu0 0
    %1912 = vperm.xlu0 %1911, %v1887
    %v1913 = vpop.permute.xlu0 %1912
    %1914 = vset.pattern.permute.xlu0 0
    %1915 = vperm.xlu0 %1914, %v1888
    %v1916 = vpop.permute.xlu0 %1915
    %1917 = vset.pattern.permute.xlu0 0
    %1918 = vperm.xlu0 %1917, %v1889
    %v1919 = vpop.permute.xlu0 %1918
    %1920 = vset.pattern.permute.xlu0 0
    %1921 = vperm.xlu0 %1920, %v1890
    %v1922 = vpop.permute.xlu0 %1921
    %1923 = vset.pattern.permute.xlu0 0
    %1924 = vperm.xlu0 %1923, %v1891
    %v1925 = vpop.permute.xlu0 %1924
    %1926 = vset.pattern.permute.xlu0 0
    %1927 = vperm.xlu0 %1926, %v1892
    %v1928 = vpop.permute.xlu0 %1927
    %1929 = vset.pattern.permute.xlu0 0
    %1930 = vperm.xlu0 %1929, %v1893
    %v1931 = vpop.permute.xlu0 %1930
    %1932 = vset.pattern.permute.xlu0 0
    %1933 = vperm.xlu0 %1932, %v1894
    %v1934 = vpop.permute.xlu0 %1933
    %1935 = vset.pattern.permute.xlu0 0
    %1936 = vperm.xlu0 %1935, %v1895
    %v1937 = vpop.permute.xlu0 %1936
    %1938 = vset.pattern.permute.xlu0 0
    %1939 = vperm.xlu0 %1938, %v1896
    %v1940 = vpop.permute.xlu0 %1939
    %1941 = vset.pattern.permute.xlu0 0
    %1942 = vperm.xlu0 %1941, %v1897
    %v1943 = vpop.permute.xlu0 %1942
    %1944 = vset.pattern.permute.xlu0 0
    %1945 = vperm.xlu0 %1944, %v1898
    %v1946 = vpop.permute.xlu0 %1945
    %vm1947 = vcmp.eq.s32.totalorder %v1901, 1
    %vm1948 = vcmp.eq.s32.totalorder %v1904, 1
    %vm1949 = vcmp.eq.s32.totalorder %v1907, 1
    %vm1950 = vcmp.eq.s32.totalorder %v1910, 1
    %vm1951 = vcmp.eq.s32.totalorder %v1913, 1
    %vm1952 = vcmp.eq.s32.totalorder %v1916, 1
    %vm1953 = vcmp.eq.s32.totalorder %v1919, 1
    %vm1954 = vcmp.eq.s32.totalorder %v1922, 1
    %vm1955 = vcmp.eq.s32.totalorder %v1925, 1
    %vm1956 = vcmp.eq.s32.totalorder %v1928, 1
    %vm1957 = vcmp.eq.s32.totalorder %v1931, 1
    %vm1958 = vcmp.eq.s32.totalorder %v1934, 1
    %vm1959 = vcmp.eq.s32.totalorder %v1937, 1
    %vm1960 = vcmp.eq.s32.totalorder %v1940, 1
    %vm1961 = vcmp.eq.s32.totalorder %v1943, 1
    %vm1962 = vcmp.eq.s32.totalorder %v1946, 1
    %v1963 = vsel %vm1947, %v824, 0.0
    %v1964 = vsel %vm1948, %v823, 0.0
    %v1965 = vsel %vm1949, %v822, 0.0
    %v1966 = vsel %vm1950, %v821, 0.0
    %v1967 = vsel %vm1951, %v820, 0.0
    %v1968 = vsel %vm1952, %v819, 0.0
    %v1969 = vsel %vm1953, %v818, 0.0
    %v1970 = vsel %vm1954, %v817, 0.0
    %v1971 = vsel %vm1955, %v816, 0.0
    %v1972 = vsel %vm1956, %v815, 0.0
    %v1973 = vsel %vm1957, %v814, 0.0
    %v1974 = vsel %vm1958, %v813, 0.0
    %v1975 = vsel %vm1959, %v812, 0.0
    %v1976 = vsel %vm1960, %v811, 0.0
    %v1977 = vsel %vm1961, %v826, 0.0
    %v1978 = vsel %vm1962, %v825, 0.0
    %v1979 = vpack.c.bf16 %v1963, %v1963
    %v1980 = vpack.c.bf16 %v1964, %v1964
    %v1981 = vpack.c.bf16 %v1965, %v1965
    %v1982 = vpack.c.bf16 %v1966, %v1966
    %v1983 = vpack.c.bf16 %v1967, %v1967
    %v1984 = vpack.c.bf16 %v1968, %v1968
    %v1985 = vpack.c.bf16 %v1969, %v1969
    %v1986 = vpack.c.bf16 %v1970, %v1970
    %v1987 = vpack.c.bf16 %v1971, %v1971
    %v1988 = vpack.c.bf16 %v1972, %v1972
    %v1989 = vpack.c.bf16 %v1973, %v1973
    %v1990 = vpack.c.bf16 %v1974, %v1974
    %v1991 = vpack.c.bf16 %v1975, %v1975
    %v1992 = vpack.c.bf16 %v1976, %v1976
    %v1993 = vpack.c.bf16 %v1977, %v1977
    %v1994 = vpack.c.bf16 %v1978, %v1978
    %v2011 = vunpack.c.l.b16 %v602
    %v2012 = vunpack.c.l.b16 %v603
    %v2013 = vunpack.c.l.b16 %v604
    %v2014 = vunpack.c.l.b16 %v605
    %v2015 = vunpack.c.l.b16 %v606
    %v2016 = vunpack.c.l.b16 %v607
    %v2017 = vunpack.c.l.b16 %v608
    %v2018 = vunpack.c.l.b16 %v609
    %v2019 = vunpack.c.l.b16 %v610
    %v2020 = vunpack.c.l.b16 %v611
    %v2021 = vunpack.c.l.b16 %v612
    %v2022 = vunpack.c.l.b16 %v613
    %v2023 = vunpack.c.l.b16 %v614
    %v2024 = vunpack.c.l.b16 %v615
    %v2025 = vunpack.c.l.b16 %v616
    %v2026 = vunpack.c.l.b16 %v617
    %v2027 = vpack.c.b16 %v2012, %v2011
    %v2028 = vpack.c.b16 %v2014, %v2013
    %v2029 = vpack.c.b16 %v2016, %v2015
    %v2030 = vpack.c.b16 %v2018, %v2017
    %v2031 = vpack.c.b16 %v2020, %v2019
    %v2032 = vpack.c.b16 %v2022, %v2021
    %v2033 = vpack.c.b16 %v2024, %v2023
    %v2034 = vpack.c.b16 %v2026, %v2025
    %v2059 = vunpack.c.l.b16 %v778
    %v2060 = vunpack.c.l.b16 %v779
    %v2061 = vunpack.c.l.b16 %v780
    %v2062 = vunpack.c.l.b16 %v781
    %v2063 = vunpack.c.l.b16 %v782
    %v2064 = vunpack.c.l.b16 %v783
    %v2065 = vunpack.c.l.b16 %v784
    %v2066 = vunpack.c.l.b16 %v785
    %v2067 = vunpack.c.l.b16 %v786
    %v2068 = vunpack.c.l.b16 %v787
    %v2069 = vunpack.c.l.b16 %v788
    %v2070 = vunpack.c.l.b16 %v789
    %v2071 = vunpack.c.l.b16 %v790
    %v2072 = vunpack.c.l.b16 %v791
    %v2073 = vunpack.c.l.b16 %v792
    %v2074 = vunpack.c.l.b16 %v793
    %v2075 = vpack.c.b16 %v2060, %v2059
    %v2076 = vpack.c.b16 %v2062, %v2061
    %v2077 = vpack.c.b16 %v2064, %v2063
    %v2078 = vpack.c.b16 %v2066, %v2065
    %v2079 = vpack.c.b16 %v2068, %v2067
    %v2080 = vpack.c.b16 %v2070, %v2069
    %v2081 = vpack.c.b16 %v2072, %v2071
    %v2082 = vpack.c.b16 %v2074, %v2073
    %v2107 = vunpack.c.l.b16 %v1003
    %v2108 = vunpack.c.l.b16 %v1004
    %v2109 = vunpack.c.l.b16 %v1005
    %v2110 = vunpack.c.l.b16 %v1006
    %v2111 = vunpack.c.l.b16 %v1007
    %v2112 = vunpack.c.l.b16 %v1008
    %v2113 = vunpack.c.l.b16 %v1009
    %v2114 = vunpack.c.l.b16 %v1010
    %v2115 = vunpack.c.l.b16 %v1011
    %v2116 = vunpack.c.l.b16 %v1012
    %v2117 = vunpack.c.l.b16 %v1013
    %v2118 = vunpack.c.l.b16 %v1014
    %v2119 = vunpack.c.l.b16 %v1015
    %v2120 = vunpack.c.l.b16 %v1016
    %v2121 = vunpack.c.l.b16 %v1017
    %v2122 = vunpack.c.l.b16 %v1018
    %v2123 = vpack.c.b16 %v2108, %v2107
    %v2124 = vpack.c.b16 %v2110, %v2109
    %v2125 = vpack.c.b16 %v2112, %v2111
    %v2126 = vpack.c.b16 %v2114, %v2113
    %v2127 = vpack.c.b16 %v2116, %v2115
    %v2128 = vpack.c.b16 %v2118, %v2117
    %v2129 = vpack.c.b16 %v2120, %v2119
    %v2130 = vpack.c.b16 %v2122, %v2121
    %v2155 = vunpack.c.l.b16 %v1195
    %v2156 = vunpack.c.l.b16 %v1196
    %v2157 = vunpack.c.l.b16 %v1197
    %v2158 = vunpack.c.l.b16 %v1198
    %v2159 = vunpack.c.l.b16 %v1199
    %v2160 = vunpack.c.l.b16 %v1200
    %v2161 = vunpack.c.l.b16 %v1201
    %v2162 = vunpack.c.l.b16 %v1202
    %v2163 = vunpack.c.l.b16 %v1203
    %v2164 = vunpack.c.l.b16 %v1204
    %v2165 = vunpack.c.l.b16 %v1205
    %v2166 = vunpack.c.l.b16 %v1206
    %v2167 = vunpack.c.l.b16 %v1207
    %v2168 = vunpack.c.l.b16 %v1208
    %v2169 = vunpack.c.l.b16 %v1209
    %v2170 = vunpack.c.l.b16 %v1210
    %v2171 = vpack.c.b16 %v2156, %v2155
    %v2172 = vpack.c.b16 %v2158, %v2157
    %v2173 = vpack.c.b16 %v2160, %v2159
    %v2174 = vpack.c.b16 %v2162, %v2161
    %v2175 = vpack.c.b16 %v2164, %v2163
    %v2176 = vpack.c.b16 %v2166, %v2165
    %v2177 = vpack.c.b16 %v2168, %v2167
    %v2178 = vpack.c.b16 %v2170, %v2169
    %v2203 = vunpack.c.l.b16 %v1339
    %v2204 = vunpack.c.l.b16 %v1340
    %v2205 = vunpack.c.l.b16 %v1341
    %v2206 = vunpack.c.l.b16 %v1342
    %v2207 = vunpack.c.l.b16 %v1343
    %v2208 = vunpack.c.l.b16 %v1344
    %v2209 = vunpack.c.l.b16 %v1345
    %v2210 = vunpack.c.l.b16 %v1346
    %v2211 = vunpack.c.l.b16 %v1347
    %v2212 = vunpack.c.l.b16 %v1348
    %v2213 = vunpack.c.l.b16 %v1349
    %v2214 = vunpack.c.l.b16 %v1350
    %v2215 = vunpack.c.l.b16 %v1351
    %v2216 = vunpack.c.l.b16 %v1352
    %v2217 = vunpack.c.l.b16 %v1353
    %v2218 = vunpack.c.l.b16 %v1354
    %v2219 = vpack.c.b16 %v2204, %v2203
    %v2220 = vpack.c.b16 %v2206, %v2205
    %v2221 = vpack.c.b16 %v2208, %v2207
    %v2222 = vpack.c.b16 %v2210, %v2209
    %v2223 = vpack.c.b16 %v2212, %v2211
    %v2224 = vpack.c.b16 %v2214, %v2213
    %v2225 = vpack.c.b16 %v2216, %v2215
    %v2226 = vpack.c.b16 %v2218, %v2217
    %v2251 = vunpack.c.l.b16 %v1483
    %v2252 = vunpack.c.l.b16 %v1484
    %v2253 = vunpack.c.l.b16 %v1485
    %v2254 = vunpack.c.l.b16 %v1486
    %v2255 = vunpack.c.l.b16 %v1487
    %v2256 = vunpack.c.l.b16 %v1488
    %v2257 = vunpack.c.l.b16 %v1489
    %v2258 = vunpack.c.l.b16 %v1490
    %v2259 = vunpack.c.l.b16 %v1491
    %v2260 = vunpack.c.l.b16 %v1492
    %v2261 = vunpack.c.l.b16 %v1493
    %v2262 = vunpack.c.l.b16 %v1494
    %v2263 = vunpack.c.l.b16 %v1495
    %v2264 = vunpack.c.l.b16 %v1496
    %v2265 = vunpack.c.l.b16 %v1497
    %v2266 = vunpack.c.l.b16 %v1498
    %v2267 = vpack.c.b16 %v2252, %v2251
    %v2268 = vpack.c.b16 %v2254, %v2253
    %v2269 = vpack.c.b16 %v2256, %v2255
    %v2270 = vpack.c.b16 %v2258, %v2257
    %v2271 = vpack.c.b16 %v2260, %v2259
    %v2272 = vpack.c.b16 %v2262, %v2261
    %v2273 = vpack.c.b16 %v2264, %v2263
    %v2274 = vpack.c.b16 %v2266, %v2265
    %v2299 = vunpack.c.l.b16 %v1691
    %v2300 = vunpack.c.l.b16 %v1692
    %v2301 = vunpack.c.l.b16 %v1693
    %v2302 = vunpack.c.l.b16 %v1694
    %v2303 = vunpack.c.l.b16 %v1695
    %v2304 = vunpack.c.l.b16 %v1696
    %v2305 = vunpack.c.l.b16 %v1697
    %v2306 = vunpack.c.l.b16 %v1698
    %v2307 = vunpack.c.l.b16 %v1699
    %v2308 = vunpack.c.l.b16 %v1700
    %v2309 = vunpack.c.l.b16 %v1701
    %v2310 = vunpack.c.l.b16 %v1702
    %v2311 = vunpack.c.l.b16 %v1703
    %v2312 = vunpack.c.l.b16 %v1704
    %v2313 = vunpack.c.l.b16 %v1705
    %v2314 = vunpack.c.l.b16 %v1706
    %v2315 = vpack.c.b16 %v2300, %v2299
    %v2316 = vpack.c.b16 %v2302, %v2301
    %v2317 = vpack.c.b16 %v2304, %v2303
    %v2318 = vpack.c.b16 %v2306, %v2305
    %v2319 = vpack.c.b16 %v2308, %v2307
    %v2320 = vpack.c.b16 %v2310, %v2309
    %v2321 = vpack.c.b16 %v2312, %v2311
    %v2322 = vpack.c.b16 %v2314, %v2313
    %v2347 = vunpack.c.l.b16 %v1835
    %v2348 = vunpack.c.l.b16 %v1836
    %v2349 = vunpack.c.l.b16 %v1837
    %v2350 = vunpack.c.l.b16 %v1838
    %v2351 = vunpack.c.l.b16 %v1839
    %v2352 = vunpack.c.l.b16 %v1840
    %v2353 = vunpack.c.l.b16 %v1841
    %v2354 = vunpack.c.l.b16 %v1842
    %v2355 = vunpack.c.l.b16 %v1843
    %v2356 = vunpack.c.l.b16 %v1844
    %v2357 = vunpack.c.l.b16 %v1845
    %v2358 = vunpack.c.l.b16 %v1846
    %v2359 = vunpack.c.l.b16 %v1847
    %v2360 = vunpack.c.l.b16 %v1848
    %v2361 = vunpack.c.l.b16 %v1849
    %v2362 = vunpack.c.l.b16 %v1850
    %v2363 = vpack.c.b16 %v2348, %v2347
    %v2364 = vpack.c.b16 %v2350, %v2349
    %v2365 = vpack.c.b16 %v2352, %v2351
    %v2366 = vpack.c.b16 %v2354, %v2353
    %v2367 = vpack.c.b16 %v2356, %v2355
    %v2368 = vpack.c.b16 %v2358, %v2357
    %v2369 = vpack.c.b16 %v2360, %v2359
    %v2370 = vpack.c.b16 %v2362, %v2361
    %v2395 = vunpack.c.l.b16 %v1979
    %v2396 = vunpack.c.l.b16 %v1980
    %v2397 = vunpack.c.l.b16 %v1981
    %v2398 = vunpack.c.l.b16 %v1982
    %v2399 = vunpack.c.l.b16 %v1983
    %v2400 = vunpack.c.l.b16 %v1984
    %v2401 = vunpack.c.l.b16 %v1985
    %v2402 = vunpack.c.l.b16 %v1986
    %v2403 = vunpack.c.l.b16 %v1987
    %v2404 = vunpack.c.l.b16 %v1988
    %v2405 = vunpack.c.l.b16 %v1989
    %v2406 = vunpack.c.l.b16 %v1990
    %v2407 = vunpack.c.l.b16 %v1991
    %v2408 = vunpack.c.l.b16 %v1992
    %v2409 = vunpack.c.l.b16 %v1993
    %v2410 = vunpack.c.l.b16 %v1994
    %v2411 = vpack.c.b16 %v2396, %v2395
    %v2412 = vpack.c.b16 %v2398, %v2397
    %v2413 = vpack.c.b16 %v2400, %v2399
    %v2414 = vpack.c.b16 %v2402, %v2401
    %v2415 = vpack.c.b16 %v2404, %v2403
    %v2416 = vpack.c.b16 %v2406, %v2405
    %v2417 = vpack.c.b16 %v2408, %v2407
    %v2418 = vpack.c.b16 %v2410, %v2409
    %v2427 = vld [vmem:[#allocation2] sm:$0xf]
    %v2428 = vld [vmem:[#allocation2 + $0x4] sm:$0xf]
    %v2429 = vld [vmem:[#allocation2 + $0x8] sm:$0xf]
    %v2430 = vld [vmem:[#allocation2 + $0xc] sm:$0xf]
    %v2431 = vld [vmem:[#allocation2 + $0x10] sm:$0xf]
    %v2432 = vld [vmem:[#allocation2 + $0x14] sm:$0xf]
    %v2433 = vld [vmem:[#allocation2 + $0x18] sm:$0xf]
    %v2434 = vld [vmem:[#allocation2 + $0x1c] sm:$0xf]
    %v2435 = vld [vmem:[#allocation2 + $0x20] sm:$0xf]
    %v2436 = vld [vmem:[#allocation2 + $0x24] sm:$0xf]
    %v2437 = vld [vmem:[#allocation2 + $0x28] sm:$0xf]
    %v2438 = vld [vmem:[#allocation2 + $0x2c] sm:$0xf]
    %v2439 = vld [vmem:[#allocation2 + $0x30] sm:$0xf]
    %v2440 = vld [vmem:[#allocation2 + $0x34] sm:$0xf]
    %v2441 = vld [vmem:[#allocation2 + $0x38] sm:$0xf]
    %v2442 = vld [vmem:[#allocation2 + $0x3c] sm:$0xf]
    %v2443 = vld [vmem:[#allocation2 + $0x40] sm:$0xf]
    %v2444 = vld [vmem:[#allocation2 + $0x44] sm:$0xf]
    %v2445 = vld [vmem:[#allocation2 + $0x48] sm:$0xf]
    %v2446 = vld [vmem:[#allocation2 + $0x4c] sm:$0xf]
    %v2447 = vld [vmem:[#allocation2 + $0x50] sm:$0xf]
    %v2448 = vld [vmem:[#allocation2 + $0x54] sm:$0xf]
    %v2449 = vld [vmem:[#allocation2 + $0x58] sm:$0xf]
    %v2450 = vld [vmem:[#allocation2 + $0x5c] sm:$0xf]
    %v2451 = vld [vmem:[#allocation2 + $0x60] sm:$0xf]
    %v2452 = vld [vmem:[#allocation2 + $0x64] sm:$0xf]
    %v2453 = vld [vmem:[#allocation2 + $0x68] sm:$0xf]
    %v2454 = vld [vmem:[#allocation2 + $0x6c] sm:$0xf]
    %v2455 = vld [vmem:[#allocation2 + $0x70] sm:$0xf]
    %v2456 = vld [vmem:[#allocation2 + $0x74] sm:$0xf]
    %v2457 = vld [vmem:[#allocation2 + $0x78] sm:$0xf]
    %v2458 = vld [vmem:[#allocation2 + $0x7c] sm:$0xf]
    %v2459 = vld [vmem:[#allocation2 + $0x80] sm:$0xf]
    %v2460 = vld [vmem:[#allocation2 + $0x84] sm:$0xf]
    %v2461 = vld [vmem:[#allocation2 + $0x88] sm:$0xf]
    %v2462 = vld [vmem:[#allocation2 + $0x8c] sm:$0xf]
    %v2463 = vld [vmem:[#allocation2 + $0x90] sm:$0xf]
    %v2464 = vld [vmem:[#allocation2 + $0x94] sm:$0xf]
    %v2465 = vld [vmem:[#allocation2 + $0x98] sm:$0xf]
    %v2466 = vld [vmem:[#allocation2 + $0x9c] sm:$0xf]
    %v2467 = vld [vmem:[#allocation2 + $0xa0] sm:$0xf]
    %v2468 = vld [vmem:[#allocation2 + $0xa4] sm:$0xf]
    %v2469 = vld [vmem:[#allocation2 + $0xa8] sm:$0xf]
    %v2470 = vld [vmem:[#allocation2 + $0xac] sm:$0xf]
    %v2471 = vld [vmem:[#allocation2 + $0xb0] sm:$0xf]
    %v2472 = vld [vmem:[#allocation2 + $0xb4] sm:$0xf]
    %v2473 = vld [vmem:[#allocation2 + $0xb8] sm:$0xf]
    %v2474 = vld [vmem:[#allocation2 + $0xbc] sm:$0xf]
    %v2475 = vld [vmem:[#allocation2 + $0xc0] sm:$0xf]
    %v2476 = vld [vmem:[#allocation2 + $0xc4] sm:$0xf]
    %v2477 = vld [vmem:[#allocation2 + $0xc8] sm:$0xf]
    %v2478 = vld [vmem:[#allocation2 + $0xcc] sm:$0xf]
    %v2479 = vld [vmem:[#allocation2 + $0xd0] sm:$0xf]
    %v2480 = vld [vmem:[#allocation2 + $0xd4] sm:$0xf]
    %v2481 = vld [vmem:[#allocation2 + $0xd8] sm:$0xf]
    %v2482 = vld [vmem:[#allocation2 + $0xdc] sm:$0xf]
    %v2483 = vld [vmem:[#allocation2 + $0xe0] sm:$0xf]
    %v2484 = vld [vmem:[#allocation2 + $0xe4] sm:$0xf]
    %v2485 = vld [vmem:[#allocation2 + $0xe8] sm:$0xf]
    %v2486 = vld [vmem:[#allocation2 + $0xec] sm:$0xf]
    %v2487 = vld [vmem:[#allocation2 + $0xf0] sm:$0xf]
    %v2488 = vld [vmem:[#allocation2 + $0xf4] sm:$0xf]
    %v2489 = vld [vmem:[#allocation2 + $0xf8] sm:$0xf]
    %v2490 = vld [vmem:[#allocation2 + $0xfc] sm:$0xf]
    %v2491 = vld [vmem:[#allocation2 + $0x100] sm:$0xf]
    %v2492 = vld [vmem:[#allocation2 + $0x104] sm:$0xf]
    %v2493 = vld [vmem:[#allocation2 + $0x108] sm:$0xf]
    %v2494 = vld [vmem:[#allocation2 + $0x10c] sm:$0xf]
    %v2495 = vld [vmem:[#allocation2 + $0x110] sm:$0xf]
    %v2496 = vld [vmem:[#allocation2 + $0x114] sm:$0xf]
    %v2497 = vld [vmem:[#allocation2 + $0x118] sm:$0xf]
    %v2498 = vld [vmem:[#allocation2 + $0x11c] sm:$0xf]
    %v2499 = vld [vmem:[#allocation2 + $0x120] sm:$0xf]
    %v2500 = vld [vmem:[#allocation2 + $0x124] sm:$0xf]
    %v2501 = vld [vmem:[#allocation2 + $0x128] sm:$0xf]
    %v2502 = vld [vmem:[#allocation2 + $0x12c] sm:$0xf]
    %v2503 = vld [vmem:[#allocation2 + $0x130] sm:$0xf]
    %v2504 = vld [vmem:[#allocation2 + $0x134] sm:$0xf]
    %v2505 = vld [vmem:[#allocation2 + $0x138] sm:$0xf]
    %v2506 = vld [vmem:[#allocation2 + $0x13c] sm:$0xf]
    %v2507 = vld [vmem:[#allocation2 + $0x140] sm:$0xf]
    %v2508 = vld [vmem:[#allocation2 + $0x144] sm:$0xf]
    %v2509 = vld [vmem:[#allocation2 + $0x148] sm:$0xf]
    %v2510 = vld [vmem:[#allocation2 + $0x14c] sm:$0xf]
    %v2511 = vld [vmem:[#allocation2 + $0x150] sm:$0xf]
    %v2512 = vld [vmem:[#allocation2 + $0x154] sm:$0xf]
    %v2513 = vld [vmem:[#allocation2 + $0x158] sm:$0xf]
    %v2514 = vld [vmem:[#allocation2 + $0x15c] sm:$0xf]
    %v2515 = vld [vmem:[#allocation2 + $0x160] sm:$0xf]
    %v2516 = vld [vmem:[#allocation2 + $0x164] sm:$0xf]
    %v2517 = vld [vmem:[#allocation2 + $0x168] sm:$0xf]
    %v2518 = vld [vmem:[#allocation2 + $0x16c] sm:$0xf]
    %v2519 = vld [vmem:[#allocation2 + $0x170] sm:$0xf]
    %v2520 = vld [vmem:[#allocation2 + $0x174] sm:$0xf]
    %v2521 = vld [vmem:[#allocation2 + $0x178] sm:$0xf]
    %v2522 = vld [vmem:[#allocation2 + $0x17c] sm:$0xf]
    %v2523 = vld [vmem:[#allocation2 + $0x180] sm:$0xf]
    %v2524 = vld [vmem:[#allocation2 + $0x184] sm:$0xf]
    %v2525 = vld [vmem:[#allocation2 + $0x188] sm:$0xf]
    %v2526 = vld [vmem:[#allocation2 + $0x18c] sm:$0xf]
    %v2527 = vld [vmem:[#allocation2 + $0x190] sm:$0xf]
    %v2528 = vld [vmem:[#allocation2 + $0x194] sm:$0xf]
    %v2529 = vld [vmem:[#allocation2 + $0x198] sm:$0xf]
    %v2530 = vld [vmem:[#allocation2 + $0x19c] sm:$0xf]
    %v2531 = vld [vmem:[#allocation2 + $0x1a0] sm:$0xf]
    %v2532 = vld [vmem:[#allocation2 + $0x1a4] sm:$0xf]
    %v2533 = vld [vmem:[#allocation2 + $0x1a8] sm:$0xf]
    %v2534 = vld [vmem:[#allocation2 + $0x1ac] sm:$0xf]
    %v2535 = vld [vmem:[#allocation2 + $0x1b0] sm:$0xf]
    %v2536 = vld [vmem:[#allocation2 + $0x1b4] sm:$0xf]
    %v2537 = vld [vmem:[#allocation2 + $0x1b8] sm:$0xf]
    %v2538 = vld [vmem:[#allocation2 + $0x1bc] sm:$0xf]
    %v2539 = vld [vmem:[#allocation2 + $0x1c0] sm:$0xf]
    %v2540 = vld [vmem:[#allocation2 + $0x1c4] sm:$0xf]
    %v2541 = vld [vmem:[#allocation2 + $0x1c8] sm:$0xf]
    %v2542 = vld [vmem:[#allocation2 + $0x1cc] sm:$0xf]
    %v2543 = vld [vmem:[#allocation2 + $0x1d0] sm:$0xf]
    %v2544 = vld [vmem:[#allocation2 + $0x1d4] sm:$0xf]
    %v2545 = vld [vmem:[#allocation2 + $0x1d8] sm:$0xf]
    %v2546 = vld [vmem:[#allocation2 + $0x1dc] sm:$0xf]
    %v2547 = vld [vmem:[#allocation2 + $0x1e0] sm:$0xf]
    %v2548 = vld [vmem:[#allocation2 + $0x1e4] sm:$0xf]
    %v2549 = vld [vmem:[#allocation2 + $0x1e8] sm:$0xf]
    %v2550 = vld [vmem:[#allocation2 + $0x1ec] sm:$0xf]
    %v2551 = vld [vmem:[#allocation2 + $0x1f0] sm:$0xf]
    %v2552 = vld [vmem:[#allocation2 + $0x1f4] sm:$0xf]
    %v2553 = vld [vmem:[#allocation2 + $0x1f8] sm:$0xf]
    %v2554 = vld [vmem:[#allocation2 + $0x1fc] sm:$0xf]
    %v2555 = vld [vmem:[#allocation2 + $0x200] sm:$0xf]
    %v2556 = vld [vmem:[#allocation2 + $0x204] sm:$0xf]
    %v2557 = vld [vmem:[#allocation2 + $0x208] sm:$0xf]
    %v2558 = vld [vmem:[#allocation2 + $0x20c] sm:$0xf]
    %v2559 = vld [vmem:[#allocation2 + $0x210] sm:$0xf]
    %v2560 = vld [vmem:[#allocation2 + $0x214] sm:$0xf]
    %v2561 = vld [vmem:[#allocation2 + $0x218] sm:$0xf]
    %v2562 = vld [vmem:[#allocation2 + $0x21c] sm:$0xf]
    %v2563 = vld [vmem:[#allocation2 + $0x220] sm:$0xf]
    %v2564 = vld [vmem:[#allocation2 + $0x224] sm:$0xf]
    %v2565 = vld [vmem:[#allocation2 + $0x228] sm:$0xf]
    %v2566 = vld [vmem:[#allocation2 + $0x22c] sm:$0xf]
    %v2567 = vld [vmem:[#allocation2 + $0x230] sm:$0xf]
    %v2568 = vld [vmem:[#allocation2 + $0x234] sm:$0xf]
    %v2569 = vld [vmem:[#allocation2 + $0x238] sm:$0xf]
    %v2570 = vld [vmem:[#allocation2 + $0x23c] sm:$0xf]
    %v2715 = vunpack.c.l.b16 %v2427
    %v2716 = vunpack.c.l.b16 %v2428
    %v2717 = vunpack.c.l.b16 %v2429
    %v2718 = vunpack.c.l.b16 %v2430
    %v2719 = vunpack.c.l.b16 %v2431
    %v2720 = vunpack.c.l.b16 %v2432
    %v2721 = vunpack.c.l.b16 %v2433
    %v2722 = vunpack.c.l.b16 %v2434
    %v2723 = vunpack.c.l.b16 %v2435
    %v2724 = vunpack.c.l.b16 %v2436
    %v2725 = vunpack.c.l.b16 %v2437
    %v2726 = vunpack.c.l.b16 %v2438
    %v2727 = vunpack.c.l.b16 %v2439
    %v2728 = vunpack.c.l.b16 %v2440
    %v2729 = vunpack.c.l.b16 %v2441
    %v2730 = vunpack.c.l.b16 %v2442
    %v2731 = vunpack.c.l.b16 %v2443
    %v2732 = vunpack.c.l.b16 %v2444
    %v2733 = vunpack.c.l.b16 %v2445
    %v2734 = vunpack.c.l.b16 %v2446
    %v2735 = vunpack.c.l.b16 %v2447
    %v2736 = vunpack.c.l.b16 %v2448
    %v2737 = vunpack.c.l.b16 %v2449
    %v2738 = vunpack.c.l.b16 %v2450
    %v2739 = vunpack.c.l.b16 %v2451
    %v2740 = vunpack.c.l.b16 %v2452
    %v2741 = vunpack.c.l.b16 %v2453
    %v2742 = vunpack.c.l.b16 %v2454
    %v2743 = vunpack.c.l.b16 %v2455
    %v2744 = vunpack.c.l.b16 %v2456
    %v2745 = vunpack.c.l.b16 %v2457
    %v2746 = vunpack.c.l.b16 %v2458
    %v2747 = vunpack.c.l.b16 %v2459
    %v2748 = vunpack.c.l.b16 %v2460
    %v2749 = vunpack.c.l.b16 %v2461
    %v2750 = vunpack.c.l.b16 %v2462
    %v2751 = vunpack.c.l.b16 %v2463
    %v2752 = vunpack.c.l.b16 %v2464
    %v2753 = vunpack.c.l.b16 %v2465
    %v2754 = vunpack.c.l.b16 %v2466
    %v2755 = vunpack.c.l.b16 %v2467
    %v2756 = vunpack.c.l.b16 %v2468
    %v2757 = vunpack.c.l.b16 %v2469
    %v2758 = vunpack.c.l.b16 %v2470
    %v2759 = vunpack.c.l.b16 %v2471
    %v2760 = vunpack.c.l.b16 %v2472
    %v2761 = vunpack.c.l.b16 %v2473
    %v2762 = vunpack.c.l.b16 %v2474
    %v2763 = vunpack.c.l.b16 %v2475
    %v2764 = vunpack.c.l.b16 %v2476
    %v2765 = vunpack.c.l.b16 %v2477
    %v2766 = vunpack.c.l.b16 %v2478
    %v2767 = vunpack.c.l.b16 %v2479
    %v2768 = vunpack.c.l.b16 %v2480
    %v2769 = vunpack.c.l.b16 %v2481
    %v2770 = vunpack.c.l.b16 %v2482
    %v2771 = vunpack.c.l.b16 %v2483
    %v2772 = vunpack.c.l.b16 %v2484
    %v2773 = vunpack.c.l.b16 %v2485
    %v2774 = vunpack.c.l.b16 %v2486
    %v2775 = vunpack.c.l.b16 %v2487
    %v2776 = vunpack.c.l.b16 %v2488
    %v2777 = vunpack.c.l.b16 %v2489
    %v2778 = vunpack.c.l.b16 %v2490
    %v2779 = vunpack.c.l.b16 %v2491
    %v2780 = vunpack.c.l.b16 %v2492
    %v2781 = vunpack.c.l.b16 %v2493
    %v2782 = vunpack.c.l.b16 %v2494
    %v2783 = vunpack.c.l.b16 %v2495
    %v2784 = vunpack.c.l.b16 %v2496
    %v2785 = vunpack.c.l.b16 %v2497
    %v2786 = vunpack.c.l.b16 %v2498
    %v2787 = vunpack.c.l.b16 %v2499
    %v2788 = vunpack.c.l.b16 %v2500
    %v2789 = vunpack.c.l.b16 %v2501
    %v2790 = vunpack.c.l.b16 %v2502
    %v2791 = vunpack.c.l.b16 %v2503
    %v2792 = vunpack.c.l.b16 %v2504
    %v2793 = vunpack.c.l.b16 %v2505
    %v2794 = vunpack.c.l.b16 %v2506
    %v2795 = vunpack.c.l.b16 %v2507
    %v2796 = vunpack.c.l.b16 %v2508
    %v2797 = vunpack.c.l.b16 %v2509
    %v2798 = vunpack.c.l.b16 %v2510
    %v2799 = vunpack.c.l.b16 %v2511
    %v2800 = vunpack.c.l.b16 %v2512
    %v2801 = vunpack.c.l.b16 %v2513
    %v2802 = vunpack.c.l.b16 %v2514
    %v2803 = vunpack.c.l.b16 %v2515
    %v2804 = vunpack.c.l.b16 %v2516
    %v2805 = vunpack.c.l.b16 %v2517
    %v2806 = vunpack.c.l.b16 %v2518
    %v2807 = vunpack.c.l.b16 %v2519
    %v2808 = vunpack.c.l.b16 %v2520
    %v2809 = vunpack.c.l.b16 %v2521
    %v2810 = vunpack.c.l.b16 %v2522
    %v2811 = vunpack.c.l.b16 %v2523
    %v2812 = vunpack.c.l.b16 %v2524
    %v2813 = vunpack.c.l.b16 %v2525
    %v2814 = vunpack.c.l.b16 %v2526
    %v2815 = vunpack.c.l.b16 %v2527
    %v2816 = vunpack.c.l.b16 %v2528
    %v2817 = vunpack.c.l.b16 %v2529
    %v2818 = vunpack.c.l.b16 %v2530
    %v2819 = vunpack.c.l.b16 %v2531
    %v2820 = vunpack.c.l.b16 %v2532
    %v2821 = vunpack.c.l.b16 %v2533
    %v2822 = vunpack.c.l.b16 %v2534
    %v2823 = vunpack.c.l.b16 %v2535
    %v2824 = vunpack.c.l.b16 %v2536
    %v2825 = vunpack.c.l.b16 %v2537
    %v2826 = vunpack.c.l.b16 %v2538
    %v2827 = vunpack.c.l.b16 %v2539
    %v2828 = vunpack.c.l.b16 %v2540
    %v2829 = vunpack.c.l.b16 %v2541
    %v2830 = vunpack.c.l.b16 %v2542
    %v2831 = vunpack.c.l.b16 %v2543
    %v2832 = vunpack.c.l.b16 %v2544
    %v2833 = vunpack.c.l.b16 %v2545
    %v2834 = vunpack.c.l.b16 %v2546
    %v2835 = vunpack.c.l.b16 %v2547
    %v2836 = vunpack.c.l.b16 %v2548
    %v2837 = vunpack.c.l.b16 %v2549
    %v2838 = vunpack.c.l.b16 %v2550
    %v2839 = vunpack.c.l.b16 %v2551
    %v2840 = vunpack.c.l.b16 %v2552
    %v2841 = vunpack.c.l.b16 %v2553
    %v2842 = vunpack.c.l.b16 %v2554
    %v2843 = vunpack.c.l.b16 %v2555
    %v2844 = vunpack.c.l.b16 %v2556
    %v2845 = vunpack.c.l.b16 %v2557
    %v2846 = vunpack.c.l.b16 %v2558
    %v2847 = vunpack.c.l.b16 %v2559
    %v2848 = vunpack.c.l.b16 %v2560
    %v2849 = vunpack.c.l.b16 %v2561
    %v2850 = vunpack.c.l.b16 %v2562
    %v2851 = vunpack.c.l.b16 %v2563
    %v2852 = vunpack.c.l.b16 %v2564
    %v2853 = vunpack.c.l.b16 %v2565
    %v2854 = vunpack.c.l.b16 %v2566
    %v2855 = vunpack.c.l.b16 %v2567
    %v2856 = vunpack.c.l.b16 %v2568
    %v2857 = vunpack.c.l.b16 %v2569
    %v2858 = vunpack.c.l.b16 %v2570
    %v2859 = vpack.c.b16 %v2716, %v2715
    %v2860 = vpack.c.b16 %v2718, %v2717
    %v2861 = vpack.c.b16 %v2720, %v2719
    %v2862 = vpack.c.b16 %v2722, %v2721
    %v2863 = vpack.c.b16 %v2724, %v2723
    %v2864 = vpack.c.b16 %v2726, %v2725
    %v2865 = vpack.c.b16 %v2728, %v2727
    %v2866 = vpack.c.b16 %v2730, %v2729
    %v2867 = vpack.c.b16 %v2732, %v2731
    %v2868 = vpack.c.b16 %v2734, %v2733
    %v2869 = vpack.c.b16 %v2736, %v2735
    %v2870 = vpack.c.b16 %v2738, %v2737
    %v2871 = vpack.c.b16 %v2740, %v2739
    %v2872 = vpack.c.b16 %v2742, %v2741
    %v2873 = vpack.c.b16 %v2744, %v2743
    %v2874 = vpack.c.b16 %v2746, %v2745
    %v2875 = vpack.c.b16 %v2748, %v2747
    %v2876 = vpack.c.b16 %v2750, %v2749
    %v2877 = vpack.c.b16 %v2752, %v2751
    %v2878 = vpack.c.b16 %v2754, %v2753
    %v2879 = vpack.c.b16 %v2756, %v2755
    %v2880 = vpack.c.b16 %v2758, %v2757
    %v2881 = vpack.c.b16 %v2760, %v2759
    %v2882 = vpack.c.b16 %v2762, %v2761
    %v2883 = vpack.c.b16 %v2764, %v2763
    %v2884 = vpack.c.b16 %v2766, %v2765
    %v2885 = vpack.c.b16 %v2768, %v2767
    %v2886 = vpack.c.b16 %v2770, %v2769
    %v2887 = vpack.c.b16 %v2772, %v2771
    %v2888 = vpack.c.b16 %v2774, %v2773
    %v2889 = vpack.c.b16 %v2776, %v2775
    %v2890 = vpack.c.b16 %v2778, %v2777
    %v2891 = vpack.c.b16 %v2780, %v2779
    %v2892 = vpack.c.b16 %v2782, %v2781
    %v2893 = vpack.c.b16 %v2784, %v2783
    %v2894 = vpack.c.b16 %v2786, %v2785
    %v2895 = vpack.c.b16 %v2788, %v2787
    %v2896 = vpack.c.b16 %v2790, %v2789
    %v2897 = vpack.c.b16 %v2792, %v2791
    %v2898 = vpack.c.b16 %v2794, %v2793
    %v2899 = vpack.c.b16 %v2796, %v2795
    %v2900 = vpack.c.b16 %v2798, %v2797
    %v2901 = vpack.c.b16 %v2800, %v2799
    %v2902 = vpack.c.b16 %v2802, %v2801
    %v2903 = vpack.c.b16 %v2804, %v2803
    %v2904 = vpack.c.b16 %v2806, %v2805
    %v2905 = vpack.c.b16 %v2808, %v2807
    %v2906 = vpack.c.b16 %v2810, %v2809
    %v2907 = vpack.c.b16 %v2812, %v2811
    %v2908 = vpack.c.b16 %v2814, %v2813
    %v2909 = vpack.c.b16 %v2816, %v2815
    %v2910 = vpack.c.b16 %v2818, %v2817
    %v2911 = vpack.c.b16 %v2820, %v2819
    %v2912 = vpack.c.b16 %v2822, %v2821
    %v2913 = vpack.c.b16 %v2824, %v2823
    %v2914 = vpack.c.b16 %v2826, %v2825
    %v2915 = vpack.c.b16 %v2828, %v2827
    %v2916 = vpack.c.b16 %v2830, %v2829
    %v2917 = vpack.c.b16 %v2832, %v2831
    %v2918 = vpack.c.b16 %v2834, %v2833
    %v2919 = vpack.c.b16 %v2836, %v2835
    %v2920 = vpack.c.b16 %v2838, %v2837
    %v2921 = vpack.c.b16 %v2840, %v2839
    %v2922 = vpack.c.b16 %v2842, %v2841
    %v2923 = vpack.c.b16 %v2844, %v2843
    %v2924 = vpack.c.b16 %v2846, %v2845
    %v2925 = vpack.c.b16 %v2848, %v2847
    %v2926 = vpack.c.b16 %v2850, %v2849
    %v2927 = vpack.c.b16 %v2852, %v2851
    %v2928 = vpack.c.b16 %v2854, %v2853
    %v2929 = vpack.c.b16 %v2856, %v2855
    %v2930 = vpack.c.b16 %v2858, %v2857
    %3003 = vmatpush.bf16.msra.mxu0 %v2866
    %3004 = vmatpush.bf16.msra.mxu0 %v2865
    %3005 = vmatpush.bf16.msra.mxu0 %v2864
    %3006 = vmatpush.bf16.msra.mxu0 %v2863
    %3007 = vmatpush.bf16.msra.mxu0 %v2862
    %3008 = vmatpush.bf16.msra.mxu0 %v2861
    %3009 = vmatpush.bf16.msra.mxu0 %v2860
    %3010 = vmatpush.bf16.msra.mxu0 %v2859
    %3011 = vmatmul.bf16.gmra.mxu0 %v2027
    %v3012 = vpop.f32.mrf.mxu0
    %v3013 = vadd.f32 0.0, %v3012
    %v3014 = vpop.f32.mrf.mxu0
    %v3015 = vadd.f32 0.0, %v3014
    %3016 = vmatmul.bf16.gmra.mxu0 %v2028
    %v3017 = vpop.f32.mrf.mxu0
    %v3018 = vadd.f32 0.0, %v3017
    %v3019 = vpop.f32.mrf.mxu0
    %v3020 = vadd.f32 0.0, %v3019
    %3021 = vmatmul.bf16.gmra.mxu0 %v2029
    %v3022 = vpop.f32.mrf.mxu0
    %v3023 = vadd.f32 0.0, %v3022
    %v3024 = vpop.f32.mrf.mxu0
    %v3025 = vadd.f32 0.0, %v3024
    %3026 = vmatmul.bf16.gmra.mxu0 %v2030
    %v3027 = vpop.f32.mrf.mxu0
    %v3028 = vadd.f32 0.0, %v3027
    %v3029 = vpop.f32.mrf.mxu0
    %v3030 = vadd.f32 0.0, %v3029
    %3031 = vmatmul.bf16.gmra.mxu0 %v2031
    %v3032 = vpop.f32.mrf.mxu0
    %v3033 = vadd.f32 0.0, %v3032
    %v3034 = vpop.f32.mrf.mxu0
    %v3035 = vadd.f32 0.0, %v3034
    %3036 = vmatmul.bf16.gmra.mxu0 %v2032
    %v3037 = vpop.f32.mrf.mxu0
    %v3038 = vadd.f32 0.0, %v3037
    %v3039 = vpop.f32.mrf.mxu0
    %v3040 = vadd.f32 0.0, %v3039
    %3041 = vmatmul.bf16.gmra.mxu0 %v2033
    %v3042 = vpop.f32.mrf.mxu0
    %v3043 = vadd.f32 0.0, %v3042
    %v3044 = vpop.f32.mrf.mxu0
    %v3045 = vadd.f32 0.0, %v3044
    %3046 = vmatmul.bf16.gmra.mxu0 %v2034
    %v3047 = vpop.f32.mrf.mxu0
    %v3048 = vadd.f32 0.0, %v3047
    %v3049 = vpop.f32.mrf.mxu0
    %v3050 = vadd.f32 0.0, %v3049
    %3051 = vdwg.mxu0
    %3052 = vmatpush.bf16.msra.mxu0 %v2874
    %3053 = vmatpush.bf16.msra.mxu0 %v2873
    %3054 = vmatpush.bf16.msra.mxu0 %v2872
    %3055 = vmatpush.bf16.msra.mxu0 %v2871
    %3056 = vmatpush.bf16.msra.mxu0 %v2870
    %3057 = vmatpush.bf16.msra.mxu0 %v2869
    %3058 = vmatpush.bf16.msra.mxu0 %v2868
    %3059 = vmatpush.bf16.msra.mxu0 %v2867
    %3060 = vmatmul.bf16.gmra.mxu0 %v2075
    %v3061 = vpop.f32.mrf.mxu0
    %v3062 = vadd.f32 %v3013, %v3061
    %v3063 = vpop.f32.mrf.mxu0
    %v3064 = vadd.f32 %v3015, %v3063
    %3065 = vmatmul.bf16.gmra.mxu0 %v2076
    %v3066 = vpop.f32.mrf.mxu0
    %v3067 = vadd.f32 %v3018, %v3066
    %v3068 = vpop.f32.mrf.mxu0
    %v3069 = vadd.f32 %v3020, %v3068
    %3070 = vmatmul.bf16.gmra.mxu0 %v2077
    %v3071 = vpop.f32.mrf.mxu0
    %v3072 = vadd.f32 %v3023, %v3071
    %v3073 = vpop.f32.mrf.mxu0
    %v3074 = vadd.f32 %v3025, %v3073
    %3075 = vmatmul.bf16.gmra.mxu0 %v2078
    %v3076 = vpop.f32.mrf.mxu0
    %v3077 = vadd.f32 %v3028, %v3076
    %v3078 = vpop.f32.mrf.mxu0
    %v3079 = vadd.f32 %v3030, %v3078
    %3080 = vmatmul.bf16.gmra.mxu0 %v2079
    %v3081 = vpop.f32.mrf.mxu0
    %v3082 = vadd.f32 %v3033, %v3081
    %v3083 = vpop.f32.mrf.mxu0
    %v3084 = vadd.f32 %v3035, %v3083
    %3085 = vmatmul.bf16.gmra.mxu0 %v2080
    %v3086 = vpop.f32.mrf.mxu0
    %v3087 = vadd.f32 %v3038, %v3086
    %v3088 = vpop.f32.mrf.mxu0
    %v3089 = vadd.f32 %v3040, %v3088
    %3090 = vmatmul.bf16.gmra.mxu0 %v2081
    %v3091 = vpop.f32.mrf.mxu0
    %v3092 = vadd.f32 %v3043, %v3091
    %v3093 = vpop.f32.mrf.mxu0
    %v3094 = vadd.f32 %v3045, %v3093
    %3095 = vmatmul.bf16.gmra.mxu0 %v2082
    %v3096 = vpop.f32.mrf.mxu0
    %v3097 = vadd.f32 %v3048, %v3096
    %v3098 = vpop.f32.mrf.mxu0
    %v3099 = vadd.f32 %v3050, %v3098
    %3100 = vdwg.mxu0
    %3101 = vmatpush.bf16.msra.mxu0 %v2882
    %3102 = vmatpush.bf16.msra.mxu0 %v2881
    %3103 = vmatpush.bf16.msra.mxu0 %v2880
    %3104 = vmatpush.bf16.msra.mxu0 %v2879
    %3105 = vmatpush.bf16.msra.mxu0 %v2878
    %3106 = vmatpush.bf16.msra.mxu0 %v2877
    %3107 = vmatpush.bf16.msra.mxu0 %v2876
    %3108 = vmatpush.bf16.msra.mxu0 %v2875
    %3109 = vmatmul.bf16.gmra.mxu0 %v2123
    %v3110 = vpop.f32.mrf.mxu0
    %v3111 = vadd.f32 %v3062, %v3110
    %v3112 = vpop.f32.mrf.mxu0
    %v3113 = vadd.f32 %v3064, %v3112
    %3114 = vmatmul.bf16.gmra.mxu0 %v2124
    %v3115 = vpop.f32.mrf.mxu0
    %v3116 = vadd.f32 %v3067, %v3115
    %v3117 = vpop.f32.mrf.mxu0
    %v3118 = vadd.f32 %v3069, %v3117
    %3119 = vmatmul.bf16.gmra.mxu0 %v2125
    %v3120 = vpop.f32.mrf.mxu0
    %v3121 = vadd.f32 %v3072, %v3120
    %v3122 = vpop.f32.mrf.mxu0
    %v3123 = vadd.f32 %v3074, %v3122
    %3124 = vmatmul.bf16.gmra.mxu0 %v2126
    %v3125 = vpop.f32.mrf.mxu0
    %v3126 = vadd.f32 %v3077, %v3125
    %v3127 = vpop.f32.mrf.mxu0
    %v3128 = vadd.f32 %v3079, %v3127
    %3129 = vmatmul.bf16.gmra.mxu0 %v2127
    %v3130 = vpop.f32.mrf.mxu0
    %v3131 = vadd.f32 %v3082, %v3130
    %v3132 = vpop.f32.mrf.mxu0
    %v3133 = vadd.f32 %v3084, %v3132
    %3134 = vmatmul.bf16.gmra.mxu0 %v2128
    %v3135 = vpop.f32.mrf.mxu0
    %v3136 = vadd.f32 %v3087, %v3135
    %v3137 = vpop.f32.mrf.mxu0
    %v3138 = vadd.f32 %v3089, %v3137
    %3139 = vmatmul.bf16.gmra.mxu0 %v2129
    %v3140 = vpop.f32.mrf.mxu0
    %v3141 = vadd.f32 %v3092, %v3140
    %v3142 = vpop.f32.mrf.mxu0
    %v3143 = vadd.f32 %v3094, %v3142
    %3144 = vmatmul.bf16.gmra.mxu0 %v2130
    %v3145 = vpop.f32.mrf.mxu0
    %v3146 = vadd.f32 %v3097, %v3145
    %v3147 = vpop.f32.mrf.mxu0
    %v3148 = vadd.f32 %v3099, %v3147
    %3149 = vdwg.mxu0
    %3150 = vmatpush.bf16.msra.mxu0 %v2890
    %3151 = vmatpush.bf16.msra.mxu0 %v2889
    %3152 = vmatpush.bf16.msra.mxu0 %v2888
    %3153 = vmatpush.bf16.msra.mxu0 %v2887
    %3154 = vmatpush.bf16.msra.mxu0 %v2886
    %3155 = vmatpush.bf16.msra.mxu0 %v2885
    %3156 = vmatpush.bf16.msra.mxu0 %v2884
    %3157 = vmatpush.bf16.msra.mxu0 %v2883
    %3158 = vmatmul.bf16.gmra.mxu0 %v2171
    %v3159 = vpop.f32.mrf.mxu0
    %v3160 = vadd.f32 %v3111, %v3159
    %v3161 = vpop.f32.mrf.mxu0
    %v3162 = vadd.f32 %v3113, %v3161
    %3163 = vmatmul.bf16.gmra.mxu0 %v2172
    %v3164 = vpop.f32.mrf.mxu0
    %v3165 = vadd.f32 %v3116, %v3164
    %v3166 = vpop.f32.mrf.mxu0
    %v3167 = vadd.f32 %v3118, %v3166
    %3168 = vmatmul.bf16.gmra.mxu0 %v2173
    %v3169 = vpop.f32.mrf.mxu0
    %v3170 = vadd.f32 %v3121, %v3169
    %v3171 = vpop.f32.mrf.mxu0
    %v3172 = vadd.f32 %v3123, %v3171
    %3173 = vmatmul.bf16.gmra.mxu0 %v2174
    %v3174 = vpop.f32.mrf.mxu0
    %v3175 = vadd.f32 %v3126, %v3174
    %v3176 = vpop.f32.mrf.mxu0
    %v3177 = vadd.f32 %v3128, %v3176
    %3178 = vmatmul.bf16.gmra.mxu0 %v2175
    %v3179 = vpop.f32.mrf.mxu0
    %v3180 = vadd.f32 %v3131, %v3179
    %v3181 = vpop.f32.mrf.mxu0
    %v3182 = vadd.f32 %v3133, %v3181
    %3183 = vmatmul.bf16.gmra.mxu0 %v2176
    %v3184 = vpop.f32.mrf.mxu0
    %v3185 = vadd.f32 %v3136, %v3184
    %v3186 = vpop.f32.mrf.mxu0
    %v3187 = vadd.f32 %v3138, %v3186
    %3188 = vmatmul.bf16.gmra.mxu0 %v2177
    %v3189 = vpop.f32.mrf.mxu0
    %v3190 = vadd.f32 %v3141, %v3189
    %v3191 = vpop.f32.mrf.mxu0
    %v3192 = vadd.f32 %v3143, %v3191
    %3193 = vmatmul.bf16.gmra.mxu0 %v2178
    %v3194 = vpop.f32.mrf.mxu0
    %v3195 = vadd.f32 %v3146, %v3194
    %v3196 = vpop.f32.mrf.mxu0
    %v3197 = vadd.f32 %v3148, %v3196
    %3198 = vdwg.mxu0
    %3199 = vmatpush.bf16.msra.mxu0 %v2898
    %3200 = vmatpush.bf16.msra.mxu0 %v2897
    %3201 = vmatpush.bf16.msra.mxu0 %v2896
    %3202 = vmatpush.bf16.msra.mxu0 %v2895
    %3203 = vmatpush.bf16.msra.mxu0 %v2894
    %3204 = vmatpush.bf16.msra.mxu0 %v2893
    %3205 = vmatpush.bf16.msra.mxu0 %v2892
    %3206 = vmatpush.bf16.msra.mxu0 %v2891
    %3207 = vmatmul.bf16.gmra.mxu0 %v2219
    %v3208 = vpop.f32.mrf.mxu0
    %v3209 = vadd.f32 %v3160, %v3208
    %v3210 = vpop.f32.mrf.mxu0
    %v3211 = vadd.f32 %v3162, %v3210
    %3212 = vmatmul.bf16.gmra.mxu0 %v2220
    %v3213 = vpop.f32.mrf.mxu0
    %v3214 = vadd.f32 %v3165, %v3213
    %v3215 = vpop.f32.mrf.mxu0
    %v3216 = vadd.f32 %v3167, %v3215
    %3217 = vmatmul.bf16.gmra.mxu0 %v2221
    %v3218 = vpop.f32.mrf.mxu0
    %v3219 = vadd.f32 %v3170, %v3218
    %v3220 = vpop.f32.mrf.mxu0
    %v3221 = vadd.f32 %v3172, %v3220
    %3222 = vmatmul.bf16.gmra.mxu0 %v2222
    %v3223 = vpop.f32.mrf.mxu0
    %v3224 = vadd.f32 %v3175, %v3223
    %v3225 = vpop.f32.mrf.mxu0
    %v3226 = vadd.f32 %v3177, %v3225
    %3227 = vmatmul.bf16.gmra.mxu0 %v2223
    %v3228 = vpop.f32.mrf.mxu0
    %v3229 = vadd.f32 %v3180, %v3228
    %v3230 = vpop.f32.mrf.mxu0
    %v3231 = vadd.f32 %v3182, %v3230
    %3232 = vmatmul.bf16.gmra.mxu0 %v2224
    %v3233 = vpop.f32.mrf.mxu0
    %v3234 = vadd.f32 %v3185, %v3233
    %v3235 = vpop.f32.mrf.mxu0
    %v3236 = vadd.f32 %v3187, %v3235
    %3237 = vmatmul.bf16.gmra.mxu0 %v2225
    %v3238 = vpop.f32.mrf.mxu0
    %v3239 = vadd.f32 %v3190, %v3238
    %v3240 = vpop.f32.mrf.mxu0
    %v3241 = vadd.f32 %v3192, %v3240
    %3242 = vmatmul.bf16.gmra.mxu0 %v2226
    %v3243 = vpop.f32.mrf.mxu0
    %v3244 = vadd.f32 %v3195, %v3243
    %v3245 = vpop.f32.mrf.mxu0
    %v3246 = vadd.f32 %v3197, %v3245
    %3247 = vdwg.mxu0
    %3248 = vmatpush.bf16.msra.mxu0 %v2906
    %3249 = vmatpush.bf16.msra.mxu0 %v2905
    %3250 = vmatpush.bf16.msra.mxu0 %v2904
    %3251 = vmatpush.bf16.msra.mxu0 %v2903
    %3252 = vmatpush.bf16.msra.mxu0 %v2902
    %3253 = vmatpush.bf16.msra.mxu0 %v2901
    %3254 = vmatpush.bf16.msra.mxu0 %v2900
    %3255 = vmatpush.bf16.msra.mxu0 %v2899
    %3256 = vmatmul.bf16.gmra.mxu0 %v2267
    %v3257 = vpop.f32.mrf.mxu0
    %v3258 = vadd.f32 %v3209, %v3257
    %v3259 = vpop.f32.mrf.mxu0
    %v3260 = vadd.f32 %v3211, %v3259
    %3261 = vmatmul.bf16.gmra.mxu0 %v2268
    %v3262 = vpop.f32.mrf.mxu0
    %v3263 = vadd.f32 %v3214, %v3262
    %v3264 = vpop.f32.mrf.mxu0
    %v3265 = vadd.f32 %v3216, %v3264
    %3266 = vmatmul.bf16.gmra.mxu0 %v2269
    %v3267 = vpop.f32.mrf.mxu0
    %v3268 = vadd.f32 %v3219, %v3267
    %v3269 = vpop.f32.mrf.mxu0
    %v3270 = vadd.f32 %v3221, %v3269
    %3271 = vmatmul.bf16.gmra.mxu0 %v2270
    %v3272 = vpop.f32.mrf.mxu0
    %v3273 = vadd.f32 %v3224, %v3272
    %v3274 = vpop.f32.mrf.mxu0
    %v3275 = vadd.f32 %v3226, %v3274
    %3276 = vmatmul.bf16.gmra.mxu0 %v2271
    %v3277 = vpop.f32.mrf.mxu0
    %v3278 = vadd.f32 %v3229, %v3277
    %v3279 = vpop.f32.mrf.mxu0
    %v3280 = vadd.f32 %v3231, %v3279
    %3281 = vmatmul.bf16.gmra.mxu0 %v2272
    %v3282 = vpop.f32.mrf.mxu0
    %v3283 = vadd.f32 %v3234, %v3282
    %v3284 = vpop.f32.mrf.mxu0
    %v3285 = vadd.f32 %v3236, %v3284
    %3286 = vmatmul.bf16.gmra.mxu0 %v2273
    %v3287 = vpop.f32.mrf.mxu0
    %v3288 = vadd.f32 %v3239, %v3287
    %v3289 = vpop.f32.mrf.mxu0
    %v3290 = vadd.f32 %v3241, %v3289
    %3291 = vmatmul.bf16.gmra.mxu0 %v2274
    %v3292 = vpop.f32.mrf.mxu0
    %v3293 = vadd.f32 %v3244, %v3292
    %v3294 = vpop.f32.mrf.mxu0
    %v3295 = vadd.f32 %v3246, %v3294
    %3296 = vdwg.mxu0
    %3297 = vmatpush.bf16.msra.mxu0 %v2914
    %3298 = vmatpush.bf16.msra.mxu0 %v2913
    %3299 = vmatpush.bf16.msra.mxu0 %v2912
    %3300 = vmatpush.bf16.msra.mxu0 %v2911
    %3301 = vmatpush.bf16.msra.mxu0 %v2910
    %3302 = vmatpush.bf16.msra.mxu0 %v2909
    %3303 = vmatpush.bf16.msra.mxu0 %v2908
    %3304 = vmatpush.bf16.msra.mxu0 %v2907
    %3305 = vmatmul.bf16.gmra.mxu0 %v2315
    %v3306 = vpop.f32.mrf.mxu0
    %v3307 = vadd.f32 %v3258, %v3306
    %v3308 = vpop.f32.mrf.mxu0
    %v3309 = vadd.f32 %v3260, %v3308
    %3310 = vmatmul.bf16.gmra.mxu0 %v2316
    %v3311 = vpop.f32.mrf.mxu0
    %v3312 = vadd.f32 %v3263, %v3311
    %v3313 = vpop.f32.mrf.mxu0
    %v3314 = vadd.f32 %v3265, %v3313
    %3315 = vmatmul.bf16.gmra.mxu0 %v2317
    %v3316 = vpop.f32.mrf.mxu0
    %v3317 = vadd.f32 %v3268, %v3316
    %v3318 = vpop.f32.mrf.mxu0
    %v3319 = vadd.f32 %v3270, %v3318
    %3320 = vmatmul.bf16.gmra.mxu0 %v2318
    %v3321 = vpop.f32.mrf.mxu0
    %v3322 = vadd.f32 %v3273, %v3321
    %v3323 = vpop.f32.mrf.mxu0
    %v3324 = vadd.f32 %v3275, %v3323
    %3325 = vmatmul.bf16.gmra.mxu0 %v2319
    %v3326 = vpop.f32.mrf.mxu0
    %v3327 = vadd.f32 %v3278, %v3326
    %v3328 = vpop.f32.mrf.mxu0
    %v3329 = vadd.f32 %v3280, %v3328
    %3330 = vmatmul.bf16.gmra.mxu0 %v2320
    %v3331 = vpop.f32.mrf.mxu0
    %v3332 = vadd.f32 %v3283, %v3331
    %v3333 = vpop.f32.mrf.mxu0
    %v3334 = vadd.f32 %v3285, %v3333
    %3335 = vmatmul.bf16.gmra.mxu0 %v2321
    %v3336 = vpop.f32.mrf.mxu0
    %v3337 = vadd.f32 %v3288, %v3336
    %v3338 = vpop.f32.mrf.mxu0
    %v3339 = vadd.f32 %v3290, %v3338
    %3340 = vmatmul.bf16.gmra.mxu0 %v2322
    %v3341 = vpop.f32.mrf.mxu0
    %v3342 = vadd.f32 %v3293, %v3341
    %v3343 = vpop.f32.mrf.mxu0
    %v3344 = vadd.f32 %v3295, %v3343
    %3345 = vdwg.mxu0
    %3346 = vmatpush.bf16.msra.mxu0 %v2922
    %3347 = vmatpush.bf16.msra.mxu0 %v2921
    %3348 = vmatpush.bf16.msra.mxu0 %v2920
    %3349 = vmatpush.bf16.msra.mxu0 %v2919
    %3350 = vmatpush.bf16.msra.mxu0 %v2918
    %3351 = vmatpush.bf16.msra.mxu0 %v2917
    %3352 = vmatpush.bf16.msra.mxu0 %v2916
    %3353 = vmatpush.bf16.msra.mxu0 %v2915
    %3354 = vmatmul.bf16.gmra.mxu0 %v2363
    %v3355 = vpop.f32.mrf.mxu0
    %v3356 = vadd.f32 %v3307, %v3355
    %v3357 = vpop.f32.mrf.mxu0
    %v3358 = vadd.f32 %v3309, %v3357
    %3359 = vmatmul.bf16.gmra.mxu0 %v2364
    %v3360 = vpop.f32.mrf.mxu0
    %v3361 = vadd.f32 %v3312, %v3360
    %v3362 = vpop.f32.mrf.mxu0
    %v3363 = vadd.f32 %v3314, %v3362
    %3364 = vmatmul.bf16.gmra.mxu0 %v2365
    %v3365 = vpop.f32.mrf.mxu0
    %v3366 = vadd.f32 %v3317, %v3365
    %v3367 = vpop.f32.mrf.mxu0
    %v3368 = vadd.f32 %v3319, %v3367
    %3369 = vmatmul.bf16.gmra.mxu0 %v2366
    %v3370 = vpop.f32.mrf.mxu0
    %v3371 = vadd.f32 %v3322, %v3370
    %v3372 = vpop.f32.mrf.mxu0
    %v3373 = vadd.f32 %v3324, %v3372
    %3374 = vmatmul.bf16.gmra.mxu0 %v2367
    %v3375 = vpop.f32.mrf.mxu0
    %v3376 = vadd.f32 %v3327, %v3375
    %v3377 = vpop.f32.mrf.mxu0
    %v3378 = vadd.f32 %v3329, %v3377
    %3379 = vmatmul.bf16.gmra.mxu0 %v2368
    %v3380 = vpop.f32.mrf.mxu0
    %v3381 = vadd.f32 %v3332, %v3380
    %v3382 = vpop.f32.mrf.mxu0
    %v3383 = vadd.f32 %v3334, %v3382
    %3384 = vmatmul.bf16.gmra.mxu0 %v2369
    %v3385 = vpop.f32.mrf.mxu0
    %v3386 = vadd.f32 %v3337, %v3385
    %v3387 = vpop.f32.mrf.mxu0
    %v3388 = vadd.f32 %v3339, %v3387
    %3389 = vmatmul.bf16.gmra.mxu0 %v2370
    %v3390 = vpop.f32.mrf.mxu0
    %v3391 = vadd.f32 %v3342, %v3390
    %v3392 = vpop.f32.mrf.mxu0
    %v3393 = vadd.f32 %v3344, %v3392
    %3394 = vdwg.mxu0
    %3395 = vmatpush.bf16.msra.mxu0 %v2930
    %3396 = vmatpush.bf16.msra.mxu0 %v2929
    %3397 = vmatpush.bf16.msra.mxu0 %v2928
    %3398 = vmatpush.bf16.msra.mxu0 %v2927
    %3399 = vmatpush.bf16.msra.mxu0 %v2926
    %3400 = vmatpush.bf16.msra.mxu0 %v2925
    %3401 = vmatpush.bf16.msra.mxu0 %v2924
    %3402 = vmatpush.bf16.msra.mxu0 %v2923
    %3403 = vmatmul.bf16.gmra.mxu0 %v2411
    %v3404 = vpop.f32.mrf.mxu0
    %v3405 = vadd.f32 %v3356, %v3404
    %v3406 = vpop.f32.mrf.mxu0
    %v3407 = vadd.f32 %v3358, %v3406
    %3408 = vmatmul.bf16.gmra.mxu0 %v2412
    %v3409 = vpop.f32.mrf.mxu0
    %v3410 = vadd.f32 %v3361, %v3409
    %v3411 = vpop.f32.mrf.mxu0
    %v3412 = vadd.f32 %v3363, %v3411
    %3413 = vmatmul.bf16.gmra.mxu0 %v2413
    %v3414 = vpop.f32.mrf.mxu0
    %v3415 = vadd.f32 %v3366, %v3414
    %v3416 = vpop.f32.mrf.mxu0
    %v3417 = vadd.f32 %v3368, %v3416
    %3418 = vmatmul.bf16.gmra.mxu0 %v2414
    %v3419 = vpop.f32.mrf.mxu0
    %v3420 = vadd.f32 %v3371, %v3419
    %v3421 = vpop.f32.mrf.mxu0
    %v3422 = vadd.f32 %v3373, %v3421
    %3423 = vmatmul.bf16.gmra.mxu0 %v2415
    %v3424 = vpop.f32.mrf.mxu0
    %v3425 = vadd.f32 %v3376, %v3424
    %v3426 = vpop.f32.mrf.mxu0
    %v3427 = vadd.f32 %v3378, %v3426
    %3428 = vmatmul.bf16.gmra.mxu0 %v2416
    %v3429 = vpop.f32.mrf.mxu0
    %v3430 = vadd.f32 %v3381, %v3429
    %v3431 = vpop.f32.mrf.mxu0
    %v3432 = vadd.f32 %v3383, %v3431
    %3433 = vmatmul.bf16.gmra.mxu0 %v2417
    %v3434 = vpop.f32.mrf.mxu0
    %v3435 = vadd.f32 %v3386, %v3434
    %v3436 = vpop.f32.mrf.mxu0
    %v3437 = vadd.f32 %v3388, %v3436
    %3438 = vmatmul.bf16.gmra.mxu0 %v2418
    %v3439 = vpop.f32.mrf.mxu0
    %v3440 = vadd.f32 %v3391, %v3439
    %v3441 = vpop.f32.mrf.mxu0
    %v3442 = vadd.f32 %v3393, %v3441
    %3443 = vdwg.mxu0
    %v3444 = vld [vmem:[%s7] sm:$0x1]
    %v3445 = vld [vmem:[%s8] sm:$0x1]
    %3446 = vmatpush.msra.mxu0 %v3442
    %3447 = vmatpush.msra.mxu0 %v3440
    %3448 = vmatpush.msra.mxu0 %v3437
    %3449 = vmatpush.msra.mxu0 %v3435
    %3450 = vmatpush.msra.mxu0 %v3432
    %3451 = vmatpush.msra.mxu0 %v3430
    %3452 = vmatpush.msra.mxu0 %v3427
    %3453 = vmatpush.msra.mxu0 %v3425
    %3454 = vmatpush.msra.mxu0 %v3422
    %3455 = vmatpush.msra.mxu0 %v3420
    %3456 = vmatpush.msra.mxu0 %v3417
    %3457 = vmatpush.msra.mxu0 %v3415
    %3458 = vmatpush.msra.mxu0 %v3412
    %3459 = vmatpush.msra.mxu0 %v3410
    %3460 = vmatpush.msra.mxu0 %v3407
    %3461 = vmatpush.msra.mxu0 %v3405
    %3462 = vmatmul.f32.gmra.mxu0 1.0
    %v3463 = vpop.f32.mrf.mxu0
    %v3464 = vadd.f32 0.0, %v3463
    %3465 = vdwg.mxu0
    %v3466 = vmul.f32 %v3405, %v3405
    %v3467 = vmul.f32 %v3407, %v3407
    %v3468 = vmul.f32 %v3410, %v3410
    %v3469 = vmul.f32 %v3412, %v3412
    %v3470 = vmul.f32 %v3415, %v3415
    %v3471 = vmul.f32 %v3417, %v3417
    %v3472 = vmul.f32 %v3420, %v3420
    %v3473 = vmul.f32 %v3422, %v3422
    %v3474 = vmul.f32 %v3425, %v3425
    %v3475 = vmul.f32 %v3427, %v3427
    %v3476 = vmul.f32 %v3430, %v3430
    %v3477 = vmul.f32 %v3432, %v3432
    %v3478 = vmul.f32 %v3435, %v3435
    %v3479 = vmul.f32 %v3437, %v3437
    %v3480 = vmul.f32 %v3440, %v3440
    %v3481 = vmul.f32 %v3442, %v3442
    %3482 = vmatpush.msra.mxu0 %v3481
    %3483 = vmatpush.msra.mxu0 %v3480
    %3484 = vmatpush.msra.mxu0 %v3479
    %3485 = vmatpush.msra.mxu0 %v3478
    %3486 = vmatpush.msra.mxu0 %v3477
    %3487 = vmatpush.msra.mxu0 %v3476
    %3488 = vmatpush.msra.mxu0 %v3475
    %3489 = vmatpush.msra.mxu0 %v3474
    %3490 = vmatpush.msra.mxu0 %v3473
    %3491 = vmatpush.msra.mxu0 %v3472
    %3492 = vmatpush.msra.mxu0 %v3471
    %3493 = vmatpush.msra.mxu0 %v3470
    %3494 = vmatpush.msra.mxu0 %v3469
    %3495 = vmatpush.msra.mxu0 %v3468
    %3496 = vmatpush.msra.mxu0 %v3467
    %3497 = vmatpush.msra.mxu0 %v3466
    %3498 = vmatmul.f32.gmra.mxu0 1.0
    %v3499 = vpop.f32.mrf.mxu0
    %v3500 = vadd.f32 0.0, %v3499
    %3501 = vdwg.mxu0
    %v3502 = vmul.f32 %v3464, 0.0078125
    %v3503 = vmul.f32 %v3500, 0.0078125
    %v3504 = vmul.f32 %v3502, %v3502
    %v3505 = vsub.f32 %v3503, %v3504
    %v3506 = vmax.f32 %v3505, 0.0
    %v3507 = vadd.f32 %v3506, 1e-05
    %v3508 = vrsqrt.pop %v3507
    %v3509 = vmul.f32 %v3508, %v3507
    %v3510 = vmul.f32 %v3509, %v3508
    %v3511 = vmul.f32 0.5, %v3510
    %v3512 = vsub.f32 1.5, %v3511
    %v3513 = vmul.f32 %v3508, %v3512
    %vm3514 = vweird.f32 %v3507
    %vm3515 = vweird.f32 %v3508
    %vm3516 = vmor %vm3514, %vm3515
    %v3517 = vsel %vm3516, %v3508, %v3513
    %v3518 = vmul.f32 %v3444, %v3517
    %v3519 = vmul.f32 %v3502, %v3518
    %v3520 = vsub.f32 %v3445, %v3519
    %v3522 = vperm.slane %v3518, 0
    %v3524 = vmul.f32 %v3405, %v3522
    %v3525 = vmul.f32 %v3407, %v3522
    %v3526 = vmul.f32 %v3410, %v3522
    %v3527 = vmul.f32 %v3412, %v3522
    %v3528 = vmul.f32 %v3415, %v3522
    %v3529 = vmul.f32 %v3417, %v3522
    %v3530 = vmul.f32 %v3420, %v3522
    %v3531 = vmul.f32 %v3422, %v3522
    %v3532 = vmul.f32 %v3425, %v3522
    %v3533 = vmul.f32 %v3427, %v3522
    %v3534 = vmul.f32 %v3430, %v3522
    %v3535 = vmul.f32 %v3432, %v3522
    %v3536 = vmul.f32 %v3435, %v3522
    %v3537 = vmul.f32 %v3437, %v3522
    %v3538 = vmul.f32 %v3440, %v3522
    %v3539 = vmul.f32 %v3442, %v3522
    %v3541 = vperm.slane %v3520, 0
    %v3543 = vadd.f32 %v3524, %v3541
    %v3544 = vadd.f32 %v3525, %v3541
    %v3545 = vadd.f32 %v3526, %v3541
    %v3546 = vadd.f32 %v3527, %v3541
    %v3547 = vadd.f32 %v3528, %v3541
    %v3548 = vadd.f32 %v3529, %v3541
    %v3549 = vadd.f32 %v3530, %v3541
    %v3550 = vadd.f32 %v3531, %v3541
    %v3551 = vadd.f32 %v3532, %v3541
    %v3552 = vadd.f32 %v3533, %v3541
    %v3553 = vadd.f32 %v3534, %v3541
    %v3554 = vadd.f32 %v3535, %v3541
    %v3555 = vadd.f32 %v3536, %v3541
    %v3556 = vadd.f32 %v3537, %v3541
    %v3557 = vadd.f32 %v3538, %v3541
    %v3558 = vadd.f32 %v3539, %v3541
    %v3559 = vmax.f32 %v3543, 0.0
    %v3560 = vmax.f32 %v3544, 0.0
    %v3561 = vmax.f32 %v3545, 0.0
    %v3562 = vmax.f32 %v3546, 0.0
    %v3563 = vmax.f32 %v3547, 0.0
    %v3564 = vmax.f32 %v3548, 0.0
    %v3565 = vmax.f32 %v3549, 0.0
    %v3566 = vmax.f32 %v3550, 0.0
    %v3567 = vmax.f32 %v3551, 0.0
    %v3568 = vmax.f32 %v3552, 0.0
    %v3569 = vmax.f32 %v3553, 0.0
    %v3570 = vmax.f32 %v3554, 0.0
    %v3571 = vmax.f32 %v3555, 0.0
    %v3572 = vmax.f32 %v3556, 0.0
    %v3573 = vmax.f32 %v3557, 0.0
    %v3574 = vmax.f32 %v3558, 0.0
    %v3575 = vpack.c.bf16 %v3560, %v3559
    %v3576 = vpack.c.bf16 %v3562, %v3561
    %v3577 = vpack.c.bf16 %v3564, %v3563
    %v3578 = vpack.c.bf16 %v3566, %v3565
    %v3579 = vpack.c.bf16 %v3568, %v3567
    %v3580 = vpack.c.bf16 %v3570, %v3569
    %v3581 = vpack.c.bf16 %v3572, %v3571
    %v3582 = vpack.c.bf16 %v3574, %v3573
    %v3583 = vld [vmem:[%s9] sm:$0xf]
    %v3584 = vld [vmem:[%s9 + $0x4] sm:$0xf]
    %v3585 = vld [vmem:[%s9 + $0x8] sm:$0xf]
    %v3586 = vld [vmem:[%s9 + $0xc] sm:$0xf]
    %v3587 = vld [vmem:[%s9 + $0x10] sm:$0xf]
    %v3588 = vld [vmem:[%s9 + $0x14] sm:$0xf]
    %v3589 = vld [vmem:[%s9 + $0x18] sm:$0xf]
    %v3590 = vld [vmem:[%s9 + $0x1c] sm:$0xf]
    %v3591 = vld [vmem:[%s9 + $0x20] sm:$0xf]
    %v3592 = vld [vmem:[%s9 + $0x24] sm:$0xf]
    %v3593 = vld [vmem:[%s9 + $0x28] sm:$0xf]
    %v3594 = vld [vmem:[%s9 + $0x2c] sm:$0xf]
    %v3595 = vld [vmem:[%s9 + $0x30] sm:$0xf]
    %v3596 = vld [vmem:[%s9 + $0x34] sm:$0xf]
    %v3597 = vld [vmem:[%s9 + $0x38] sm:$0xf]
    %v3598 = vld [vmem:[%s9 + $0x3c] sm:$0xf]
    %v3615 = vunpack.c.l.b16 %v3583
    %v3616 = vunpack.c.l.b16 %v3584
    %v3617 = vunpack.c.l.b16 %v3585
    %v3618 = vunpack.c.l.b16 %v3586
    %v3619 = vunpack.c.l.b16 %v3587
    %v3620 = vunpack.c.l.b16 %v3588
    %v3621 = vunpack.c.l.b16 %v3589
    %v3622 = vunpack.c.l.b16 %v3590
    %v3623 = vunpack.c.l.b16 %v3591
    %v3624 = vunpack.c.l.b16 %v3592
    %v3625 = vunpack.c.l.b16 %v3593
    %v3626 = vunpack.c.l.b16 %v3594
    %v3627 = vunpack.c.l.b16 %v3595
    %v3628 = vunpack.c.l.b16 %v3596
    %v3629 = vunpack.c.l.b16 %v3597
    %v3630 = vunpack.c.l.b16 %v3598
    %v3631 = vpack.c.b16 %v3616, %v3615
    %v3632 = vpack.c.b16 %v3618, %v3617
    %v3633 = vpack.c.b16 %v3620, %v3619
    %v3634 = vpack.c.b16 %v3622, %v3621
    %v3635 = vpack.c.b16 %v3624, %v3623
    %v3636 = vpack.c.b16 %v3626, %v3625
    %v3637 = vpack.c.b16 %v3628, %v3627
    %v3638 = vpack.c.b16 %v3630, %v3629
    %3647 = vmatpush.bf16.msra.mxu0 %v3638
    %3648 = vmatpush.bf16.msra.mxu0 %v3637
    %3649 = vmatpush.bf16.msra.mxu0 %v3636
    %3650 = vmatpush.bf16.msra.mxu0 %v3635
    %3651 = vmatpush.bf16.msra.mxu0 %v3634
    %3652 = vmatpush.bf16.msra.mxu0 %v3633
    %3653 = vmatpush.bf16.msra.mxu0 %v3632
    %3654 = vmatpush.bf16.msra.mxu0 %v3631
    %3655 = vmatmul.bf16.gmra.mxu0 %v3575
    %v3656 = vpop.f32.mrf.mxu0
    %v3657 = vadd.f32 0.0, %v3656
    %v3658 = vpop.f32.mrf.mxu0
    %v3659 = vadd.f32 0.0, %v3658
    %3660 = vmatmul.bf16.gmra.mxu0 %v3576
    %v3661 = vpop.f32.mrf.mxu0
    %v3662 = vadd.f32 0.0, %v3661
    %v3663 = vpop.f32.mrf.mxu0
    %v3664 = vadd.f32 0.0, %v3663
    %3665 = vmatmul.bf16.gmra.mxu0 %v3577
    %v3666 = vpop.f32.mrf.mxu0
    %v3667 = vadd.f32 0.0, %v3666
    %v3668 = vpop.f32.mrf.mxu0
    %v3669 = vadd.f32 0.0, %v3668
    %3670 = vmatmul.bf16.gmra.mxu0 %v3578
    %v3671 = vpop.f32.mrf.mxu0
    %v3672 = vadd.f32 0.0, %v3671
    %v3673 = vpop.f32.mrf.mxu0
    %v3674 = vadd.f32 0.0, %v3673
    %3675 = vmatmul.bf16.gmra.mxu0 %v3579
    %v3676 = vpop.f32.mrf.mxu0
    %v3677 = vadd.f32 0.0, %v3676
    %v3678 = vpop.f32.mrf.mxu0
    %v3679 = vadd.f32 0.0, %v3678
    %3680 = vmatmul.bf16.gmra.mxu0 %v3580
    %v3681 = vpop.f32.mrf.mxu0
    %v3682 = vadd.f32 0.0, %v3681
    %v3683 = vpop.f32.mrf.mxu0
    %v3684 = vadd.f32 0.0, %v3683
    %3685 = vmatmul.bf16.gmra.mxu0 %v3581
    %v3686 = vpop.f32.mrf.mxu0
    %v3687 = vadd.f32 0.0, %v3686
    %v3688 = vpop.f32.mrf.mxu0
    %v3689 = vadd.f32 0.0, %v3688
    %3690 = vmatmul.bf16.gmra.mxu0 %v3582
    %v3691 = vpop.f32.mrf.mxu0
    %v3692 = vadd.f32 0.0, %v3691
    %v3693 = vpop.f32.mrf.mxu0
    %v3694 = vadd.f32 0.0, %v3693
    %3695 = vdwg.mxu0
    %v3696 = vld [vmem:[%s10] sm:$0x1]
    %v3697 = vld [vmem:[%s11] sm:$0x1]
    %3698 = vmatpush.msra.mxu0 %v3694
    %3699 = vmatpush.msra.mxu0 %v3692
    %3700 = vmatpush.msra.mxu0 %v3689
    %3701 = vmatpush.msra.mxu0 %v3687
    %3702 = vmatpush.msra.mxu0 %v3684
    %3703 = vmatpush.msra.mxu0 %v3682
    %3704 = vmatpush.msra.mxu0 %v3679
    %3705 = vmatpush.msra.mxu0 %v3677
    %3706 = vmatpush.msra.mxu0 %v3674
    %3707 = vmatpush.msra.mxu0 %v3672
    %3708 = vmatpush.msra.mxu0 %v3669
    %3709 = vmatpush.msra.mxu0 %v3667
    %3710 = vmatpush.msra.mxu0 %v3664
    %3711 = vmatpush.msra.mxu0 %v3662
    %3712 = vmatpush.msra.mxu0 %v3659
    %3713 = vmatpush.msra.mxu0 %v3657
    %3714 = vmatmul.f32.gmra.mxu0 1.0
    %v3715 = vpop.f32.mrf.mxu0
    %v3716 = vadd.f32 0.0, %v3715
    %3717 = vdwg.mxu0
    %v3718 = vmul.f32 %v3657, %v3657
    %v3719 = vmul.f32 %v3659, %v3659
    %v3720 = vmul.f32 %v3662, %v3662
    %v3721 = vmul.f32 %v3664, %v3664
    %v3722 = vmul.f32 %v3667, %v3667
    %v3723 = vmul.f32 %v3669, %v3669
    %v3724 = vmul.f32 %v3672, %v3672
    %v3725 = vmul.f32 %v3674, %v3674
    %v3726 = vmul.f32 %v3677, %v3677
    %v3727 = vmul.f32 %v3679, %v3679
    %v3728 = vmul.f32 %v3682, %v3682
    %v3729 = vmul.f32 %v3684, %v3684
    %v3730 = vmul.f32 %v3687, %v3687
    %v3731 = vmul.f32 %v3689, %v3689
    %v3732 = vmul.f32 %v3692, %v3692
    %v3733 = vmul.f32 %v3694, %v3694
    %3734 = vmatpush.msra.mxu0 %v3733
    %3735 = vmatpush.msra.mxu0 %v3732
    %3736 = vmatpush.msra.mxu0 %v3731
    %3737 = vmatpush.msra.mxu0 %v3730
    %3738 = vmatpush.msra.mxu0 %v3729
    %3739 = vmatpush.msra.mxu0 %v3728
    %3740 = vmatpush.msra.mxu0 %v3727
    %3741 = vmatpush.msra.mxu0 %v3726
    %3742 = vmatpush.msra.mxu0 %v3725
    %3743 = vmatpush.msra.mxu0 %v3724
    %3744 = vmatpush.msra.mxu0 %v3723
    %3745 = vmatpush.msra.mxu0 %v3722
    %3746 = vmatpush.msra.mxu0 %v3721
    %3747 = vmatpush.msra.mxu0 %v3720
    %3748 = vmatpush.msra.mxu0 %v3719
    %3749 = vmatpush.msra.mxu0 %v3718
    %3750 = vmatmul.f32.gmra.mxu0 1.0
    %v3751 = vpop.f32.mrf.mxu0
    %v3752 = vadd.f32 0.0, %v3751
    %3753 = vdwg.mxu0
    %v3754 = vmul.f32 %v3716, 0.0078125
    %v3755 = vmul.f32 %v3752, 0.0078125
    %v3756 = vmul.f32 %v3754, %v3754
    %v3757 = vsub.f32 %v3755, %v3756
    %v3758 = vmax.f32 %v3757, 0.0
    %v3759 = vadd.f32 %v3758, 1e-05
    %v3760 = vrsqrt.pop %v3759
    %v3761 = vmul.f32 %v3760, %v3759
    %v3762 = vmul.f32 %v3761, %v3760
    %v3763 = vmul.f32 0.5, %v3762
    %v3764 = vsub.f32 1.5, %v3763
    %v3765 = vmul.f32 %v3760, %v3764
    %vm3766 = vweird.f32 %v3759
    %vm3767 = vweird.f32 %v3760
    %vm3768 = vmor %vm3766, %vm3767
    %v3769 = vsel %vm3768, %v3760, %v3765
    %v3770 = vmul.f32 %v3696, %v3769
    %v3771 = vmul.f32 %v3754, %v3770
    %v3772 = vsub.f32 %v3697, %v3771
    %v3774 = vperm.slane %v3770, 0
    %v3776 = vmul.f32 %v3657, %v3774
    %v3777 = vmul.f32 %v3659, %v3774
    %v3778 = vmul.f32 %v3662, %v3774
    %v3779 = vmul.f32 %v3664, %v3774
    %v3780 = vmul.f32 %v3667, %v3774
    %v3781 = vmul.f32 %v3669, %v3774
    %v3782 = vmul.f32 %v3672, %v3774
    %v3783 = vmul.f32 %v3674, %v3774
    %v3784 = vmul.f32 %v3677, %v3774
    %v3785 = vmul.f32 %v3679, %v3774
    %v3786 = vmul.f32 %v3682, %v3774
    %v3787 = vmul.f32 %v3684, %v3774
    %v3788 = vmul.f32 %v3687, %v3774
    %v3789 = vmul.f32 %v3689, %v3774
    %v3790 = vmul.f32 %v3692, %v3774
    %v3791 = vmul.f32 %v3694, %v3774
    %v3793 = vperm.slane %v3772, 0
    %v3795 = vadd.f32 %v3776, %v3793
    %v3796 = vadd.f32 %v3777, %v3793
    %v3797 = vadd.f32 %v3778, %v3793
    %v3798 = vadd.f32 %v3779, %v3793
    %v3799 = vadd.f32 %v3780, %v3793
    %v3800 = vadd.f32 %v3781, %v3793
    %v3801 = vadd.f32 %v3782, %v3793
    %v3802 = vadd.f32 %v3783, %v3793
    %v3803 = vadd.f32 %v3784, %v3793
    %v3804 = vadd.f32 %v3785, %v3793
    %v3805 = vadd.f32 %v3786, %v3793
    %v3806 = vadd.f32 %v3787, %v3793
    %v3807 = vadd.f32 %v3788, %v3793
    %v3808 = vadd.f32 %v3789, %v3793
    %v3809 = vadd.f32 %v3790, %v3793
    %v3810 = vadd.f32 %v3791, %v3793
    %v3811 = vadd.f32 %v3795, %v58
    %v3812 = vadd.f32 %v3796, %v59
    %v3813 = vadd.f32 %v3797, %v60
    %v3814 = vadd.f32 %v3798, %v61
    %v3815 = vadd.f32 %v3799, %v62
    %v3816 = vadd.f32 %v3800, %v63
    %v3817 = vadd.f32 %v3801, %v64
    %v3818 = vadd.f32 %v3802, %v65
    %v3819 = vadd.f32 %v3803, %v66
    %v3820 = vadd.f32 %v3804, %v67
    %v3821 = vadd.f32 %v3805, %v68
    %v3822 = vadd.f32 %v3806, %v69
    %v3823 = vadd.f32 %v3807, %v70
    %v3824 = vadd.f32 %v3808, %v71
    %v3825 = vadd.f32 %v3809, %v72
    %v3826 = vadd.f32 %v3810, %v73
    %v3827 = vmax.f32 %v3811, 0.0
    %v3828 = vmax.f32 %v3812, 0.0
    %v3829 = vmax.f32 %v3813, 0.0
    %v3830 = vmax.f32 %v3814, 0.0
    %v3831 = vmax.f32 %v3815, 0.0
    %v3832 = vmax.f32 %v3816, 0.0
    %v3833 = vmax.f32 %v3817, 0.0
    %v3834 = vmax.f32 %v3818, 0.0
    %v3835 = vmax.f32 %v3819, 0.0
    %v3836 = vmax.f32 %v3820, 0.0
    %v3837 = vmax.f32 %v3821, 0.0
    %v3838 = vmax.f32 %v3822, 0.0
    %v3839 = vmax.f32 %v3823, 0.0
    %v3840 = vmax.f32 %v3824, 0.0
    %v3841 = vmax.f32 %v3825, 0.0
    %v3842 = vmax.f32 %v3826, 0.0
    %3843 = vst.msk [vmem:[%s12] sm:$0xff] %vm122, %v3827
    %3844 = vst.msk [vmem:[%s12 + $0x8] sm:$0xff] %vm122, %v3828
    %3845 = vst.msk [vmem:[%s12 + $0x10] sm:$0xff] %vm122, %v3829
    %3846 = vst.msk [vmem:[%s12 + $0x18] sm:$0xff] %vm122, %v3830
    %3847 = vst.msk [vmem:[%s12 + $0x20] sm:$0xff] %vm122, %v3831
    %3848 = vst.msk [vmem:[%s12 + $0x28] sm:$0xff] %vm122, %v3832
    %3849 = vst.msk [vmem:[%s12 + $0x30] sm:$0xff] %vm122, %v3833
    %3850 = vst.msk [vmem:[%s12 + $0x38] sm:$0xff] %vm122, %v3834
    %3851 = vst.msk [vmem:[%s12 + $0x40] sm:$0xff] %vm122, %v3835
    %3852 = vst.msk [vmem:[%s12 + $0x48] sm:$0xff] %vm122, %v3836
    %3853 = vst.msk [vmem:[%s12 + $0x50] sm:$0xff] %vm122, %v3837
    %3854 = vst.msk [vmem:[%s12 + $0x58] sm:$0xff] %vm122, %v3838
    %3855 = vst.msk [vmem:[%s12 + $0x60] sm:$0xff] %vm122, %v3839
    %3856 = vst.msk [vmem:[%s12 + $0x68] sm:$0xff] %vm122, %v3840
    %3857 = vst.msk [vmem:[%s12 + $0x70] sm:$0xff] %vm122, %v3841
    %3858 = vst.msk [vmem:[%s12 + $0x78] sm:$0xff] %vm122, %v3842
    // Predicated region
    $region54: #{tpu_custom_call.1} parent=1 // pred_check
      _
    $region55: #{tpu_custom_call.1} parent=1 // pred_check_branch
      %3860 = sbr.rel (0) target = $region57
    $region56: #{tpu_custom_call.1} parent=1 // pred_region
      _
    $region57: #{tpu_custom_call.1} parent=1 // pred_fallthru
      _
    // Predicated region
    $region58: #{tpu_custom_call.1} parent=1 // pred_check
      _
    $region59: #{tpu_custom_call.1} parent=1 // pred_check_branch
      %3862 = sbr.rel (0) target = $region61
    $region60: #{tpu_custom_call.1} parent=1 // pred_region
      _
    $region61: #{tpu_custom_call.1} parent=1 // pred_fallthru
      _
    %3863 = vsyncpa [#allocation3], 1

</llo_original>
